<compile_context>
chip_gen: v5e
topology: v5e:2x2
jax: 0.10.0
libtpu: 0.0.40
codegen_flags: <defaults>
</compile_context>

<pallas_src>
import numpy as np
import jax
import jax.numpy as jnp
from jax.experimental import pallas as pl
from jax.experimental.pallas import tpu as pltpu


def _build_block_weight(w, width):
    """Pack a ConvTranspose2d weight into the per-layer block-diagonal matmul weight.

    w:      (Cin, Cout, 3, 3)  -- PyTorch ConvTranspose2d layout
    width:  input spatial width W of this layer
    returns (4*W*Cin, 2*(2*W*Cout)) with
      row index    k = tap*(W*Cin) + j*Cin + ic,  tap=(di,dj) in [(0,0),(0,1),(1,0),(1,1)]
      column index q = a*(2*W*Cout) + j'*(2*Cout) + b*Cout + oc
      entry        = delta(j, j') * w[ic, oc, a+1-2*di, b+1-2*dj]   (0 if kernel
                     index falls outside [0, 2]).
    a / b are the output row / column parities of the stride-2 transposed conv.
    """
    cin, cout = w.shape[0], w.shape[1]
    s = jnp.zeros((2, 2, 2, 2, cin, cout), w.dtype)
    for di in range(2):
        for dj in range(2):
            for a in range(2):
                for b in range(2):
                    kh = a + 1 - 2 * di
                    kw = b + 1 - 2 * dj
                    if 0 <= kh <= 2 and 0 <= kw <= 2:
                        s = s.at[di, dj, a, b].set(w[:, :, kh, kw])
    eye = jnp.eye(width, dtype=w.dtype)
    big = jnp.einsum('xyabco,jk->xyjcakbo', s, eye)
    return big.reshape(4 * width * cin, 2 * (2 * width * cout))


def _make_fused_kernel(layer_dims):
    """layer_dims: list of (H, W, Cin, Cout) per ConvTranspose2d layer (static)."""
    n_layers = len(layer_dims)

    def kernel(*refs):
        x_ref = refs[0]
        out_ref = refs[1 + 2 * n_layers]
        act_refs = refs[2 + 2 * n_layers:]

        # padded, row-flattened activation of the current layer: (H+1, (W+1)*C)
        cur = x_ref[0, :, :]
        for l, (h, w_sp, c, co) in enumerate(layer_dims):
            wall_ref = refs[1 + 2 * l]      # (4*W*C, 2*F) bf16, F = 2*W*Cout
            bias_ref = refs[2 + 2 * l]      # (1, 2*F)     f32
            wc = w_sp * c
            f = 2 * w_sp * co               # flat width of ONE output row

            # the four shifted parity taps (di, dj) of the padded input;
            # built once per layer (not per row) and folded into a single matmul.
            s00 = cur[0:h, 0:wc]
            s01 = cur[0:h, c:c + wc]
            s10 = cur[1:h + 1, 0:wc]
            s11 = cur[1:h + 1, c:c + wc]
            a_mat = jnp.concatenate([s00, s01, s10, s11], axis=1)    # (H, 4*W*C)

            # one MXU matmul per layer: both output-row parities for the whole
            # image at once; bf16 operands, f32 accumulation.
            y = jnp.dot(a_mat.astype(jnp.bfloat16), wall_ref[...],
                        preferred_element_type=jnp.float32)           # (H, 2*F)
            y = y + bias_ref[...]

            if l == n_layers - 1:
                out_ref[0, :, :] = y        # lane-dense (H, 2*F) store
            else:
                # de-interleave the two row parities into the next layer's
                # padded flat activation -- stays in VMEM, never touches HBM.
                act = act_refs[l]
                act[...] = jnp.zeros_like(act)   # zero pad row / pad columns
                for i in range(h):
                    act[2 * i:2 * i + 1, 0:f] = y[i:i + 1, 0:f]
                    act[2 * i + 1:2 * i + 2, 0:f] = y[i:i + 1, f:2 * f]
                cur = act[...]

    return kernel


def updla_unit_forward(x_nchw, params):
    """UPDLAUnit forward: (N, Cin, H, W) -> (N, Cout, H*2**repeat, W*2**repeat)."""
    n, c0, h0, w0 = x_nchw.shape

    # static per-layer geometry
    layer_dims = []
    h, w_sp, c = h0, w0, c0
    for (wt, _) in params:
        co = wt.shape[1]
        layer_dims.append((h, w_sp, c, co))
        h, w_sp, c = 2 * h, 2 * w_sp, co
    h_last, w_last, _, co_last = layer_dims[-1]

    # packed per-layer weights / biases (cheap einsum; in production precompute once)
    flat_params = []
    for (wt, bs), (hl, wl, cl, col) in zip(params, layer_dims):
        wall = _build_block_weight(wt, wl).astype(jnp.bfloat16)
        bflat = jnp.tile(bs, 4 * wl).reshape(1, -1).astype(jnp.float32)
        flat_params += [wall, bflat]

    # NCHW -> NHWC -> zero-pad bottom/right by 1 (covers the i+1 / j+1 taps at the
    # image edge; this is exactly the output_padding=1 semantics) -> flatten rows.
    x = jnp.transpose(x_nchw, (0, 2, 3, 1))
    x = jnp.pad(x, ((0, 0), (0, 1), (0, 1), (0, 0)))
    x = x.reshape(n, h0 + 1, (w0 + 1) * c0)

    in_specs = [pl.BlockSpec((1, h0 + 1, (w0 + 1) * c0), lambda i: (i, 0, 0))]
    for (hl, wl, cl, col) in layer_dims:
        k = 4 * wl * cl
        nn = 2 * (2 * wl * col)
        in_specs.append(pl.BlockSpec((k, nn), lambda i: (0, 0)))
        in_specs.append(pl.BlockSpec((1, nn), lambda i: (0, 0)))
    out_spec = pl.BlockSpec((1, h_last, 2 * (2 * w_last * co_last)),
                            lambda i: (i, 0, 0))
    scratch = [pltpu.VMEM((2 * hl + 1, (2 * wl + 1) * col), jnp.float32)
               for (hl, wl, cl, col) in layer_dims[:-1]]

    out_flat = pl.pallas_call(
        _make_fused_kernel(layer_dims),
        out_shape=jax.ShapeDtypeStruct(
            (n, h_last, 2 * (2 * w_last * co_last)), jnp.float32),
        grid_spec=pltpu.PrefetchScalarGridSpec(
            num_scalar_prefetch=0,
            grid=(n,),
            in_specs=in_specs,
            out_specs=out_spec,
            scratch_shapes=scratch),
        compiler_params=pltpu.CompilerParams(
            dimension_semantics=("parallel",)),
    )(x, *flat_params)

    # (N, H, 2, W, 2, Cout) -> (N, 2H, 2W, Cout): contiguous reshape, free.
    out = out_flat.reshape(n, 2 * h_last, 2 * w_last, co_last)
    return jnp.transpose(out, (0, 3, 1, 2))


def init_updla_params(key, repeat, in_channel, out_channel):
    """Deterministic init mirroring ConvTranspose2d shapes (Cin, Cout, 3, 3), (Cout,)."""
    params = []
    cin = in_channel
    for _ in range(repeat):
        key, kw_, kb_ = jax.random.split(key, 3)
        bound = 1.0 / np.sqrt(cin * 9)
        w = jax.random.uniform(kw_, (cin, out_channel, 3, 3), jnp.float32, -bound, bound)
        bb = jax.random.uniform(kb_, (out_channel,), jnp.float32, -bound, bound)
        params.append((w, bb))
        cin = out_channel
    return params


def _ref_conv_transpose_nhwc(x, w, b):
    """NumPy reference for ConvTranspose2d(k=3, s=2, p=1, out_p=1), NHWC."""
    N, H, W, Cin = x.shape
    Cout = w.shape[1]
    yf = np.zeros((N, 2 * H + 2, 2 * W + 2, Cout), np.float32)
    for kh in range(3):
        for kw in range(3):
            yf[:, kh:kh + 2 * H:2, kw:kw + 2 * W:2, :] += np.einsum(
                'nhwc,cd->nhwd', x, w[:, :, kh, kw])
    return yf[:, 1:2 * H + 1, 1:2 * W + 1, :] + b


if __name__ == "__main__":
    repeat, in_channel, out_channel = 2, 4, 8
    n, h, w = 2, 16, 16

    key = jax.random.PRNGKey(0)
    kx, kp = jax.random.split(key)
    x = jax.random.normal(kx, (n, in_channel, h, w), jnp.float32)
    params = init_updla_params(kp, repeat, in_channel, out_channel)

    forward = jax.jit(updla_unit_forward)
    out = jax.block_until_ready(forward(x, params))
    assert out.shape == (n, out_channel, h * 2 ** repeat, w * 2 ** repeat), out.shape

    # correctness check against a NumPy reference of the PyTorch semantics
    # (tolerances account for bf16 matmul operands; accumulation is f32)
    ref = np.transpose(np.asarray(x), (0, 2, 3, 1))
    for wt, bs in params:
        ref = _ref_conv_transpose_nhwc(ref, np.asarray(wt), np.asarray(bs))
    ref = np.transpose(ref, (0, 3, 1, 2))
    np.testing.assert_allclose(np.asarray(out), ref, rtol=5e-2, atol=5e-2)

    print("KERNEL_OK")
</pallas_src>

<mosaic_0001>
module attributes {stable_mosaic.version = 11 : i64} {
  func.func @kernel(%arg0: i32, %arg1: memref<1x17x68xf32, #tpu.memory_space<vmem>>, %arg2: memref<256x512xbf16, #tpu.memory_space<vmem>>, %arg3: memref<1x512xf32, #tpu.memory_space<vmem>>, %arg4: memref<1024x1024xbf16, #tpu.memory_space<vmem>>, %arg5: memref<1x1024xf32, #tpu.memory_space<vmem>>, %arg6: memref<1x32x1024xf32, #tpu.memory_space<vmem>>, %arg7: memref<33x264xf32, #tpu.memory_space<vmem>>) attributes {dimension_semantics = [#tpu.dimension_semantics<parallel>], iteration_bounds = array<i64: 2>, scalar_prefetch = 0 : i64, scratch_operands = 1 : i64, tpu.core_type = #tpu.core_type<tc>, window_params = [{transform_indices = @transform_0, window_bounds = array<i64: 1, 17, 68>}, {pipeline_mode = #tpu.pipeline_mode<synchronous>, transform_indices = @transform_1, window_bounds = array<i64: 256, 512>}, {pipeline_mode = #tpu.pipeline_mode<synchronous>, transform_indices = @transform_2, window_bounds = array<i64: 1, 512>}, {pipeline_mode = #tpu.pipeline_mode<synchronous>, transform_indices = @transform_3, window_bounds = array<i64: 1024, 1024>}, {pipeline_mode = #tpu.pipeline_mode<synchronous>, transform_indices = @transform_4, window_bounds = array<i64: 1, 1024>}, {transform_indices = @transform_5, window_bounds = array<i64: 1, 32, 1024>}]} {
    %c0 = arith.constant 0 : index
    %c0_0 = arith.constant 0 : index
    %c0_1 = arith.constant 0 : index
    %0 = vector.load %arg1[%c0, %c0_0, %c0_1] : memref<1x17x68xf32, #tpu.memory_space<vmem>>, vector<1x17x68xf32>
    %1 = vector.shape_cast %0 : vector<1x17x68xf32> to vector<17x68xf32>
    %2 = vector.extract_strided_slice %1 {offsets = [0, 0], sizes = [16, 64], strides = [1, 1]} : vector<17x68xf32> to vector<16x64xf32>
    %3 = vector.extract_strided_slice %1 {offsets = [0, 4], sizes = [16, 64], strides = [1, 1]} : vector<17x68xf32> to vector<16x64xf32>
    %4 = vector.extract_strided_slice %1 {offsets = [1, 0], sizes = [16, 64], strides = [1, 1]} : vector<17x68xf32> to vector<16x64xf32>
    %5 = vector.extract_strided_slice %1 {offsets = [1, 4], sizes = [16, 64], strides = [1, 1]} : vector<17x68xf32> to vector<16x64xf32>
    %6 = tpu.concatenate %2, %3, %4, %5 in 1 : vector<16x64xf32>, vector<16x64xf32>, vector<16x64xf32>, vector<16x64xf32> -> vector<16x256xf32>
    %7 = arith.truncf %6 : vector<16x256xf32> to vector<16x256xbf16>
    %c0_2 = arith.constant 0 : index
    %c0_3 = arith.constant 0 : index
    %8 = vector.load %arg2[%c0_2, %c0_3] : memref<256x512xbf16, #tpu.memory_space<vmem>>, vector<256x512xbf16>
    %cst = arith.constant dense<0.000000e+00> : vector<16x512xf32>
    %9 = tpu.matmul %7, %8, %cst {dimension_numbers = #tpu.dot_dimension_numbers<[1], [0], [0], [1], [0, 0, 1, 1], [], []>} : vector<16x256xbf16>, vector<256x512xbf16>, vector<16x512xf32> -> vector<16x512xf32>
    %c0_4 = arith.constant 0 : index
    %c0_5 = arith.constant 0 : index
    %10 = vector.load %arg3[%c0_4, %c0_5] : memref<1x512xf32, #tpu.memory_space<vmem>>, vector<1x512xf32>
    %11 = vector.broadcast %10 : vector<1x512xf32> to vector<16x512xf32>
    %12 = arith.addf %9, %11 : vector<16x512xf32>
    %cst_6 = arith.constant 0.000000e+00 : f32
    %13 = vector.broadcast %cst_6 : f32 to vector<33x264xf32>
    %c0_7 = arith.constant 0 : index
    %c0_8 = arith.constant 0 : index
    %14 = vector.load %arg7[%c0_7, %c0_8] : memref<33x264xf32, #tpu.memory_space<vmem>>, vector<33x264xf32>
    tpu.vector_store %arg7[%c0_7, %c0_8], %13 {strides = array<i32>} : memref<33x264xf32, #tpu.memory_space<vmem>>, vector<33x264xf32>,
    %15 = vector.extract_strided_slice %12 {offsets = [0, 0], sizes = [1, 256], strides = [1, 1]} : vector<16x512xf32> to vector<1x256xf32>
    %c0_9 = arith.constant 0 : index
    %c0_10 = arith.constant 0 : index
    %16 = vector.load %arg7[%c0_9, %c0_10] : memref<33x264xf32, #tpu.memory_space<vmem>>, vector<1x256xf32>
    tpu.vector_store %arg7[%c0_9, %c0_10], %15 {strides = array<i32>} : memref<33x264xf32, #tpu.memory_space<vmem>>, vector<1x256xf32>,
    %17 = vector.extract_strided_slice %12 {offsets = [0, 256], sizes = [1, 256], strides = [1, 1]} : vector<16x512xf32> to vector<1x256xf32>
    %c1 = arith.constant 1 : index
    %c0_11 = arith.constant 0 : index
    %18 = vector.load %arg7[%c1, %c0_11] : memref<33x264xf32, #tpu.memory_space<vmem>>, vector<1x256xf32>
    tpu.vector_store %arg7[%c1, %c0_11], %17 {strides = array<i32>} : memref<33x264xf32, #tpu.memory_space<vmem>>, vector<1x256xf32>,
    %19 = vector.extract_strided_slice %12 {offsets = [1, 0], sizes = [1, 256], strides = [1, 1]} : vector<16x512xf32> to vector<1x256xf32>
    %c2 = arith.constant 2 : index
    %c0_12 = arith.constant 0 : index
    %20 = vector.load %arg7[%c2, %c0_12] : memref<33x264xf32, #tpu.memory_space<vmem>>, vector<1x256xf32>
    tpu.vector_store %arg7[%c2, %c0_12], %19 {strides = array<i32>} : memref<33x264xf32, #tpu.memory_space<vmem>>, vector<1x256xf32>,
    %21 = vector.extract_strided_slice %12 {offsets = [1, 256], sizes = [1, 256], strides = [1, 1]} : vector<16x512xf32> to vector<1x256xf32>
    %c3 = arith.constant 3 : index
    %c0_13 = arith.constant 0 : index
    %22 = vector.load %arg7[%c3, %c0_13] : memref<33x264xf32, #tpu.memory_space<vmem>>, vector<1x256xf32>
    tpu.vector_store %arg7[%c3, %c0_13], %21 {strides = array<i32>} : memref<33x264xf32, #tpu.memory_space<vmem>>, vector<1x256xf32>,
    %23 = vector.extract_strided_slice %12 {offsets = [2, 0], sizes = [1, 256], strides = [1, 1]} : vector<16x512xf32> to vector<1x256xf32>
    %c4 = arith.constant 4 : index
    %c0_14 = arith.constant 0 : index
    %24 = vector.load %arg7[%c4, %c0_14] : memref<33x264xf32, #tpu.memory_space<vmem>>, vector<1x256xf32>
    tpu.vector_store %arg7[%c4, %c0_14], %23 {strides = array<i32>} : memref<33x264xf32, #tpu.memory_space<vmem>>, vector<1x256xf32>,
    %25 = vector.extract_strided_slice %12 {offsets = [2, 256], sizes = [1, 256], strides = [1, 1]} : vector<16x512xf32> to vector<1x256xf32>
    %c5 = arith.constant 5 : index
    %c0_15 = arith.constant 0 : index
    %26 = vector.load %arg7[%c5, %c0_15] : memref<33x264xf32, #tpu.memory_space<vmem>>, vector<1x256xf32>
    tpu.vector_store %arg7[%c5, %c0_15], %25 {strides = array<i32>} : memref<33x264xf32, #tpu.memory_space<vmem>>, vector<1x256xf32>,
    %27 = vector.extract_strided_slice %12 {offsets = [3, 0], sizes = [1, 256], strides = [1, 1]} : vector<16x512xf32> to vector<1x256xf32>
    %c6 = arith.constant 6 : index
    %c0_16 = arith.constant 0 : index
    %28 = vector.load %arg7[%c6, %c0_16] : memref<33x264xf32, #tpu.memory_space<vmem>>, vector<1x256xf32>
    tpu.vector_store %arg7[%c6, %c0_16], %27 {strides = array<i32>} : memref<33x264xf32, #tpu.memory_space<vmem>>, vector<1x256xf32>,
    %29 = vector.extract_strided_slice %12 {offsets = [3, 256], sizes = [1, 256], strides = [1, 1]} : vector<16x512xf32> to vector<1x256xf32>
    %c7 = arith.constant 7 : index
    %c0_17 = arith.constant 0 : index
    %30 = vector.load %arg7[%c7, %c0_17] : memref<33x264xf32, #tpu.memory_space<vmem>>, vector<1x256xf32>
    tpu.vector_store %arg7[%c7, %c0_17], %29 {strides = array<i32>} : memref<33x264xf32, #tpu.memory_space<vmem>>, vector<1x256xf32>,
    %31 = vector.extract_strided_slice %12 {offsets = [4, 0], sizes = [1, 256], strides = [1, 1]} : vector<16x512xf32> to vector<1x256xf32>
    %c8 = arith.constant 8 : index
    %c0_18 = arith.constant 0 : index
    %32 = vector.load %arg7[%c8, %c0_18] : memref<33x264xf32, #tpu.memory_space<vmem>>, vector<1x256xf32>
    tpu.vector_store %arg7[%c8, %c0_18], %31 {strides = array<i32>} : memref<33x264xf32, #tpu.memory_space<vmem>>, vector<1x256xf32>,
    %33 = vector.extract_strided_slice %12 {offsets = [4, 256], sizes = [1, 256], strides = [1, 1]} : vector<16x512xf32> to vector<1x256xf32>
    %c9 = arith.constant 9 : index
    %c0_19 = arith.constant 0 : index
    %34 = vector.load %arg7[%c9, %c0_19] : memref<33x264xf32, #tpu.memory_space<vmem>>, vector<1x256xf32>
    tpu.vector_store %arg7[%c9, %c0_19], %33 {strides = array<i32>} : memref<33x264xf32, #tpu.memory_space<vmem>>, vector<1x256xf32>,
    %35 = vector.extract_strided_slice %12 {offsets = [5, 0], sizes = [1, 256], strides = [1, 1]} : vector<16x512xf32> to vector<1x256xf32>
    %c10 = arith.constant 10 : index
    %c0_20 = arith.constant 0 : index
    %36 = vector.load %arg7[%c10, %c0_20] : memref<33x264xf32, #tpu.memory_space<vmem>>, vector<1x256xf32>
    tpu.vector_store %arg7[%c10, %c0_20], %35 {strides = array<i32>} : memref<33x264xf32, #tpu.memory_space<vmem>>, vector<1x256xf32>,
    %37 = vector.extract_strided_slice %12 {offsets = [5, 256], sizes = [1, 256], strides = [1, 1]} : vector<16x512xf32> to vector<1x256xf32>
    %c11 = arith.constant 11 : index
    %c0_21 = arith.constant 0 : index
    %38 = vector.load %arg7[%c11, %c0_21] : memref<33x264xf32, #tpu.memory_space<vmem>>, vector<1x256xf32>
    tpu.vector_store %arg7[%c11, %c0_21], %37 {strides = array<i32>} : memref<33x264xf32, #tpu.memory_space<vmem>>, vector<1x256xf32>,
    %39 = vector.extract_strided_slice %12 {offsets = [6, 0], sizes = [1, 256], strides = [1, 1]} : vector<16x512xf32> to vector<1x256xf32>
    %c12 = arith.constant 12 : index
    %c0_22 = arith.constant 0 : index
    %40 = vector.load %arg7[%c12, %c0_22] : memref<33x264xf32, #tpu.memory_space<vmem>>, vector<1x256xf32>
    tpu.vector_store %arg7[%c12, %c0_22], %39 {strides = array<i32>} : memref<33x264xf32, #tpu.memory_space<vmem>>, vector<1x256xf32>,
    %41 = vector.extract_strided_slice %12 {offsets = [6, 256], sizes = [1, 256], strides = [1, 1]} : vector<16x512xf32> to vector<1x256xf32>
    %c13 = arith.constant 13 : index
    %c0_23 = arith.constant 0 : index
    %42 = vector.load %arg7[%c13, %c0_23] : memref<33x264xf32, #tpu.memory_space<vmem>>, vector<1x256xf32>
    tpu.vector_store %arg7[%c13, %c0_23], %41 {strides = array<i32>} : memref<33x264xf32, #tpu.memory_space<vmem>>, vector<1x256xf32>,
    %43 = vector.extract_strided_slice %12 {offsets = [7, 0], sizes = [1, 256], strides = [1, 1]} : vector<16x512xf32> to vector<1x256xf32>
    %c14 = arith.constant 14 : index
    %c0_24 = arith.constant 0 : index
    %44 = vector.load %arg7[%c14, %c0_24] : memref<33x264xf32, #tpu.memory_space<vmem>>, vector<1x256xf32>
    tpu.vector_store %arg7[%c14, %c0_24], %43 {strides = array<i32>} : memref<33x264xf32, #tpu.memory_space<vmem>>, vector<1x256xf32>,
    %45 = vector.extract_strided_slice %12 {offsets = [7, 256], sizes = [1, 256], strides = [1, 1]} : vector<16x512xf32> to vector<1x256xf32>
    %c15 = arith.constant 15 : index
    %c0_25 = arith.constant 0 : index
    %46 = vector.load %arg7[%c15, %c0_25] : memref<33x264xf32, #tpu.memory_space<vmem>>, vector<1x256xf32>
    tpu.vector_store %arg7[%c15, %c0_25], %45 {strides = array<i32>} : memref<33x264xf32, #tpu.memory_space<vmem>>, vector<1x256xf32>,
    %47 = vector.extract_strided_slice %12 {offsets = [8, 0], sizes = [1, 256], strides = [1, 1]} : vector<16x512xf32> to vector<1x256xf32>
    %c16 = arith.constant 16 : index
    %c0_26 = arith.constant 0 : index
    %48 = vector.load %arg7[%c16, %c0_26] : memref<33x264xf32, #tpu.memory_space<vmem>>, vector<1x256xf32>
    tpu.vector_store %arg7[%c16, %c0_26], %47 {strides = array<i32>} : memref<33x264xf32, #tpu.memory_space<vmem>>, vector<1x256xf32>,
    %49 = vector.extract_strided_slice %12 {offsets = [8, 256], sizes = [1, 256], strides = [1, 1]} : vector<16x512xf32> to vector<1x256xf32>
    %c17 = arith.constant 17 : index
    %c0_27 = arith.constant 0 : index
    %50 = vector.load %arg7[%c17, %c0_27] : memref<33x264xf32, #tpu.memory_space<vmem>>, vector<1x256xf32>
    tpu.vector_store %arg7[%c17, %c0_27], %49 {strides = array<i32>} : memref<33x264xf32, #tpu.memory_space<vmem>>, vector<1x256xf32>,
    %51 = vector.extract_strided_slice %12 {offsets = [9, 0], sizes = [1, 256], strides = [1, 1]} : vector<16x512xf32> to vector<1x256xf32>
    %c18 = arith.constant 18 : index
    %c0_28 = arith.constant 0 : index
    %52 = vector.load %arg7[%c18, %c0_28] : memref<33x264xf32, #tpu.memory_space<vmem>>, vector<1x256xf32>
    tpu.vector_store %arg7[%c18, %c0_28], %51 {strides = array<i32>} : memref<33x264xf32, #tpu.memory_space<vmem>>, vector<1x256xf32>,
    %53 = vector.extract_strided_slice %12 {offsets = [9, 256], sizes = [1, 256], strides = [1, 1]} : vector<16x512xf32> to vector<1x256xf32>
    %c19 = arith.constant 19 : index
    %c0_29 = arith.constant 0 : index
    %54 = vector.load %arg7[%c19, %c0_29] : memref<33x264xf32, #tpu.memory_space<vmem>>, vector<1x256xf32>
    tpu.vector_store %arg7[%c19, %c0_29], %53 {strides = array<i32>} : memref<33x264xf32, #tpu.memory_space<vmem>>, vector<1x256xf32>,
    %55 = vector.extract_strided_slice %12 {offsets = [10, 0], sizes = [1, 256], strides = [1, 1]} : vector<16x512xf32> to vector<1x256xf32>
    %c20 = arith.constant 20 : index
    %c0_30 = arith.constant 0 : index
    %56 = vector.load %arg7[%c20, %c0_30] : memref<33x264xf32, #tpu.memory_space<vmem>>, vector<1x256xf32>
    tpu.vector_store %arg7[%c20, %c0_30], %55 {strides = array<i32>} : memref<33x264xf32, #tpu.memory_space<vmem>>, vector<1x256xf32>,
    %57 = vector.extract_strided_slice %12 {offsets = [10, 256], sizes = [1, 256], strides = [1, 1]} : vector<16x512xf32> to vector<1x256xf32>
    %c21 = arith.constant 21 : index
    %c0_31 = arith.constant 0 : index
    %58 = vector.load %arg7[%c21, %c0_31] : memref<33x264xf32, #tpu.memory_space<vmem>>, vector<1x256xf32>
    tpu.vector_store %arg7[%c21, %c0_31], %57 {strides = array<i32>} : memref<33x264xf32, #tpu.memory_space<vmem>>, vector<1x256xf32>,
    %59 = vector.extract_strided_slice %12 {offsets = [11, 0], sizes = [1, 256], strides = [1, 1]} : vector<16x512xf32> to vector<1x256xf32>
    %c22 = arith.constant 22 : index
    %c0_32 = arith.constant 0 : index
    %60 = vector.load %arg7[%c22, %c0_32] : memref<33x264xf32, #tpu.memory_space<vmem>>, vector<1x256xf32>
    tpu.vector_store %arg7[%c22, %c0_32], %59 {strides = array<i32>} : memref<33x264xf32, #tpu.memory_space<vmem>>, vector<1x256xf32>,
    %61 = vector.extract_strided_slice %12 {offsets = [11, 256], sizes = [1, 256], strides = [1, 1]} : vector<16x512xf32> to vector<1x256xf32>
    %c23 = arith.constant 23 : index
    %c0_33 = arith.constant 0 : index
    %62 = vector.load %arg7[%c23, %c0_33] : memref<33x264xf32, #tpu.memory_space<vmem>>, vector<1x256xf32>
    tpu.vector_store %arg7[%c23, %c0_33], %61 {strides = array<i32>} : memref<33x264xf32, #tpu.memory_space<vmem>>, vector<1x256xf32>,
    %63 = vector.extract_strided_slice %12 {offsets = [12, 0], sizes = [1, 256], strides = [1, 1]} : vector<16x512xf32> to vector<1x256xf32>
    %c24 = arith.constant 24 : index
    %c0_34 = arith.constant 0 : index
    %64 = vector.load %arg7[%c24, %c0_34] : memref<33x264xf32, #tpu.memory_space<vmem>>, vector<1x256xf32>
    tpu.vector_store %arg7[%c24, %c0_34], %63 {strides = array<i32>} : memref<33x264xf32, #tpu.memory_space<vmem>>, vector<1x256xf32>,
    %65 = vector.extract_strided_slice %12 {offsets = [12, 256], sizes = [1, 256], strides = [1, 1]} : vector<16x512xf32> to vector<1x256xf32>
    %c25 = arith.constant 25 : index
    %c0_35 = arith.constant 0 : index
    %66 = vector.load %arg7[%c25, %c0_35] : memref<33x264xf32, #tpu.memory_space<vmem>>, vector<1x256xf32>
    tpu.vector_store %arg7[%c25, %c0_35], %65 {strides = array<i32>} : memref<33x264xf32, #tpu.memory_space<vmem>>, vector<1x256xf32>,
    %67 = vector.extract_strided_slice %12 {offsets = [13, 0], sizes = [1, 256], strides = [1, 1]} : vector<16x512xf32> to vector<1x256xf32>
    %c26 = arith.constant 26 : index
    %c0_36 = arith.constant 0 : index
    %68 = vector.load %arg7[%c26, %c0_36] : memref<33x264xf32, #tpu.memory_space<vmem>>, vector<1x256xf32>
    tpu.vector_store %arg7[%c26, %c0_36], %67 {strides = array<i32>} : memref<33x264xf32, #tpu.memory_space<vmem>>, vector<1x256xf32>,
    %69 = vector.extract_strided_slice %12 {offsets = [13, 256], sizes = [1, 256], strides = [1, 1]} : vector<16x512xf32> to vector<1x256xf32>
    %c27 = arith.constant 27 : index
    %c0_37 = arith.constant 0 : index
    %70 = vector.load %arg7[%c27, %c0_37] : memref<33x264xf32, #tpu.memory_space<vmem>>, vector<1x256xf32>
    tpu.vector_store %arg7[%c27, %c0_37], %69 {strides = array<i32>} : memref<33x264xf32, #tpu.memory_space<vmem>>, vector<1x256xf32>,
    %71 = vector.extract_strided_slice %12 {offsets = [14, 0], sizes = [1, 256], strides = [1, 1]} : vector<16x512xf32> to vector<1x256xf32>
    %c28 = arith.constant 28 : index
    %c0_38 = arith.constant 0 : index
    %72 = vector.load %arg7[%c28, %c0_38] : memref<33x264xf32, #tpu.memory_space<vmem>>, vector<1x256xf32>
    tpu.vector_store %arg7[%c28, %c0_38], %71 {strides = array<i32>} : memref<33x264xf32, #tpu.memory_space<vmem>>, vector<1x256xf32>,
    %73 = vector.extract_strided_slice %12 {offsets = [14, 256], sizes = [1, 256], strides = [1, 1]} : vector<16x512xf32> to vector<1x256xf32>
    %c29 = arith.constant 29 : index
    %c0_39 = arith.constant 0 : index
    %74 = vector.load %arg7[%c29, %c0_39] : memref<33x264xf32, #tpu.memory_space<vmem>>, vector<1x256xf32>
    tpu.vector_store %arg7[%c29, %c0_39], %73 {strides = array<i32>} : memref<33x264xf32, #tpu.memory_space<vmem>>, vector<1x256xf32>,
    %75 = vector.extract_strided_slice %12 {offsets = [15, 0], sizes = [1, 256], strides = [1, 1]} : vector<16x512xf32> to vector<1x256xf32>
    %c30 = arith.constant 30 : index
    %c0_40 = arith.constant 0 : index
    %76 = vector.load %arg7[%c30, %c0_40] : memref<33x264xf32, #tpu.memory_space<vmem>>, vector<1x256xf32>
    tpu.vector_store %arg7[%c30, %c0_40], %75 {strides = array<i32>} : memref<33x264xf32, #tpu.memory_space<vmem>>, vector<1x256xf32>,
    %77 = vector.extract_strided_slice %12 {offsets = [15, 256], sizes = [1, 256], strides = [1, 1]} : vector<16x512xf32> to vector<1x256xf32>
    %c31 = arith.constant 31 : index
    %c0_41 = arith.constant 0 : index
    %78 = vector.load %arg7[%c31, %c0_41] : memref<33x264xf32, #tpu.memory_space<vmem>>, vector<1x256xf32>
    tpu.vector_store %arg7[%c31, %c0_41], %77 {strides = array<i32>} : memref<33x264xf32, #tpu.memory_space<vmem>>, vector<1x256xf32>,
    %c0_42 = arith.constant 0 : index
    %c0_43 = arith.constant 0 : index
    %79 = vector.load %arg7[%c0_42, %c0_43] : memref<33x264xf32, #tpu.memory_space<vmem>>, vector<33x264xf32>
    %80 = vector.extract_strided_slice %79 {offsets = [0, 0], sizes = [32, 256], strides = [1, 1]} : vector<33x264xf32> to vector<32x256xf32>
    %81 = vector.extract_strided_slice %79 {offsets = [0, 8], sizes = [32, 256], strides = [1, 1]} : vector<33x264xf32> to vector<32x256xf32>
    %82 = vector.extract_strided_slice %79 {offsets = [1, 0], sizes = [32, 256], strides = [1, 1]} : vector<33x264xf32> to vector<32x256xf32>
    %83 = vector.extract_strided_slice %79 {offsets = [1, 8], sizes = [32, 256], strides = [1, 1]} : vector<33x264xf32> to vector<32x256xf32>
    %84 = tpu.concatenate %80, %81, %82, %83 in 1 : vector<32x256xf32>, vector<32x256xf32>, vector<32x256xf32>, vector<32x256xf32> -> vector<32x1024xf32>
    %85 = arith.truncf %84 : vector<32x1024xf32> to vector<32x1024xbf16>
    %c0_44 = arith.constant 0 : index
    %c0_45 = arith.constant 0 : index
    %86 = vector.load %arg4[%c0_44, %c0_45] : memref<1024x1024xbf16, #tpu.memory_space<vmem>>, vector<1024x1024xbf16>
    %cst_46 = arith.constant dense<0.000000e+00> : vector<32x1024xf32>
    %87 = tpu.matmul %85, %86, %cst_46 {dimension_numbers = #tpu.dot_dimension_numbers<[1], [0], [0], [1], [0, 0, 1, 1], [], []>} : vector<32x1024xbf16>, vector<1024x1024xbf16>, vector<32x1024xf32> -> vector<32x1024xf32>
    %c0_47 = arith.constant 0 : index
    %c0_48 = arith.constant 0 : index
    %88 = vector.load %arg5[%c0_47, %c0_48] : memref<1x1024xf32, #tpu.memory_space<vmem>>, vector<1x1024xf32>
    %89 = vector.broadcast %88 : vector<1x1024xf32> to vector<32x1024xf32>
    %90 = arith.addf %87, %89 : vector<32x1024xf32>
    %c0_49 = arith.constant 0 : index
    %c0_50 = arith.constant 0 : index
    %c0_51 = arith.constant 0 : index
    %91 = vector.load %arg6[%c0_49, %c0_50, %c0_51] : memref<1x32x1024xf32, #tpu.memory_space<vmem>>, vector<1x32x1024xf32>
    %92 = vector.shape_cast %91 : vector<1x32x1024xf32> to vector<32x1024xf32>
    %93 = vector.shape_cast %90 : vector<32x1024xf32> to vector<1x32x1024xf32>
    tpu.vector_store %arg6[%c0_49, %c0_50, %c0_51], %93 {strides = array<i32>} : memref<1x32x1024xf32, #tpu.memory_space<vmem>>, vector<1x32x1024xf32>,
    return
  }
  func.func @transform_0(%arg0: i32) -> (i32, i32, i32) {
    %c0_i32 = arith.constant 0 : i32
    %c0_i32_0 = arith.constant 0 : i32
    %c0_i32_1 = arith.constant 0 : i32
    return %arg0, %c0_i32, %c0_i32_0 : i32, i32, i32
  }
  func.func @transform_1(%arg0: i32) -> (i32, i32) {
    %c0_i32 = arith.constant 0 : i32
    %c0_i32_0 = arith.constant 0 : i32
    %c0_i32_1 = arith.constant 0 : i32
    return %c0_i32, %c0_i32_0 : i32, i32
  }
  func.func @transform_2(%arg0: i32) -> (i32, i32) {
    %c0_i32 = arith.constant 0 : i32
    %c0_i32_0 = arith.constant 0 : i32
    %c0_i32_1 = arith.constant 0 : i32
    return %c0_i32, %c0_i32_0 : i32, i32
  }
  func.func @transform_3(%arg0: i32) -> (i32, i32) {
    %c0_i32 = arith.constant 0 : i32
    %c0_i32_0 = arith.constant 0 : i32
    %c0_i32_1 = arith.constant 0 : i32
    return %c0_i32, %c0_i32_0 : i32, i32
  }
  func.func @transform_4(%arg0: i32) -> (i32, i32) {
    %c0_i32 = arith.constant 0 : i32
    %c0_i32_0 = arith.constant 0 : i32
    %c0_i32_1 = arith.constant 0 : i32
    return %c0_i32, %c0_i32_0 : i32, i32
  }
  func.func @transform_5(%arg0: i32) -> (i32, i32, i32) {
    %c0_i32 = arith.constant 0 : i32
    %c0_i32_0 = arith.constant 0 : i32
    %c0_i32_1 = arith.constant 0 : i32
    return %arg0, %c0_i32, %c0_i32_0 : i32, i32, i32
  }
}

</mosaic_0001>

<llo_original>
// kernel: tile.18
$region0: #{tile.18}
  #allocation0 [shape = 's32[1]{0}', space=sflag, size = 0x4, scoped, tag = 'scoped memory for tile.18']
  %s0 = inlined_call_operand.vmem [shape: f32[8], index: 0, kind: input, shape index: {}]
  %s1 = inlined_call_operand.vmem [shape: f32[128,8], index: 1, kind: output, shape index: {}]
  // Predicated region
  $region2: #{tile.18} parent=0 // pred_check
    _
  $region3: #{tile.18} parent=0 // pred_check_branch
    %3 = sbr.rel (0) target = $region5
  $region4: #{tile.18} parent=0 // pred_region
    _
  $region5: #{tile.18} parent=0 // pred_fallthru
    _
  %v4 = vld [vmem:[%s0] ss:$0 sm:$0xff]
  %5 = vst [vmem:[%s1] sm:$0xff] %v4
  %s6 = scalar_lea.vmem %s1, 8
  %7 = vst [vmem:[%s6] sm:$0xff] %v4
  %s8 = scalar_lea.vmem %s1, 16
  %9 = vst [vmem:[%s8] sm:$0xff] %v4
  %s10 = scalar_lea.vmem %s1, 24
  %11 = vst [vmem:[%s10] sm:$0xff] %v4
  %s12 = scalar_lea.vmem %s1, 32
  %13 = vst [vmem:[%s12] sm:$0xff] %v4
  %s14 = scalar_lea.vmem %s1, 40
  %15 = vst [vmem:[%s14] sm:$0xff] %v4
  %s16 = scalar_lea.vmem %s1, 48
  %17 = vst [vmem:[%s16] sm:$0xff] %v4
  %s18 = scalar_lea.vmem %s1, 56
  %19 = vst [vmem:[%s18] sm:$0xff] %v4
  %s20 = scalar_lea.vmem %s1, 64
  %21 = vst [vmem:[%s20] sm:$0xff] %v4
  %s22 = scalar_lea.vmem %s1, 72
  %23 = vst [vmem:[%s22] sm:$0xff] %v4
  %s24 = scalar_lea.vmem %s1, 80
  %25 = vst [vmem:[%s24] sm:$0xff] %v4
  %s26 = scalar_lea.vmem %s1, 88
  %27 = vst [vmem:[%s26] sm:$0xff] %v4
  %s28 = scalar_lea.vmem %s1, 96
  %29 = vst [vmem:[%s28] sm:$0xff] %v4
  %s30 = scalar_lea.vmem %s1, 104
  %31 = vst [vmem:[%s30] sm:$0xff] %v4
  %s32 = scalar_lea.vmem %s1, 112
  %33 = vst [vmem:[%s32] sm:$0xff] %v4
  %s34 = scalar_lea.vmem %s1, 120
  %35 = vst [vmem:[%s34] sm:$0xff] %v4

// kernel: tile.19
$region0: #{tile.19}
  %s0 = inlined_call_operand.vmem [shape: f32[128,8], index: 0, kind: input, shape index: {}]
  %s1 = inlined_call_operand.vmem [shape: f32[1,1024], index: 1, kind: output, shape index: {}]
  $region1: #{tile.19} parent=0
    #allocation0 [shape = 'u8[32768]{0}', space=vmem, size = 0x8000, scoped, tag = 'scoped mem for output reshape']
    %s2 = smov 3
    %v3 = vld [vmem:[%s0] ss:$16 sm:%s2]
    %s4 = smov 12
    %v5 = vld [vmem:[%s0] ss:$16 sm:%s4]
    %vm6 = vcmask 1043458
    %v7 = vsel %vm6, %v5, %v3
    %s8 = smov 48
    %v9 = vld [vmem:[%s0] ss:$16 sm:%s8]
    %vm10 = vcmask 1045508
    %v11 = vsel %vm10, %v9, %v7
    %s12 = smov 192
    %v13 = vld [vmem:[%s0] ss:$16 sm:%s12]
    %vm14 = vcmask 1047558
    %v15 = vsel %vm14, %v13, %v11
    %vm16 = vcmask 64512
    %17 = vst.msk [vmem:[#allocation0] ss:$8 sm:$0xf] %vm16, %v15
    %18 = vst.msk [vmem:[#allocation0] ss:$8 sm:$0xf0] %vm16, %v15
    %s19 = scalar_lea.vmem %s0, 15
    %s20 = smov 3
    %v21 = vld [vmem:[%s19] ss:$16 sm:%s20]
    %s22 = scalar_lea.vmem %s0, 15
    %s23 = smov 12
    %v24 = vld [vmem:[%s22] ss:$16 sm:%s23]
    %vm25 = vcmask 1043458
    %v26 = vsel %vm25, %v24, %v21
    %s27 = scalar_lea.vmem %s0, 15
    %s28 = smov 48
    %v29 = vld [vmem:[%s27] ss:$16 sm:%s28]
    %vm30 = vcmask 1045508
    %v31 = vsel %vm30, %v29, %v26
    %s32 = scalar_lea.vmem %s0, 15
    %s33 = smov 192
    %v34 = vld [vmem:[%s32] ss:$16 sm:%s33]
    %vm35 = vcmask 1047558
    %v36 = vsel %vm35, %v34, %v31
    %37 = vrot.lane.b32.xlu0 %v36, 120
    %v38 = vpop.permute.xlu0 %37
    %vm39 = vcmask 1048512
    %40 = vst.msk [vmem:[#allocation0] ss:$8 sm:$0xf] %vm39, %v38
    %41 = vst.msk [vmem:[#allocation0] ss:$8 sm:$0xf0] %vm39, %v38
    %s42 = scalar_lea.vmem %s0, 14
    %s43 = smov 3
    %v44 = vld [vmem:[%s42] ss:$16 sm:%s43]
    %s45 = scalar_lea.vmem %s0, 14
    %s46 = smov 12
    %v47 = vld [vmem:[%s45] ss:$16 sm:%s46]
    %vm48 = vcmask 1043458
    %v49 = vsel %vm48, %v47, %v44
    %s50 = scalar_lea.vmem %s0, 14
    %s51 = smov 48
    %v52 = vld [vmem:[%s50] ss:$16 sm:%s51]
    %vm53 = vcmask 1045508
    %v54 = vsel %vm53, %v52, %v49
    %s55 = scalar_lea.vmem %s0, 14
    %s56 = smov 192
    %v57 = vld [vmem:[%s55] ss:$16 sm:%s56]
    %vm58 = vcmask 1047558
    %v59 = vsel %vm58, %v57, %v54
    %60 = vrot.lane.b32.xlu0 %v59, 112
    %v61 = vpop.permute.xlu0 %60
    %vm62 = vcmask 982912
    %63 = vst.msk [vmem:[#allocation0] ss:$8 sm:$0xf] %vm62, %v61
    %64 = vst.msk [vmem:[#allocation0] ss:$8 sm:$0xf0] %vm62, %v61
    %s65 = scalar_lea.vmem %s0, 13
    %s66 = smov 3
    %v67 = vld [vmem:[%s65] ss:$16 sm:%s66]
    %s68 = scalar_lea.vmem %s0, 13
    %s69 = smov 12
    %v70 = vld [vmem:[%s68] ss:$16 sm:%s69]
    %vm71 = vcmask 1043458
    %v72 = vsel %vm71, %v70, %v67
    %s73 = scalar_lea.vmem %s0, 13
    %s74 = smov 48
    %v75 = vld [vmem:[%s73] ss:$16 sm:%s74]
    %vm76 = vcmask 1045508
    %v77 = vsel %vm76, %v75, %v72
    %s78 = scalar_lea.vmem %s0, 13
    %s79 = smov 192
    %v80 = vld [vmem:[%s78] ss:$16 sm:%s79]
    %vm81 = vcmask 1047558
    %v82 = vsel %vm81, %v80, %v77
    %83 = vrot.lane.b32.xlu0 %v82, 104
    %v84 = vpop.permute.xlu0 %83
    %vm85 = vcmask 917312
    %86 = vst.msk [vmem:[#allocation0] ss:$8 sm:$0xf] %vm85, %v84
    %87 = vst.msk [vmem:[#allocation0] ss:$8 sm:$0xf0] %vm85, %v84
    %s88 = scalar_lea.vmem %s0, 12
    %s89 = smov 3
    %v90 = vld [vmem:[%s88] ss:$16 sm:%s89]
    %s91 = scalar_lea.vmem %s0, 12
    %s92 = smov 12
    %v93 = vld [vmem:[%s91] ss:$16 sm:%s92]
    %vm94 = vcmask 1043458
    %v95 = vsel %vm94, %v93, %v90
    %s96 = scalar_lea.vmem %s0, 12
    %s97 = smov 48
    %v98 = vld [vmem:[%s96] ss:$16 sm:%s97]
    %vm99 = vcmask 1045508
    %v100 = vsel %vm99, %v98, %v95
    %s101 = scalar_lea.vmem %s0, 12
    %s102 = smov 192
    %v103 = vld [vmem:[%s101] ss:$16 sm:%s102]
    %vm104 = vcmask 1047558
    %v105 = vsel %vm104, %v103, %v100
    %106 = vrot.lane.b32.xlu0 %v105, 96
    %v107 = vpop.permute.xlu0 %106
    %vm108 = vcmask 851712
    %109 = vst.msk [vmem:[#allocation0] ss:$8 sm:$0xf] %vm108, %v107
    %110 = vst.msk [vmem:[#allocation0] ss:$8 sm:$0xf0] %vm108, %v107
    %s111 = scalar_lea.vmem %s0, 11
    %s112 = smov 3
    %v113 = vld [vmem:[%s111] ss:$16 sm:%s112]
    %s114 = scalar_lea.vmem %s0, 11
    %s115 = smov 12
    %v116 = vld [vmem:[%s114] ss:$16 sm:%s115]
    %vm117 = vcmask 1043458
    %v118 = vsel %vm117, %v116, %v113
    %s119 = scalar_lea.vmem %s0, 11
    %s120 = smov 48
    %v121 = vld [vmem:[%s119] ss:$16 sm:%s120]
    %vm122 = vcmask 1045508
    %v123 = vsel %vm122, %v121, %v118
    %s124 = scalar_lea.vmem %s0, 11
    %s125 = smov 192
    %v126 = vld [vmem:[%s124] ss:$16 sm:%s125]
    %vm127 = vcmask 1047558
    %v128 = vsel %vm127, %v126, %v123
    %129 = vrot.lane.b32.xlu0 %v128, 88
    %v130 = vpop.permute.xlu0 %129
    %vm131 = vcmask 786112
    %132 = vst.msk [vmem:[#allocation0] ss:$8 sm:$0xf] %vm131, %v130
    %133 = vst.msk [vmem:[#allocation0] ss:$8 sm:$0xf0] %vm131, %v130
    %s134 = scalar_lea.vmem %s0, 10
    %s135 = smov 3
    %v136 = vld [vmem:[%s134] ss:$16 sm:%s135]
    %s137 = scalar_lea.vmem %s0, 10
    %s138 = smov 12
    %v139 = vld [vmem:[%s137] ss:$16 sm:%s138]
    %vm140 = vcmask 1043458
    %v141 = vsel %vm140, %v139, %v136
    %s142 = scalar_lea.vmem %s0, 10
    %s143 = smov 48
    %v144 = vld [vmem:[%s142] ss:$16 sm:%s143]
    %vm145 = vcmask 1045508
    %v146 = vsel %vm145, %v144, %v141
    %s147 = scalar_lea.vmem %s0, 10
    %s148 = smov 192
    %v149 = vld [vmem:[%s147] ss:$16 sm:%s148]
    %vm150 = vcmask 1047558
    %v151 = vsel %vm150, %v149, %v146
    %152 = vrot.lane.b32.xlu0 %v151, 80
    %v153 = vpop.permute.xlu0 %152
    %vm154 = vcmask 720512
    %155 = vst.msk [vmem:[#allocation0] ss:$8 sm:$0xf] %vm154, %v153
    %156 = vst.msk [vmem:[#allocation0] ss:$8 sm:$0xf0] %vm154, %v153
    %s157 = scalar_lea.vmem %s0, 9
    %s158 = smov 3
    %v159 = vld [vmem:[%s157] ss:$16 sm:%s158]
    %s160 = scalar_lea.vmem %s0, 9
    %s161 = smov 12
    %v162 = vld [vmem:[%s160] ss:$16 sm:%s161]
    %vm163 = vcmask 1043458
    %v164 = vsel %vm163, %v162, %v159
    %s165 = scalar_lea.vmem %s0, 9
    %s166 = smov 48
    %v167 = vld [vmem:[%s165] ss:$16 sm:%s166]
    %vm168 = vcmask 1045508
    %v169 = vsel %vm168, %v167, %v164
    %s170 = scalar_lea.vmem %s0, 9
    %s171 = smov 192
    %v172 = vld [vmem:[%s170] ss:$16 sm:%s171]
    %vm173 = vcmask 1047558
    %v174 = vsel %vm173, %v172, %v169
    %175 = vrot.lane.b32.xlu0 %v174, 72
    %v176 = vpop.permute.xlu0 %175
    %vm177 = vcmask 654912
    %178 = vst.msk [vmem:[#allocation0] ss:$8 sm:$0xf] %vm177, %v176
    %179 = vst.msk [vmem:[#allocation0] ss:$8 sm:$0xf0] %vm177, %v176
    %s180 = scalar_lea.vmem %s0, 8
    %s181 = smov 3
    %v182 = vld [vmem:[%s180] ss:$16 sm:%s181]
    %s183 = scalar_lea.vmem %s0, 8
    %s184 = smov 12
    %v185 = vld [vmem:[%s183] ss:$16 sm:%s184]
    %vm186 = vcmask 1043458
    %v187 = vsel %vm186, %v185, %v182
    %s188 = scalar_lea.vmem %s0, 8
    %s189 = smov 48
    %v190 = vld [vmem:[%s188] ss:$16 sm:%s189]
    %vm191 = vcmask 1045508
    %v192 = vsel %vm191, %v190, %v187
    %s193 = scalar_lea.vmem %s0, 8
    %s194 = smov 192
    %v195 = vld [vmem:[%s193] ss:$16 sm:%s194]
    %vm196 = vcmask 1047558
    %v197 = vsel %vm196, %v195, %v192
    %198 = vrot.lane.b32.xlu0 %v197, 64
    %v199 = vpop.permute.xlu0 %198
    %vm200 = vcmask 589312
    %201 = vst.msk [vmem:[#allocation0] ss:$8 sm:$0xf] %vm200, %v199
    %202 = vst.msk [vmem:[#allocation0] ss:$8 sm:$0xf0] %vm200, %v199
    %s203 = scalar_lea.vmem %s0, 7
    %s204 = smov 3
    %v205 = vld [vmem:[%s203] ss:$16 sm:%s204]
    %s206 = scalar_lea.vmem %s0, 7
    %s207 = smov 12
    %v208 = vld [vmem:[%s206] ss:$16 sm:%s207]
    %vm209 = vcmask 1043458
    %v210 = vsel %vm209, %v208, %v205
    %s211 = scalar_lea.vmem %s0, 7
    %s212 = smov 48
    %v213 = vld [vmem:[%s211] ss:$16 sm:%s212]
    %vm214 = vcmask 1045508
    %v215 = vsel %vm214, %v213, %v210
    %s216 = scalar_lea.vmem %s0, 7
    %s217 = smov 192
    %v218 = vld [vmem:[%s216] ss:$16 sm:%s217]
    %vm219 = vcmask 1047558
    %v220 = vsel %vm219, %v218, %v215
    %221 = vrot.lane.b32.xlu0 %v220, 56
    %v222 = vpop.permute.xlu0 %221
    %vm223 = vcmask 523712
    %224 = vst.msk [vmem:[#allocation0] ss:$8 sm:$0xf] %vm223, %v222
    %225 = vst.msk [vmem:[#allocation0] ss:$8 sm:$0xf0] %vm223, %v222
    %s226 = scalar_lea.vmem %s0, 6
    %s227 = smov 3
    %v228 = vld [vmem:[%s226] ss:$16 sm:%s227]
    %s229 = scalar_lea.vmem %s0, 6
    %s230 = smov 12
    %v231 = vld [vmem:[%s229] ss:$16 sm:%s230]
    %vm232 = vcmask 1043458
    %v233 = vsel %vm232, %v231, %v228
    %s234 = scalar_lea.vmem %s0, 6
    %s235 = smov 48
    %v236 = vld [vmem:[%s234] ss:$16 sm:%s235]
    %vm237 = vcmask 1045508
    %v238 = vsel %vm237, %v236, %v233
    %s239 = scalar_lea.vmem %s0, 6
    %s240 = smov 192
    %v241 = vld [vmem:[%s239] ss:$16 sm:%s240]
    %vm242 = vcmask 1047558
    %v243 = vsel %vm242, %v241, %v238
    %244 = vrot.lane.b32.xlu0 %v243, 48
    %v245 = vpop.permute.xlu0 %244
    %vm246 = vcmask 458112
    %247 = vst.msk [vmem:[#allocation0] ss:$8 sm:$0xf] %vm246, %v245
    %248 = vst.msk [vmem:[#allocation0] ss:$8 sm:$0xf0] %vm246, %v245
    %s249 = scalar_lea.vmem %s0, 5
    %s250 = smov 3
    %v251 = vld [vmem:[%s249] ss:$16 sm:%s250]
    %s252 = scalar_lea.vmem %s0, 5
    %s253 = smov 12
    %v254 = vld [vmem:[%s252] ss:$16 sm:%s253]
    %vm255 = vcmask 1043458
    %v256 = vsel %vm255, %v254, %v251
    %s257 = scalar_lea.vmem %s0, 5
    %s258 = smov 48
    %v259 = vld [vmem:[%s257] ss:$16 sm:%s258]
    %vm260 = vcmask 1045508
    %v261 = vsel %vm260, %v259, %v256
    %s262 = scalar_lea.vmem %s0, 5
    %s263 = smov 192
    %v264 = vld [vmem:[%s262] ss:$16 sm:%s263]
    %vm265 = vcmask 1047558
    %v266 = vsel %vm265, %v264, %v261
    %267 = vrot.lane.b32.xlu0 %v266, 40
    %v268 = vpop.permute.xlu0 %267
    %vm269 = vcmask 392512
    %270 = vst.msk [vmem:[#allocation0] ss:$8 sm:$0xf] %vm269, %v268
    %271 = vst.msk [vmem:[#allocation0] ss:$8 sm:$0xf0] %vm269, %v268
    %s272 = scalar_lea.vmem %s0, 4
    %s273 = smov 3
    %v274 = vld [vmem:[%s272] ss:$16 sm:%s273]
    %s275 = scalar_lea.vmem %s0, 4
    %s276 = smov 12
    %v277 = vld [vmem:[%s275] ss:$16 sm:%s276]
    %vm278 = vcmask 1043458
    %v279 = vsel %vm278, %v277, %v274
    %s280 = scalar_lea.vmem %s0, 4
    %s281 = smov 48
    %v282 = vld [vmem:[%s280] ss:$16 sm:%s281]
    %vm283 = vcmask 1045508
    %v284 = vsel %vm283, %v282, %v279
    %s285 = scalar_lea.vmem %s0, 4
    %s286 = smov 192
    %v287 = vld [vmem:[%s285] ss:$16 sm:%s286]
    %vm288 = vcmask 1047558
    %v289 = vsel %vm288, %v287, %v284
    %290 = vrot.lane.b32.xlu0 %v289, 32
    %v291 = vpop.permute.xlu0 %290
    %vm292 = vcmask 326912
    %293 = vst.msk [vmem:[#allocation0] ss:$8 sm:$0xf] %vm292, %v291
    %294 = vst.msk [vmem:[#allocation0] ss:$8 sm:$0xf0] %vm292, %v291
    %s295 = scalar_lea.vmem %s0, 3
    %s296 = smov 3
    %v297 = vld [vmem:[%s295] ss:$16 sm:%s296]
    %s298 = scalar_lea.vmem %s0, 3
    %s299 = smov 12
    %v300 = vld [vmem:[%s298] ss:$16 sm:%s299]
    %vm301 = vcmask 1043458
    %v302 = vsel %vm301, %v300, %v297
    %s303 = scalar_lea.vmem %s0, 3
    %s304 = smov 48
    %v305 = vld [vmem:[%s303] ss:$16 sm:%s304]
    %vm306 = vcmask 1045508
    %v307 = vsel %vm306, %v305, %v302
    %s308 = scalar_lea.vmem %s0, 3
    %s309 = smov 192
    %v310 = vld [vmem:[%s308] ss:$16 sm:%s309]
    %vm311 = vcmask 1047558
    %v312 = vsel %vm311, %v310, %v307
    %313 = vrot.lane.b32.xlu0 %v312, 24
    %v314 = vpop.permute.xlu0 %313
    %vm315 = vcmask 261312
    %316 = vst.msk [vmem:[#allocation0] ss:$8 sm:$0xf] %vm315, %v314
    %317 = vst.msk [vmem:[#allocation0] ss:$8 sm:$0xf0] %vm315, %v314
    %s318 = scalar_lea.vmem %s0, 2
    %s319 = smov 3
    %v320 = vld [vmem:[%s318] ss:$16 sm:%s319]
    %s321 = scalar_lea.vmem %s0, 2
    %s322 = smov 12
    %v323 = vld [vmem:[%s321] ss:$16 sm:%s322]
    %vm324 = vcmask 1043458
    %v325 = vsel %vm324, %v323, %v320
    %s326 = scalar_lea.vmem %s0, 2
    %s327 = smov 48
    %v328 = vld [vmem:[%s326] ss:$16 sm:%s327]
    %vm329 = vcmask 1045508
    %v330 = vsel %vm329, %v328, %v325
    %s331 = scalar_lea.vmem %s0, 2
    %s332 = smov 192
    %v333 = vld [vmem:[%s331] ss:$16 sm:%s332]
    %vm334 = vcmask 1047558
    %v335 = vsel %vm334, %v333, %v330
    %336 = vrot.lane.b32.xlu0 %v335, 16
    %v337 = vpop.permute.xlu0 %336
    %vm338 = vcmask 195712
    %339 = vst.msk [vmem:[#allocation0] ss:$8 sm:$0xf] %vm338, %v337
    %340 = vst.msk [vmem:[#allocation0] ss:$8 sm:$0xf0] %vm338, %v337
    %s341 = scalar_lea.vmem %s0, 1
    %s342 = smov 3
    %v343 = vld [vmem:[%s341] ss:$16 sm:%s342]
    %s344 = scalar_lea.vmem %s0, 1
    %s345 = smov 12
    %v346 = vld [vmem:[%s344] ss:$16 sm:%s345]
    %vm347 = vcmask 1043458
    %v348 = vsel %vm347, %v346, %v343
    %s349 = scalar_lea.vmem %s0, 1
    %s350 = smov 48
    %v351 = vld [vmem:[%s349] ss:$16 sm:%s350]
    %vm352 = vcmask 1045508
    %v353 = vsel %vm352, %v351, %v348
    %s354 = scalar_lea.vmem %s0, 1
    %s355 = smov 192
    %v356 = vld [vmem:[%s354] ss:$16 sm:%s355]
    %vm357 = vcmask 1047558
    %v358 = vsel %vm357, %v356, %v353
    %359 = vrot.lane.b32.xlu0 %v358, 8
    %v360 = vpop.permute.xlu0 %359
    %vm361 = vcmask 130112
    %362 = vst.msk [vmem:[#allocation0] ss:$8 sm:$0xf] %vm361, %v360
    %363 = vst.msk [vmem:[#allocation0] ss:$8 sm:$0xf0] %vm361, %v360
    %s365 = ssub.s32 2, 1
    %v366 = vld [vmem:[#allocation0] sm:%s365]
    %s368 = ssub.s32 2, 1
    %369 = vst [vmem:[%s1] sm:%s368] %v366
    %s370 = scalar_lea.vmem [#allocation0], 8
    %v371 = vld [vmem:[%s370] sm:%s365]
    %s373 = ssub.s32 2, 1
    %s374 = scalar_lea.vmem %s1, 1
    %375 = vst [vmem:[%s374] sm:%s373] %v371
    %s376 = scalar_lea.vmem [#allocation0], 16
    %v377 = vld [vmem:[%s376] sm:%s365]
    %s379 = ssub.s32 2, 1
    %s380 = scalar_lea.vmem %s1, 2
    %381 = vst [vmem:[%s380] sm:%s379] %v377
    %s382 = scalar_lea.vmem [#allocation0], 24
    %v383 = vld [vmem:[%s382] sm:%s365]
    %s385 = ssub.s32 2, 1
    %s386 = scalar_lea.vmem %s1, 3
    %387 = vst [vmem:[%s386] sm:%s385] %v383
    %s388 = scalar_lea.vmem [#allocation0], 32
    %v389 = vld [vmem:[%s388] sm:%s365]
    %s391 = ssub.s32 2, 1
    %s392 = scalar_lea.vmem %s1, 4
    %393 = vst [vmem:[%s392] sm:%s391] %v389
    %s394 = scalar_lea.vmem [#allocation0], 40
    %v395 = vld [vmem:[%s394] sm:%s365]
    %s397 = ssub.s32 2, 1
    %s398 = scalar_lea.vmem %s1, 5
    %399 = vst [vmem:[%s398] sm:%s397] %v395
    %s400 = scalar_lea.vmem [#allocation0], 48
    %v401 = vld [vmem:[%s400] sm:%s365]
    %s403 = ssub.s32 2, 1
    %s404 = scalar_lea.vmem %s1, 6
    %405 = vst [vmem:[%s404] sm:%s403] %v401
    %s406 = scalar_lea.vmem [#allocation0], 56
    %v407 = vld [vmem:[%s406] sm:%s365]
    %s409 = ssub.s32 2, 1
    %s410 = scalar_lea.vmem %s1, 7
    %411 = vst [vmem:[%s410] sm:%s409] %v407

// kernel: tile.13
$region0: #{tile.13}
  #allocation0 [shape = 's32[1]{0}', space=sflag, size = 0x4, scoped, tag = 'scoped memory for tile.13']
  %s0 = inlined_call_operand.vmem [shape: f32[8], index: 0, kind: input, shape index: {}]
  %s1 = inlined_call_operand.vmem [shape: f32[64,8], index: 1, kind: output, shape index: {}]
  // Predicated region
  $region2: #{tile.13} parent=0 // pred_check
    _
  $region3: #{tile.13} parent=0 // pred_check_branch
    %3 = sbr.rel (0) target = $region5
  $region4: #{tile.13} parent=0 // pred_region
    _
  $region5: #{tile.13} parent=0 // pred_fallthru
    _
  %v4 = vld [vmem:[%s0] ss:$0 sm:$0xff]
  %5 = vst [vmem:[%s1] sm:$0xff] %v4
  %s6 = scalar_lea.vmem %s1, 8
  %7 = vst [vmem:[%s6] sm:$0xff] %v4
  %s8 = scalar_lea.vmem %s1, 16
  %9 = vst [vmem:[%s8] sm:$0xff] %v4
  %s10 = scalar_lea.vmem %s1, 24
  %11 = vst [vmem:[%s10] sm:$0xff] %v4
  %s12 = scalar_lea.vmem %s1, 32
  %13 = vst [vmem:[%s12] sm:$0xff] %v4
  %s14 = scalar_lea.vmem %s1, 40
  %15 = vst [vmem:[%s14] sm:$0xff] %v4
  %s16 = scalar_lea.vmem %s1, 48
  %17 = vst [vmem:[%s16] sm:$0xff] %v4
  %s18 = scalar_lea.vmem %s1, 56
  %19 = vst [vmem:[%s18] sm:$0xff] %v4

// kernel: tile.14
$region0: #{tile.14}
  %s0 = inlined_call_operand.vmem [shape: f32[64,8], index: 0, kind: input, shape index: {}]
  %s1 = inlined_call_operand.vmem [shape: f32[1,512], index: 1, kind: output, shape index: {}]
  $region1: #{tile.14} parent=0
    #allocation0 [shape = 'u8[16384]{0}', space=vmem, size = 0x4000, scoped, tag = 'scoped mem for output reshape']
    %s2 = smov 3
    %v3 = vld [vmem:[%s0] ss:$16 sm:%s2]
    %s4 = smov 12
    %v5 = vld [vmem:[%s0] ss:$16 sm:%s4]
    %vm6 = vcmask 1043458
    %v7 = vsel %vm6, %v5, %v3
    %vm8 = vcmask 64512
    %9 = vst.msk [vmem:[#allocation0] ss:$8 sm:$0xf] %vm8, %v7
    %s10 = scalar_lea.vmem %s0, 15
    %s11 = smov 3
    %v12 = vld [vmem:[%s10] ss:$16 sm:%s11]
    %s13 = scalar_lea.vmem %s0, 15
    %s14 = smov 12
    %v15 = vld [vmem:[%s13] ss:$16 sm:%s14]
    %vm16 = vcmask 1043458
    %v17 = vsel %vm16, %v15, %v12
    %18 = vrot.lane.b32.xlu0 %v17, 120
    %v19 = vpop.permute.xlu0 %18
    %vm20 = vcmask 1048512
    %21 = vst.msk [vmem:[#allocation0] ss:$8 sm:$0xf] %vm20, %v19
    %s22 = scalar_lea.vmem %s0, 14
    %s23 = smov 3
    %v24 = vld [vmem:[%s22] ss:$16 sm:%s23]
    %s25 = scalar_lea.vmem %s0, 14
    %s26 = smov 12
    %v27 = vld [vmem:[%s25] ss:$16 sm:%s26]
    %vm28 = vcmask 1043458
    %v29 = vsel %vm28, %v27, %v24
    %30 = vrot.lane.b32.xlu0 %v29, 112
    %v31 = vpop.permute.xlu0 %30
    %vm32 = vcmask 982912
    %33 = vst.msk [vmem:[#allocation0] ss:$8 sm:$0xf] %vm32, %v31
    %s34 = scalar_lea.vmem %s0, 13
    %s35 = smov 3
    %v36 = vld [vmem:[%s34] ss:$16 sm:%s35]
    %s37 = scalar_lea.vmem %s0, 13
    %s38 = smov 12
    %v39 = vld [vmem:[%s37] ss:$16 sm:%s38]
    %vm40 = vcmask 1043458
    %v41 = vsel %vm40, %v39, %v36
    %42 = vrot.lane.b32.xlu0 %v41, 104
    %v43 = vpop.permute.xlu0 %42
    %vm44 = vcmask 917312
    %45 = vst.msk [vmem:[#allocation0] ss:$8 sm:$0xf] %vm44, %v43
    %s46 = scalar_lea.vmem %s0, 12
    %s47 = smov 3
    %v48 = vld [vmem:[%s46] ss:$16 sm:%s47]
    %s49 = scalar_lea.vmem %s0, 12
    %s50 = smov 12
    %v51 = vld [vmem:[%s49] ss:$16 sm:%s50]
    %vm52 = vcmask 1043458
    %v53 = vsel %vm52, %v51, %v48
    %54 = vrot.lane.b32.xlu0 %v53, 96
    %v55 = vpop.permute.xlu0 %54
    %vm56 = vcmask 851712
    %57 = vst.msk [vmem:[#allocation0] ss:$8 sm:$0xf] %vm56, %v55
    %s58 = scalar_lea.vmem %s0, 11
    %s59 = smov 3
    %v60 = vld [vmem:[%s58] ss:$16 sm:%s59]
    %s61 = scalar_lea.vmem %s0, 11
    %s62 = smov 12
    %v63 = vld [vmem:[%s61] ss:$16 sm:%s62]
    %vm64 = vcmask 1043458
    %v65 = vsel %vm64, %v63, %v60
    %66 = vrot.lane.b32.xlu0 %v65, 88
    %v67 = vpop.permute.xlu0 %66
    %vm68 = vcmask 786112
    %69 = vst.msk [vmem:[#allocation0] ss:$8 sm:$0xf] %vm68, %v67
    %s70 = scalar_lea.vmem %s0, 10
    %s71 = smov 3
    %v72 = vld [vmem:[%s70] ss:$16 sm:%s71]
    %s73 = scalar_lea.vmem %s0, 10
    %s74 = smov 12
    %v75 = vld [vmem:[%s73] ss:$16 sm:%s74]
    %vm76 = vcmask 1043458
    %v77 = vsel %vm76, %v75, %v72
    %78 = vrot.lane.b32.xlu0 %v77, 80
    %v79 = vpop.permute.xlu0 %78
    %vm80 = vcmask 720512
    %81 = vst.msk [vmem:[#allocation0] ss:$8 sm:$0xf] %vm80, %v79
    %s82 = scalar_lea.vmem %s0, 9
    %s83 = smov 3
    %v84 = vld [vmem:[%s82] ss:$16 sm:%s83]
    %s85 = scalar_lea.vmem %s0, 9
    %s86 = smov 12
    %v87 = vld [vmem:[%s85] ss:$16 sm:%s86]
    %vm88 = vcmask 1043458
    %v89 = vsel %vm88, %v87, %v84
    %90 = vrot.lane.b32.xlu0 %v89, 72
    %v91 = vpop.permute.xlu0 %90
    %vm92 = vcmask 654912
    %93 = vst.msk [vmem:[#allocation0] ss:$8 sm:$0xf] %vm92, %v91
    %s94 = scalar_lea.vmem %s0, 8
    %s95 = smov 3
    %v96 = vld [vmem:[%s94] ss:$16 sm:%s95]
    %s97 = scalar_lea.vmem %s0, 8
    %s98 = smov 12
    %v99 = vld [vmem:[%s97] ss:$16 sm:%s98]
    %vm100 = vcmask 1043458
    %v101 = vsel %vm100, %v99, %v96
    %102 = vrot.lane.b32.xlu0 %v101, 64
    %v103 = vpop.permute.xlu0 %102
    %vm104 = vcmask 589312
    %105 = vst.msk [vmem:[#allocation0] ss:$8 sm:$0xf] %vm104, %v103
    %s106 = scalar_lea.vmem %s0, 7
    %s107 = smov 3
    %v108 = vld [vmem:[%s106] ss:$16 sm:%s107]
    %s109 = scalar_lea.vmem %s0, 7
    %s110 = smov 12
    %v111 = vld [vmem:[%s109] ss:$16 sm:%s110]
    %vm112 = vcmask 1043458
    %v113 = vsel %vm112, %v111, %v108
    %114 = vrot.lane.b32.xlu0 %v113, 56
    %v115 = vpop.permute.xlu0 %114
    %vm116 = vcmask 523712
    %117 = vst.msk [vmem:[#allocation0] ss:$8 sm:$0xf] %vm116, %v115
    %s118 = scalar_lea.vmem %s0, 6
    %s119 = smov 3
    %v120 = vld [vmem:[%s118] ss:$16 sm:%s119]
    %s121 = scalar_lea.vmem %s0, 6
    %s122 = smov 12
    %v123 = vld [vmem:[%s121] ss:$16 sm:%s122]
    %vm124 = vcmask 1043458
    %v125 = vsel %vm124, %v123, %v120
    %126 = vrot.lane.b32.xlu0 %v125, 48
    %v127 = vpop.permute.xlu0 %126
    %vm128 = vcmask 458112
    %129 = vst.msk [vmem:[#allocation0] ss:$8 sm:$0xf] %vm128, %v127
    %s130 = scalar_lea.vmem %s0, 5
    %s131 = smov 3
    %v132 = vld [vmem:[%s130] ss:$16 sm:%s131]
    %s133 = scalar_lea.vmem %s0, 5
    %s134 = smov 12
    %v135 = vld [vmem:[%s133] ss:$16 sm:%s134]
    %vm136 = vcmask 1043458
    %v137 = vsel %vm136, %v135, %v132
    %138 = vrot.lane.b32.xlu0 %v137, 40
    %v139 = vpop.permute.xlu0 %138
    %vm140 = vcmask 392512
    %141 = vst.msk [vmem:[#allocation0] ss:$8 sm:$0xf] %vm140, %v139
    %s142 = scalar_lea.vmem %s0, 4
    %s143 = smov 3
    %v144 = vld [vmem:[%s142] ss:$16 sm:%s143]
    %s145 = scalar_lea.vmem %s0, 4
    %s146 = smov 12
    %v147 = vld [vmem:[%s145] ss:$16 sm:%s146]
    %vm148 = vcmask 1043458
    %v149 = vsel %vm148, %v147, %v144
    %150 = vrot.lane.b32.xlu0 %v149, 32
    %v151 = vpop.permute.xlu0 %150
    %vm152 = vcmask 326912
    %153 = vst.msk [vmem:[#allocation0] ss:$8 sm:$0xf] %vm152, %v151
    %s154 = scalar_lea.vmem %s0, 3
    %s155 = smov 3
    %v156 = vld [vmem:[%s154] ss:$16 sm:%s155]
    %s157 = scalar_lea.vmem %s0, 3
    %s158 = smov 12
    %v159 = vld [vmem:[%s157] ss:$16 sm:%s158]
    %vm160 = vcmask 1043458
    %v161 = vsel %vm160, %v159, %v156
    %162 = vrot.lane.b32.xlu0 %v161, 24
    %v163 = vpop.permute.xlu0 %162
    %vm164 = vcmask 261312
    %165 = vst.msk [vmem:[#allocation0] ss:$8 sm:$0xf] %vm164, %v163
    %s166 = scalar_lea.vmem %s0, 2
    %s167 = smov 3
    %v168 = vld [vmem:[%s166] ss:$16 sm:%s167]
    %s169 = scalar_lea.vmem %s0, 2
    %s170 = smov 12
    %v171 = vld [vmem:[%s169] ss:$16 sm:%s170]
    %vm172 = vcmask 1043458
    %v173 = vsel %vm172, %v171, %v168
    %174 = vrot.lane.b32.xlu0 %v173, 16
    %v175 = vpop.permute.xlu0 %174
    %vm176 = vcmask 195712
    %177 = vst.msk [vmem:[#allocation0] ss:$8 sm:$0xf] %vm176, %v175
    %s178 = scalar_lea.vmem %s0, 1
    %s179 = smov 3
    %v180 = vld [vmem:[%s178] ss:$16 sm:%s179]
    %s181 = scalar_lea.vmem %s0, 1
    %s182 = smov 12
    %v183 = vld [vmem:[%s181] ss:$16 sm:%s182]
    %vm184 = vcmask 1043458
    %v185 = vsel %vm184, %v183, %v180
    %186 = vrot.lane.b32.xlu0 %v185, 8
    %v187 = vpop.permute.xlu0 %186
    %vm188 = vcmask 130112
    %189 = vst.msk [vmem:[#allocation0] ss:$8 sm:$0xf] %vm188, %v187
    %s191 = ssub.s32 2, 1
    %v192 = vld [vmem:[#allocation0] sm:%s191]
    %s194 = ssub.s32 2, 1
    %195 = vst [vmem:[%s1] sm:%s194] %v192
    %s196 = scalar_lea.vmem [#allocation0], 8
    %v197 = vld [vmem:[%s196] sm:%s191]
    %s199 = ssub.s32 2, 1
    %s200 = scalar_lea.vmem %s1, 1
    %201 = vst [vmem:[%s200] sm:%s199] %v197
    %s202 = scalar_lea.vmem [#allocation0], 16
    %v203 = vld [vmem:[%s202] sm:%s191]
    %s205 = ssub.s32 2, 1
    %s206 = scalar_lea.vmem %s1, 2
    %207 = vst [vmem:[%s206] sm:%s205] %v203
    %s208 = scalar_lea.vmem [#allocation0], 24
    %v209 = vld [vmem:[%s208] sm:%s191]
    %s211 = ssub.s32 2, 1
    %s212 = scalar_lea.vmem %s1, 3
    %213 = vst [vmem:[%s212] sm:%s211] %v209

// kernel: updla_unit_forward.1
$region0: #{updla_unit_forward.1}
  #allocation0 [shape = 'u32[]', space=smem, size = 0x4, offset = 0x4, fixed_abs, tag = 'smem constant byte address 0x4 - core index']
  #allocation1 [shape = 'u32[72,128]{1,0:T(1,128)}', space=vmem, size = 0x9000, scoped, tag = 'internal scratch']
  #allocation2 [shape = 'f32[33,264]{1,0:T(8,128)}', space=vmem, size = 0xf000, scoped, tag = 'scratch operand']
  %s0 = inlined_call_operand.vmem [shape: f32[2,17,68], index: 0, kind: input, shape index: {}]
  %s1 = inlined_call_operand.vmem [shape: bf16[256,512], index: 1, kind: input, shape index: {}]
  %s2 = inlined_call_operand.vmem [shape: f32[1,512], index: 2, kind: input, shape index: {}]
  %s3 = inlined_call_operand.vmem [shape: bf16[1024,1024], index: 3, kind: input, shape index: {}]
  %s4 = inlined_call_operand.vmem [shape: f32[1,1024], index: 4, kind: input, shape index: {}]
  %s5 = inlined_call_operand.vmem [shape: f32[2,32,1024], index: 5, kind: output, shape index: {}]
  %s6 = sld [smem:[#allocation0]]
  $region53: #{updla_unit_forward.1} parent=0
    _
  %s8 = ssub.s32 1, %s6
  %s9 = scalar_select 0, %s8, %s6
  loop: start=0, step=1, limit=4
  $region2: #{updla_unit_forward.1} parent=0 // loop_pre_header
    _
  $region3: #{updla_unit_forward.1} parent=0 // loop_header
    %s11 = sphi 0, %s15
    %p12 = scmp.ge.s32.totalorder %s11, 4
    %s21 = sphi 0, %s23
    %s24 = sphi 0, %s21
    %s25 = sphi 0, %s24
    %s41 = sphi 0, %s25
    %s45 = sphi 0, %s45
    %s47 = sphi 0, %s45
    %s48 = sphi 0, %s47
    %s62 = sphi 0, %s48
    %s66 = sphi 0, %s66
    %s68 = sphi 0, %s66
    %s69 = sphi 0, %s68
    %s83 = sphi 0, %s69
    %s87 = sphi 0, %s87
    %s89 = sphi 0, %s87
    %s90 = sphi 0, %s89
    %s104 = sphi 0, %s90
    %s108 = sphi 0, %s108
    %s110 = sphi 0, %s108
    %s111 = sphi 0, %s110
    %s125 = sphi 0, %s111
    %s131 = sphi 0, %s133
    %s134 = sphi 0, %s131
    %s135 = sphi 0, %s134
    %s151 = sphi 0, %s135
  $region4: #{updla_unit_forward.1} parent=0 // loop_header_branch
    %14 = sbr.rel (%p12) target = $region8
  $region5: #{updla_unit_forward.1} parent=0 // loop_body
    %s16 = ssub.s32 %s11, 1
    %s17 = ssub.s32 %s11, 2
    %s18 = sadd.s32 %s11, 1
    %s19 = ssub.s32 %s11, %s18
    %p20 = scmp.eq.s32.totalorder %s19, 0
    %s22 = sadd.s32 %s21, 1
    %s23 = scalar_select %p20, %s21, %s22
    %p26 = pneg %p20
    %p27 = scmp.eq.s32.totalorder %s11, 1
    %p28 = por %p26, %p27
    %p29 = scmp.ne.s32.totalorder %s21, %s24
    %p30 = scmp.eq.s32.totalorder %s11, 0
    %p31 = por %p29, %p30
    %p32 = scmp.ne.s32.totalorder %s21, %s24
    %p33 = scmp.eq.s32.totalorder %s16, 1
    %p34 = por %p32, %p33
    %p35 = scmp.ne.s32.totalorder %s24, %s25
    %p36 = scmp.eq.s32.totalorder %s16, 0
    %p37 = por %p35, %p36
    %p38 = scmp.ne.s32.totalorder %s24, %s25
    %p39 = scmp.eq.s32.totalorder %s17, 1
    %p40 = por %p38, %p39
    %p42 = scmp.ne.s32.totalorder %s25, %s41
    %p43 = scmp.eq.s32.totalorder %s17, 0
    %p44 = por %p42, %p43
    %s46 = sadd.s32 %s45, 1
    %p49 = scmp.eq.s32.totalorder %s11, 1
    %p50 = scmp.ne.s32.totalorder %s45, %s47
    %p51 = scmp.eq.s32.totalorder %s11, 0
    %p52 = por %p50, %p51
    %p53 = scmp.ne.s32.totalorder %s45, %s47
    %p54 = scmp.eq.s32.totalorder %s16, 1
    %p55 = por %p53, %p54
    %p56 = scmp.ne.s32.totalorder %s47, %s48
    %p57 = scmp.eq.s32.totalorder %s16, 0
    %p58 = por %p56, %p57
    %p59 = scmp.ne.s32.totalorder %s47, %s48
    %p60 = scmp.eq.s32.totalorder %s17, 1
    %p61 = por %p59, %p60
    %p63 = scmp.ne.s32.totalorder %s48, %s62
    %p64 = scmp.eq.s32.totalorder %s17, 0
    %p65 = por %p63, %p64
    %s67 = sadd.s32 %s66, 1
    %p70 = scmp.eq.s32.totalorder %s11, 1
    %p71 = scmp.ne.s32.totalorder %s66, %s68
    %p72 = scmp.eq.s32.totalorder %s11, 0
    %p73 = por %p71, %p72
    %p74 = scmp.ne.s32.totalorder %s66, %s68
    %p75 = scmp.eq.s32.totalorder %s16, 1
    %p76 = por %p74, %p75
    %p77 = scmp.ne.s32.totalorder %s68, %s69
    %p78 = scmp.eq.s32.totalorder %s16, 0
    %p79 = por %p77, %p78
    %p80 = scmp.ne.s32.totalorder %s68, %s69
    %p81 = scmp.eq.s32.totalorder %s17, 1
    %p82 = por %p80, %p81
    %p84 = scmp.ne.s32.totalorder %s69, %s83
    %p85 = scmp.eq.s32.totalorder %s17, 0
    %p86 = por %p84, %p85
    %s88 = sadd.s32 %s87, 1
    %p91 = scmp.eq.s32.totalorder %s11, 1
    %p92 = scmp.ne.s32.totalorder %s87, %s89
    %p93 = scmp.eq.s32.totalorder %s11, 0
    %p94 = por %p92, %p93
    %p95 = scmp.ne.s32.totalorder %s87, %s89
    %p96 = scmp.eq.s32.totalorder %s16, 1
    %p97 = por %p95, %p96
    %p98 = scmp.ne.s32.totalorder %s89, %s90
    %p99 = scmp.eq.s32.totalorder %s16, 0
    %p100 = por %p98, %p99
    %p101 = scmp.ne.s32.totalorder %s89, %s90
    %p102 = scmp.eq.s32.totalorder %s17, 1
    %p103 = por %p101, %p102
    %p105 = scmp.ne.s32.totalorder %s90, %s104
    %p106 = scmp.eq.s32.totalorder %s17, 0
    %p107 = por %p105, %p106
    %s109 = sadd.s32 %s108, 1
    %p112 = scmp.eq.s32.totalorder %s11, 1
    %p113 = scmp.ne.s32.totalorder %s108, %s110
    %p114 = scmp.eq.s32.totalorder %s11, 0
    %p115 = por %p113, %p114
    %p116 = scmp.ne.s32.totalorder %s108, %s110
    %p117 = scmp.eq.s32.totalorder %s16, 1
    %p118 = por %p116, %p117
    %p119 = scmp.ne.s32.totalorder %s110, %s111
    %p120 = scmp.eq.s32.totalorder %s16, 0
    %p121 = por %p119, %p120
    %p122 = scmp.ne.s32.totalorder %s110, %s111
    %p123 = scmp.eq.s32.totalorder %s17, 1
    %p124 = por %p122, %p123
    %p126 = scmp.ne.s32.totalorder %s111, %s125
    %p127 = scmp.eq.s32.totalorder %s17, 0
    %p128 = por %p126, %p127
    %s129 = ssub.s32 %s11, %s18
    %p130 = scmp.eq.s32.totalorder %s129, 0
    %s132 = sadd.s32 %s131, 1
    %s133 = scalar_select %p130, %s131, %s132
    %p136 = pneg %p130
    %p137 = scmp.eq.s32.totalorder %s11, 1
    %p138 = por %p136, %p137
    %p139 = scmp.ne.s32.totalorder %s131, %s134
    %p140 = scmp.eq.s32.totalorder %s11, 0
    %p141 = por %p139, %p140
    %p142 = scmp.ne.s32.totalorder %s131, %s134
    %p143 = scmp.eq.s32.totalorder %s16, 1
    %p144 = por %p142, %p143
    %p145 = scmp.ne.s32.totalorder %s134, %s135
    %p146 = scmp.eq.s32.totalorder %s16, 0
    %p147 = por %p145, %p146
    %p148 = scmp.ne.s32.totalorder %s134, %s135
    %p149 = scmp.eq.s32.totalorder %s17, 1
    %p150 = por %p148, %p149
    %p152 = scmp.ne.s32.totalorder %s135, %s151
    %p153 = scmp.eq.s32.totalorder %s17, 0
    %p154 = por %p152, %p153
    %p155 = scmp.le.s32.totalorder 1, %s11
    %p156 = scmp.lt.s32.totalorder %s11, 3
    %p157 = pnand %p155, %p156
    %p158 = pneg %p157
    // Predicated region
    $region9: #{updla_unit_forward.1} parent=5 // pred_check
      _
    $region10: #{updla_unit_forward.1} parent=5 // pred_check_branch
      %160 = sbr.rel (%p157) target = $region12
    $region11: #{updla_unit_forward.1} parent=5 // pred_region
      %s161 = ssub.s32 %s11, 1
      // Predicated region
      $region13: #{updla_unit_forward.1} parent=11 // pred_check
        %p162 = pneg %p58
      $region14: #{updla_unit_forward.1} parent=11 // pred_check_branch
        %164 = sbr.rel (%p162) target = $region16
      $region15: #{updla_unit_forward.1} parent=11 // pred_region
        _
      $region16: #{updla_unit_forward.1} parent=11 // pred_fallthru
        _
      // Predicated region
      $region17: #{updla_unit_forward.1} parent=11 // pred_check
        %p165 = pneg %p79
      $region18: #{updla_unit_forward.1} parent=11 // pred_check_branch
        %167 = sbr.rel (%p165) target = $region20
      $region19: #{updla_unit_forward.1} parent=11 // pred_region
        _
      $region20: #{updla_unit_forward.1} parent=11 // pred_fallthru
        _
      // Predicated region
      $region21: #{updla_unit_forward.1} parent=11 // pred_check
        %p168 = pneg %p100
      $region22: #{updla_unit_forward.1} parent=11 // pred_check_branch
        %170 = sbr.rel (%p168) target = $region24
      $region23: #{updla_unit_forward.1} parent=11 // pred_region
        _
      $region24: #{updla_unit_forward.1} parent=11 // pred_fallthru
        _
      // Predicated region
      $region25: #{updla_unit_forward.1} parent=11 // pred_check
        %p171 = pneg %p121
      $region26: #{updla_unit_forward.1} parent=11 // pred_check_branch
        %173 = sbr.rel (%p171) target = $region28
      $region27: #{updla_unit_forward.1} parent=11 // pred_region
        _
      $region28: #{updla_unit_forward.1} parent=11 // pred_fallthru
        _
    $region12: #{updla_unit_forward.1} parent=5 // pred_fallthru
      _
    %p174 = scmp.lt.s32.totalorder %s11, 2
    // Predicated region
    $region29: #{updla_unit_forward.1} parent=5 // pred_check
      %p175 = pneg %p174
    $region30: #{updla_unit_forward.1} parent=5 // pred_check_branch
      %177 = sbr.rel (%p175) target = $region32
    $region31: #{updla_unit_forward.1} parent=5 // pred_region
      // Predicated region
      $region33: #{updla_unit_forward.1} parent=31 // pred_check
        %p178 = pneg %p31
      $region34: #{updla_unit_forward.1} parent=31 // pred_check_branch
        %180 = sbr.rel (%p178) target = $region36
      $region35: #{updla_unit_forward.1} parent=31 // pred_region
        %p181 = scmp.lt.s32.totalorder %s11, 1
        %s182 = scalar_select %p181, %s11, 1
        %s183 = smul.addr %s182, 3
        %s184 = smul.addr %s183, 8
        %s185 = scalar_lea.vmem %s0, %s184
      $region36: #{updla_unit_forward.1} parent=31 // pred_fallthru
        _
    $region32: #{updla_unit_forward.1} parent=5 // pred_fallthru
      _
    %p186 = scmp.le.s32.totalorder 1, %s11
    %p187 = scmp.lt.s32.totalorder %s11, 3
    %p188 = pnand %p186, %p187
    %p189 = pneg %p188
    // Predicated region
    $region37: #{updla_unit_forward.1} parent=5 // pred_check
      _
    $region38: #{updla_unit_forward.1} parent=5 // pred_check_branch
      %191 = sbr.rel (%p188) target = $region40
    $region39: #{updla_unit_forward.1} parent=5 // pred_region
      %s192 = ssub.s32 %s11, 1
      %p193 = scmp.lt.s32.totalorder %s16, 1
      %s194 = scalar_select %p193, %s16, 1
      %s195 = smul.addr %s194, 3
      %s196 = smul.addr %s195, 8
      %s197 = scalar_lea.vmem %s0, %s196
      %p198 = pneg %p37
      %p199 = pneg %p34
      %p200 = pneg %p58
      %p201 = pneg %p55
      %p202 = pneg %p79
      %p203 = pneg %p76
      %p204 = pneg %p100
      %p205 = pneg %p97
      %p206 = pneg %p121
      %p207 = pneg %p118
      %p208 = pneg %p147
      %p209 = pneg %p144
      %p210 = scmp.lt.s32.totalorder %s16, 1
      %s211 = scalar_select %p210, %s16, 1
      %s212 = smul.addr %s211, 32
      %s213 = smul.addr %s212, 8
      %s214 = scalar_lea.vmem %s5, %s213
      %p215 = scmp.lt.s32.totalorder %s16, 1
      %s216 = scalar_select %p215, %s16, 1
      %s217 = smul.addr %s216, 3
      %s218 = smul.addr %s217, 8
      %s219 = scalar_lea.vmem %s0, %s218
      %p220 = scmp.lt.s32.totalorder %s16, 1
      %s221 = scalar_select %p220, %s16, 1
      %s222 = smul.addr %s221, 32
      %s223 = smul.addr %s222, 8
      %s224 = scalar_lea.vmem %s5, %s223
      %v225 = vld [vmem:[%s219] sm:$0xff]
      %v226 = vld [vmem:[%s219 + $0x8] sm:$0xff]
      %v227 = vld [vmem:[%s219 + $0x10] sm:$0x1]
      %230 = vrot.lane.b32.xlu0 %v225, 60
      %v231 = vpop.permute.xlu0 %230
      %232 = vrot.lane.b32.xlu0 %v226, 60
      %v233 = vpop.permute.xlu0 %232
      %vm237 = vcmask 1046528
      %v238 = vrot.slane %v225, 1
      %v239 = vrot.slane %v226, 1
      %v240 = vsel %vm237, %v238, %v239
      %v241 = vrot.slane %v227, 1
      %v242 = vsel %vm237, %v239, %v241
      %245 = vrot.lane.b32.xlu0 %v240, 60
      %v246 = vpop.permute.xlu0 %245
      %247 = vrot.lane.b32.xlu0 %v242, 60
      %v248 = vpop.permute.xlu0 %247
      %vm251 = vcmask 523264
      %v252 = vsel %vm251, %v225, %v231
      %v253 = vsel %vm251, %v226, %v233
      %v254 = vsel %vm251, %v240, %v246
      %v255 = vsel %vm251, %v242, %v248
      %v256 = vpack.c.bf16 %v253, %v252
      %v257 = vpack.c.bf16 %v255, %v254
      %v258 = vld [vmem:[%s1] sm:$0xff]
      %v259 = vld [vmem:[%s1 + $0x8] sm:$0xff]
      %v260 = vld [vmem:[%s1 + $0x10] sm:$0xff]
      %v261 = vld [vmem:[%s1 + $0x18] sm:$0xff]
      %v262 = vld [vmem:[%s1 + $0x20] sm:$0xff]
      %v263 = vld [vmem:[%s1 + $0x28] sm:$0xff]
      %v264 = vld [vmem:[%s1 + $0x30] sm:$0xff]
      %v265 = vld [vmem:[%s1 + $0x38] sm:$0xff]
      %v266 = vld [vmem:[%s1 + $0x40] sm:$0xff]
      %v267 = vld [vmem:[%s1 + $0x48] sm:$0xff]
      %v268 = vld [vmem:[%s1 + $0x50] sm:$0xff]
      %v269 = vld [vmem:[%s1 + $0x58] sm:$0xff]
      %v270 = vld [vmem:[%s1 + $0x60] sm:$0xff]
      %v271 = vld [vmem:[%s1 + $0x68] sm:$0xff]
      %v272 = vld [vmem:[%s1 + $0x70] sm:$0xff]
      %v273 = vld [vmem:[%s1 + $0x78] sm:$0xff]
      %v274 = vld [vmem:[%s1 + $0x80] sm:$0xff]
      %v275 = vld [vmem:[%s1 + $0x88] sm:$0xff]
      %v276 = vld [vmem:[%s1 + $0x90] sm:$0xff]
      %v277 = vld [vmem:[%s1 + $0x98] sm:$0xff]
      %v278 = vld [vmem:[%s1 + $0xa0] sm:$0xff]
      %v279 = vld [vmem:[%s1 + $0xa8] sm:$0xff]
      %v280 = vld [vmem:[%s1 + $0xb0] sm:$0xff]
      %v281 = vld [vmem:[%s1 + $0xb8] sm:$0xff]
      %v282 = vld [vmem:[%s1 + $0xc0] sm:$0xff]
      %v283 = vld [vmem:[%s1 + $0xc8] sm:$0xff]
      %v284 = vld [vmem:[%s1 + $0xd0] sm:$0xff]
      %v285 = vld [vmem:[%s1 + $0xd8] sm:$0xff]
      %v286 = vld [vmem:[%s1 + $0xe0] sm:$0xff]
      %v287 = vld [vmem:[%s1 + $0xe8] sm:$0xff]
      %v288 = vld [vmem:[%s1 + $0xf0] sm:$0xff]
      %v289 = vld [vmem:[%s1 + $0xf8] sm:$0xff]
      %v290 = vld [vmem:[%s1 + $0x100] sm:$0xff]
      %v291 = vld [vmem:[%s1 + $0x108] sm:$0xff]
      %v292 = vld [vmem:[%s1 + $0x110] sm:$0xff]
      %v293 = vld [vmem:[%s1 + $0x118] sm:$0xff]
      %v294 = vld [vmem:[%s1 + $0x120] sm:$0xff]
      %v295 = vld [vmem:[%s1 + $0x128] sm:$0xff]
      %v296 = vld [vmem:[%s1 + $0x130] sm:$0xff]
      %v297 = vld [vmem:[%s1 + $0x138] sm:$0xff]
      %v298 = vld [vmem:[%s1 + $0x140] sm:$0xff]
      %v299 = vld [vmem:[%s1 + $0x148] sm:$0xff]
      %v300 = vld [vmem:[%s1 + $0x150] sm:$0xff]
      %v301 = vld [vmem:[%s1 + $0x158] sm:$0xff]
      %v302 = vld [vmem:[%s1 + $0x160] sm:$0xff]
      %v303 = vld [vmem:[%s1 + $0x168] sm:$0xff]
      %v304 = vld [vmem:[%s1 + $0x170] sm:$0xff]
      %v305 = vld [vmem:[%s1 + $0x178] sm:$0xff]
      %v306 = vld [vmem:[%s1 + $0x180] sm:$0xff]
      %v307 = vld [vmem:[%s1 + $0x188] sm:$0xff]
      %v308 = vld [vmem:[%s1 + $0x190] sm:$0xff]
      %v309 = vld [vmem:[%s1 + $0x198] sm:$0xff]
      %v310 = vld [vmem:[%s1 + $0x1a0] sm:$0xff]
      %v311 = vld [vmem:[%s1 + $0x1a8] sm:$0xff]
      %v312 = vld [vmem:[%s1 + $0x1b0] sm:$0xff]
      %v313 = vld [vmem:[%s1 + $0x1b8] sm:$0xff]
      %v314 = vld [vmem:[%s1 + $0x1c0] sm:$0xff]
      %v315 = vld [vmem:[%s1 + $0x1c8] sm:$0xff]
      %v316 = vld [vmem:[%s1 + $0x1d0] sm:$0xff]
      %v317 = vld [vmem:[%s1 + $0x1d8] sm:$0xff]
      %v318 = vld [vmem:[%s1 + $0x1e0] sm:$0xff]
      %v319 = vld [vmem:[%s1 + $0x1e8] sm:$0xff]
      %v320 = vld [vmem:[%s1 + $0x1f0] sm:$0xff]
      %v321 = vld [vmem:[%s1 + $0x1f8] sm:$0xff]
      %v322 = vld [vmem:[%s2] sm:$0xf]
      %v324 = vperm.slane %v322, 0
      %v325 = vperm.slane %v322, 1
      %v326 = vperm.slane %v322, 2
      %v327 = vperm.slane %v322, 3
      %v396 = vunpack.c.l.b16 %v258
      %v397 = vunpack.c.h.b16 %v258
      %v398 = vunpack.c.l.b16 %v259
      %v399 = vunpack.c.h.b16 %v259
      %v400 = vunpack.c.l.b16 %v260
      %v401 = vunpack.c.h.b16 %v260
      %v402 = vunpack.c.l.b16 %v261
      %v403 = vunpack.c.h.b16 %v261
      %v404 = vunpack.c.l.b16 %v262
      %v405 = vunpack.c.h.b16 %v262
      %v406 = vunpack.c.l.b16 %v263
      %v407 = vunpack.c.h.b16 %v263
      %v408 = vunpack.c.l.b16 %v264
      %v409 = vunpack.c.h.b16 %v264
      %v410 = vunpack.c.l.b16 %v265
      %v411 = vunpack.c.h.b16 %v265
      %v412 = vunpack.c.l.b16 %v266
      %v413 = vunpack.c.h.b16 %v266
      %v414 = vunpack.c.l.b16 %v267
      %v415 = vunpack.c.h.b16 %v267
      %v416 = vunpack.c.l.b16 %v268
      %v417 = vunpack.c.h.b16 %v268
      %v418 = vunpack.c.l.b16 %v269
      %v419 = vunpack.c.h.b16 %v269
      %v420 = vunpack.c.l.b16 %v270
      %v421 = vunpack.c.h.b16 %v270
      %v422 = vunpack.c.l.b16 %v271
      %v423 = vunpack.c.h.b16 %v271
      %v424 = vunpack.c.l.b16 %v272
      %v425 = vunpack.c.h.b16 %v272
      %v426 = vunpack.c.l.b16 %v273
      %v427 = vunpack.c.h.b16 %v273
      %v428 = vunpack.c.l.b16 %v274
      %v429 = vunpack.c.h.b16 %v274
      %v430 = vunpack.c.l.b16 %v275
      %v431 = vunpack.c.h.b16 %v275
      %v432 = vunpack.c.l.b16 %v276
      %v433 = vunpack.c.h.b16 %v276
      %v434 = vunpack.c.l.b16 %v277
      %v435 = vunpack.c.h.b16 %v277
      %v436 = vunpack.c.l.b16 %v278
      %v437 = vunpack.c.h.b16 %v278
      %v438 = vunpack.c.l.b16 %v279
      %v439 = vunpack.c.h.b16 %v279
      %v440 = vunpack.c.l.b16 %v280
      %v441 = vunpack.c.h.b16 %v280
      %v442 = vunpack.c.l.b16 %v281
      %v443 = vunpack.c.h.b16 %v281
      %v444 = vunpack.c.l.b16 %v282
      %v445 = vunpack.c.h.b16 %v282
      %v446 = vunpack.c.l.b16 %v283
      %v447 = vunpack.c.h.b16 %v283
      %v448 = vunpack.c.l.b16 %v284
      %v449 = vunpack.c.h.b16 %v284
      %v450 = vunpack.c.l.b16 %v285
      %v451 = vunpack.c.h.b16 %v285
      %v452 = vunpack.c.l.b16 %v286
      %v453 = vunpack.c.h.b16 %v286
      %v454 = vunpack.c.l.b16 %v287
      %v455 = vunpack.c.h.b16 %v287
      %v456 = vunpack.c.l.b16 %v288
      %v457 = vunpack.c.h.b16 %v288
      %v458 = vunpack.c.l.b16 %v289
      %v459 = vunpack.c.h.b16 %v289
      %v460 = vunpack.c.l.b16 %v290
      %v461 = vunpack.c.h.b16 %v290
      %v462 = vunpack.c.l.b16 %v291
      %v463 = vunpack.c.h.b16 %v291
      %v464 = vunpack.c.l.b16 %v292
      %v465 = vunpack.c.h.b16 %v292
      %v466 = vunpack.c.l.b16 %v293
      %v467 = vunpack.c.h.b16 %v293
      %v468 = vunpack.c.l.b16 %v294
      %v469 = vunpack.c.h.b16 %v294
      %v470 = vunpack.c.l.b16 %v295
      %v471 = vunpack.c.h.b16 %v295
      %v472 = vunpack.c.l.b16 %v296
      %v473 = vunpack.c.h.b16 %v296
      %v474 = vunpack.c.l.b16 %v297
      %v475 = vunpack.c.h.b16 %v297
      %v476 = vunpack.c.l.b16 %v298
      %v477 = vunpack.c.h.b16 %v298
      %v478 = vunpack.c.l.b16 %v299
      %v479 = vunpack.c.h.b16 %v299
      %v480 = vunpack.c.l.b16 %v300
      %v481 = vunpack.c.h.b16 %v300
      %v482 = vunpack.c.l.b16 %v301
      %v483 = vunpack.c.h.b16 %v301
      %v484 = vunpack.c.l.b16 %v302
      %v485 = vunpack.c.h.b16 %v302
      %v486 = vunpack.c.l.b16 %v303
      %v487 = vunpack.c.h.b16 %v303
      %v488 = vunpack.c.l.b16 %v304
      %v489 = vunpack.c.h.b16 %v304
      %v490 = vunpack.c.l.b16 %v305
      %v491 = vunpack.c.h.b16 %v305
      %v492 = vunpack.c.l.b16 %v306
      %v493 = vunpack.c.h.b16 %v306
      %v494 = vunpack.c.l.b16 %v307
      %v495 = vunpack.c.h.b16 %v307
      %v496 = vunpack.c.l.b16 %v308
      %v497 = vunpack.c.h.b16 %v308
      %v498 = vunpack.c.l.b16 %v309
      %v499 = vunpack.c.h.b16 %v309
      %v500 = vunpack.c.l.b16 %v310
      %v501 = vunpack.c.h.b16 %v310
      %v502 = vunpack.c.l.b16 %v311
      %v503 = vunpack.c.h.b16 %v311
      %v504 = vunpack.c.l.b16 %v312
      %v505 = vunpack.c.h.b16 %v312
      %v506 = vunpack.c.l.b16 %v313
      %v507 = vunpack.c.h.b16 %v313
      %v508 = vunpack.c.l.b16 %v314
      %v509 = vunpack.c.h.b16 %v314
      %v510 = vunpack.c.l.b16 %v315
      %v511 = vunpack.c.h.b16 %v315
      %v512 = vunpack.c.l.b16 %v316
      %v513 = vunpack.c.h.b16 %v316
      %v514 = vunpack.c.l.b16 %v317
      %v515 = vunpack.c.h.b16 %v317
      %v516 = vunpack.c.l.b16 %v318
      %v517 = vunpack.c.h.b16 %v318
      %v518 = vunpack.c.l.b16 %v319
      %v519 = vunpack.c.h.b16 %v319
      %v520 = vunpack.c.l.b16 %v320
      %v521 = vunpack.c.h.b16 %v320
      %v522 = vunpack.c.l.b16 %v321
      %v523 = vunpack.c.h.b16 %v321
      %v524 = vpack.c.b16 %v400, %v396
      %v525 = vpack.c.b16 %v401, %v397
      %v526 = vpack.c.b16 %v402, %v398
      %v527 = vpack.c.b16 %v403, %v399
      %v528 = vpack.c.b16 %v408, %v404
      %v529 = vpack.c.b16 %v409, %v405
      %v530 = vpack.c.b16 %v410, %v406
      %v531 = vpack.c.b16 %v411, %v407
      %v532 = vpack.c.b16 %v416, %v412
      %v533 = vpack.c.b16 %v417, %v413
      %v534 = vpack.c.b16 %v418, %v414
      %v535 = vpack.c.b16 %v419, %v415
      %v536 = vpack.c.b16 %v424, %v420
      %v537 = vpack.c.b16 %v425, %v421
      %v538 = vpack.c.b16 %v426, %v422
      %v539 = vpack.c.b16 %v427, %v423
      %v540 = vpack.c.b16 %v432, %v428
      %v541 = vpack.c.b16 %v433, %v429
      %v542 = vpack.c.b16 %v434, %v430
      %v543 = vpack.c.b16 %v435, %v431
      %v544 = vpack.c.b16 %v440, %v436
      %v545 = vpack.c.b16 %v441, %v437
      %v546 = vpack.c.b16 %v442, %v438
      %v547 = vpack.c.b16 %v443, %v439
      %v548 = vpack.c.b16 %v448, %v444
      %v549 = vpack.c.b16 %v449, %v445
      %v550 = vpack.c.b16 %v450, %v446
      %v551 = vpack.c.b16 %v451, %v447
      %v552 = vpack.c.b16 %v456, %v452
      %v553 = vpack.c.b16 %v457, %v453
      %v554 = vpack.c.b16 %v458, %v454
      %v555 = vpack.c.b16 %v459, %v455
      %v556 = vpack.c.b16 %v464, %v460
      %v557 = vpack.c.b16 %v465, %v461
      %v558 = vpack.c.b16 %v466, %v462
      %v559 = vpack.c.b16 %v467, %v463
      %v560 = vpack.c.b16 %v472, %v468
      %v561 = vpack.c.b16 %v473, %v469
      %v562 = vpack.c.b16 %v474, %v470
      %v563 = vpack.c.b16 %v475, %v471
      %v564 = vpack.c.b16 %v480, %v476
      %v565 = vpack.c.b16 %v481, %v477
      %v566 = vpack.c.b16 %v482, %v478
      %v567 = vpack.c.b16 %v483, %v479
      %v568 = vpack.c.b16 %v488, %v484
      %v569 = vpack.c.b16 %v489, %v485
      %v570 = vpack.c.b16 %v490, %v486
      %v571 = vpack.c.b16 %v491, %v487
      %v572 = vpack.c.b16 %v496, %v492
      %v573 = vpack.c.b16 %v497, %v493
      %v574 = vpack.c.b16 %v498, %v494
      %v575 = vpack.c.b16 %v499, %v495
      %v576 = vpack.c.b16 %v504, %v500
      %v577 = vpack.c.b16 %v505, %v501
      %v578 = vpack.c.b16 %v506, %v502
      %v579 = vpack.c.b16 %v507, %v503
      %v580 = vpack.c.b16 %v512, %v508
      %v581 = vpack.c.b16 %v513, %v509
      %v582 = vpack.c.b16 %v514, %v510
      %v583 = vpack.c.b16 %v515, %v511
      %v584 = vpack.c.b16 %v520, %v516
      %v585 = vpack.c.b16 %v521, %v517
      %v586 = vpack.c.b16 %v522, %v518
      %v587 = vpack.c.b16 %v523, %v519
      %652 = vmatpush.bf16.msra.mxu0 %v552
      %653 = vmatpush.bf16.msra.mxu0 %v548
      %654 = vmatpush.bf16.msra.mxu0 %v544
      %655 = vmatpush.bf16.msra.mxu0 %v540
      %656 = vmatpush.bf16.msra.mxu0 %v536
      %657 = vmatpush.bf16.msra.mxu0 %v532
      %658 = vmatpush.bf16.msra.mxu0 %v528
      %659 = vmatpush.bf16.msra.mxu0 %v524
      %660 = vmatmul.bf16.gmra.mxu0 %v256
      %v661 = vpop.f32.mrf.mxu0
      %v662 = vadd.f32 %v324, %v661
      %v663 = vpop.f32.mrf.mxu0
      %v664 = vadd.f32 %v324, %v663
      %665 = vdwg.mxu0
      %666 = vmatpush.bf16.msra.mxu0 %v584
      %667 = vmatpush.bf16.msra.mxu0 %v580
      %668 = vmatpush.bf16.msra.mxu0 %v576
      %669 = vmatpush.bf16.msra.mxu0 %v572
      %670 = vmatpush.bf16.msra.mxu0 %v568
      %671 = vmatpush.bf16.msra.mxu0 %v564
      %672 = vmatpush.bf16.msra.mxu0 %v560
      %673 = vmatpush.bf16.msra.mxu0 %v556
      %674 = vmatmul.bf16.gmra.mxu0 %v257
      %v675 = vpop.f32.mrf.mxu0
      %v676 = vadd.f32 %v662, %v675
      %v677 = vpop.f32.mrf.mxu0
      %v678 = vadd.f32 %v664, %v677
      %679 = vdwg.mxu0
      %680 = vmatpush.bf16.msra.mxu0 %v553
      %681 = vmatpush.bf16.msra.mxu0 %v549
      %682 = vmatpush.bf16.msra.mxu0 %v545
      %683 = vmatpush.bf16.msra.mxu0 %v541
      %684 = vmatpush.bf16.msra.mxu0 %v537
      %685 = vmatpush.bf16.msra.mxu0 %v533
      %686 = vmatpush.bf16.msra.mxu0 %v529
      %687 = vmatpush.bf16.msra.mxu0 %v525
      %688 = vmatmul.bf16.gmra.mxu0 %v256
      %v689 = vpop.f32.mrf.mxu0
      %v690 = vadd.f32 %v325, %v689
      %v691 = vpop.f32.mrf.mxu0
      %v692 = vadd.f32 %v325, %v691
      %693 = vdwg.mxu0
      %694 = vmatpush.bf16.msra.mxu0 %v585
      %695 = vmatpush.bf16.msra.mxu0 %v581
      %696 = vmatpush.bf16.msra.mxu0 %v577
      %697 = vmatpush.bf16.msra.mxu0 %v573
      %698 = vmatpush.bf16.msra.mxu0 %v569
      %699 = vmatpush.bf16.msra.mxu0 %v565
      %700 = vmatpush.bf16.msra.mxu0 %v561
      %701 = vmatpush.bf16.msra.mxu0 %v557
      %702 = vmatmul.bf16.gmra.mxu0 %v257
      %v703 = vpop.f32.mrf.mxu0
      %v704 = vadd.f32 %v690, %v703
      %v705 = vpop.f32.mrf.mxu0
      %v706 = vadd.f32 %v692, %v705
      %707 = vdwg.mxu0
      %708 = vmatpush.bf16.msra.mxu0 %v554
      %709 = vmatpush.bf16.msra.mxu0 %v550
      %710 = vmatpush.bf16.msra.mxu0 %v546
      %711 = vmatpush.bf16.msra.mxu0 %v542
      %712 = vmatpush.bf16.msra.mxu0 %v538
      %713 = vmatpush.bf16.msra.mxu0 %v534
      %714 = vmatpush.bf16.msra.mxu0 %v530
      %715 = vmatpush.bf16.msra.mxu0 %v526
      %716 = vmatmul.bf16.gmra.mxu0 %v256
      %v717 = vpop.f32.mrf.mxu0
      %v718 = vadd.f32 %v326, %v717
      %v719 = vpop.f32.mrf.mxu0
      %v720 = vadd.f32 %v326, %v719
      %721 = vdwg.mxu0
      %722 = vmatpush.bf16.msra.mxu0 %v586
      %723 = vmatpush.bf16.msra.mxu0 %v582
      %724 = vmatpush.bf16.msra.mxu0 %v578
      %725 = vmatpush.bf16.msra.mxu0 %v574
      %726 = vmatpush.bf16.msra.mxu0 %v570
      %727 = vmatpush.bf16.msra.mxu0 %v566
      %728 = vmatpush.bf16.msra.mxu0 %v562
      %729 = vmatpush.bf16.msra.mxu0 %v558
      %730 = vmatmul.bf16.gmra.mxu0 %v257
      %v731 = vpop.f32.mrf.mxu0
      %v732 = vadd.f32 %v718, %v731
      %v733 = vpop.f32.mrf.mxu0
      %v734 = vadd.f32 %v720, %v733
      %735 = vdwg.mxu0
      %736 = vmatpush.bf16.msra.mxu0 %v555
      %737 = vmatpush.bf16.msra.mxu0 %v551
      %738 = vmatpush.bf16.msra.mxu0 %v547
      %739 = vmatpush.bf16.msra.mxu0 %v543
      %740 = vmatpush.bf16.msra.mxu0 %v539
      %741 = vmatpush.bf16.msra.mxu0 %v535
      %742 = vmatpush.bf16.msra.mxu0 %v531
      %743 = vmatpush.bf16.msra.mxu0 %v527
      %744 = vmatmul.bf16.gmra.mxu0 %v256
      %v745 = vpop.f32.mrf.mxu0
      %v746 = vadd.f32 %v327, %v745
      %v747 = vpop.f32.mrf.mxu0
      %v748 = vadd.f32 %v327, %v747
      %749 = vdwg.mxu0
      %750 = vmatpush.bf16.msra.mxu0 %v587
      %751 = vmatpush.bf16.msra.mxu0 %v583
      %752 = vmatpush.bf16.msra.mxu0 %v579
      %753 = vmatpush.bf16.msra.mxu0 %v575
      %754 = vmatpush.bf16.msra.mxu0 %v571
      %755 = vmatpush.bf16.msra.mxu0 %v567
      %756 = vmatpush.bf16.msra.mxu0 %v563
      %757 = vmatpush.bf16.msra.mxu0 %v559
      %758 = vmatmul.bf16.gmra.mxu0 %v257
      %v759 = vpop.f32.mrf.mxu0
      %v760 = vadd.f32 %v746, %v759
      %v761 = vpop.f32.mrf.mxu0
      %v762 = vadd.f32 %v748, %v761
      %763 = vdwg.mxu0
      %764 = vst [vmem:[#allocation2] sm:$0xff] 0.0
      %765 = vst [vmem:[#allocation2 + $0x8] sm:$0xff] 0.0
      %vm766 = vcmask 64512
      %767 = vst.msk [vmem:[#allocation2 + $0x10] sm:$0xff] %vm766, 0.0
      %768 = vst [vmem:[#allocation2 + $0x18] sm:$0xff] 0.0
      %769 = vst [vmem:[#allocation2 + $0x20] sm:$0xff] 0.0
      %770 = vst.msk [vmem:[#allocation2 + $0x28] sm:$0xff] %vm766, 0.0
      %771 = vst [vmem:[#allocation2 + $0x30] sm:$0xff] 0.0
      %772 = vst [vmem:[#allocation2 + $0x38] sm:$0xff] 0.0
      %773 = vst.msk [vmem:[#allocation2 + $0x40] sm:$0xff] %vm766, 0.0
      %774 = vst [vmem:[#allocation2 + $0x48] sm:$0xff] 0.0
      %775 = vst [vmem:[#allocation2 + $0x50] sm:$0xff] 0.0
      %776 = vst.msk [vmem:[#allocation2 + $0x58] sm:$0xff] %vm766, 0.0
      %777 = vst [vmem:[#allocation2 + $0x60] sm:$0x1] 0.0
      %778 = vst [vmem:[#allocation2 + $0x68] sm:$0x1] 0.0
      %vm779 = vcmask 57344
      %780 = vst.msk [vmem:[#allocation2 + $0x70] sm:$0x1] %vm779, 0.0
      %v783 = vrot.slane %v704, 7
      %vm784 = vcmask 1040384
      %v785 = vsel %vm784, %v676, %v783
      %v787 = vlaneseq
      %vm788 = vcmp.ge.s32.totalorder %v787, 0
      %vm789 = vcmp.lt.s32.totalorder %v787, 256
      %vm790 = vmand %vm788, %vm789
      %791 = vst.msk [vmem:[#allocation2] ss:$8 sm:$0x3] %vm790, %v785
      %792 = vst.msk [vmem:[#allocation2] ss:$8 sm:$0x0] %vm790, %v785
      %v795 = vrot.slane %v760, 7
      %v796 = vsel %vm784, %v732, %v795
      %s798 = scalar_lea.vmem [#allocation2], 1
      %799 = vst.msk [vmem:[%s798] ss:$8 sm:$0x3] %vm790, %v796
      %800 = vst.msk [vmem:[%s798] ss:$8 sm:$0x0] %vm790, %v796
      %801 = vst [vmem:[#allocation1] sm:$0xff] %v676
      %802 = vst [vmem:[#allocation1 + $0x9] sm:$0xff] %v704
      %s803 = scalar_lea.vmem [#allocation1], 1
      %v804 = vld [vmem:[%s803] ss:$9 sm:$0xff]
      %s806 = scalar_lea.vmem [#allocation2], 2
      %807 = vst.msk [vmem:[%s806] ss:$8 sm:$0x3] %vm790, %v804
      %808 = vst.msk [vmem:[%s806] ss:$8 sm:$0x0] %vm790, %v804
      %809 = vst [vmem:[#allocation1] sm:$0xff] %v732
      %810 = vst [vmem:[#allocation1 + $0x9] sm:$0xff] %v760
      %s811 = scalar_lea.vmem [#allocation1], 1
      %v812 = vld [vmem:[%s811] ss:$9 sm:$0xff]
      %s814 = scalar_lea.vmem [#allocation2], 3
      %815 = vst.msk [vmem:[%s814] ss:$8 sm:$0x3] %vm790, %v812
      %816 = vst.msk [vmem:[%s814] ss:$8 sm:$0x0] %vm790, %v812
      %817 = vst [vmem:[#allocation1] sm:$0xff] %v676
      %818 = vst [vmem:[#allocation1 + $0x9] sm:$0xff] %v704
      %s819 = scalar_lea.vmem [#allocation1], 2
      %v820 = vld [vmem:[%s819] ss:$9 sm:$0xff]
      %s822 = scalar_lea.vmem [#allocation2], 4
      %823 = vst.msk [vmem:[%s822] ss:$8 sm:$0x3] %vm790, %v820
      %824 = vst.msk [vmem:[%s822] ss:$8 sm:$0x0] %vm790, %v820
      %825 = vst [vmem:[#allocation1] sm:$0xff] %v732
      %826 = vst [vmem:[#allocation1 + $0x9] sm:$0xff] %v760
      %s827 = scalar_lea.vmem [#allocation1], 2
      %v828 = vld [vmem:[%s827] ss:$9 sm:$0xff]
      %s830 = scalar_lea.vmem [#allocation2], 5
      %831 = vst.msk [vmem:[%s830] ss:$8 sm:$0x3] %vm790, %v828
      %832 = vst.msk [vmem:[%s830] ss:$8 sm:$0x0] %vm790, %v828
      %833 = vst [vmem:[#allocation1] sm:$0xff] %v676
      %834 = vst [vmem:[#allocation1 + $0x9] sm:$0xff] %v704
      %s835 = scalar_lea.vmem [#allocation1], 3
      %v836 = vld [vmem:[%s835] ss:$9 sm:$0xff]
      %s838 = scalar_lea.vmem [#allocation2], 6
      %839 = vst.msk [vmem:[%s838] ss:$8 sm:$0x3] %vm790, %v836
      %840 = vst.msk [vmem:[%s838] ss:$8 sm:$0x0] %vm790, %v836
      %841 = vst [vmem:[#allocation1] sm:$0xff] %v732
      %842 = vst [vmem:[#allocation1 + $0x9] sm:$0xff] %v760
      %s843 = scalar_lea.vmem [#allocation1], 3
      %v844 = vld [vmem:[%s843] ss:$9 sm:$0xff]
      %s846 = scalar_lea.vmem [#allocation2], 7
      %847 = vst.msk [vmem:[%s846] ss:$8 sm:$0x3] %vm790, %v844
      %848 = vst.msk [vmem:[%s846] ss:$8 sm:$0x0] %vm790, %v844
      %849 = vst [vmem:[#allocation1] sm:$0xff] %v676
      %850 = vst [vmem:[#allocation1 + $0x9] sm:$0xff] %v704
      %s851 = scalar_lea.vmem [#allocation1], 4
      %v852 = vld [vmem:[%s851] ss:$9 sm:$0xff]
      %s854 = scalar_lea.vmem [#allocation2], 24
      %855 = vst.msk [vmem:[%s854] ss:$8 sm:$0x3] %vm790, %v852
      %856 = vst.msk [vmem:[%s854] ss:$8 sm:$0x0] %vm790, %v852
      %857 = vst [vmem:[#allocation1] sm:$0xff] %v732
      %858 = vst [vmem:[#allocation1 + $0x9] sm:$0xff] %v760
      %s859 = scalar_lea.vmem [#allocation1], 4
      %v860 = vld [vmem:[%s859] ss:$9 sm:$0xff]
      %s862 = scalar_lea.vmem [#allocation2], 25
      %863 = vst.msk [vmem:[%s862] ss:$8 sm:$0x3] %vm790, %v860
      %864 = vst.msk [vmem:[%s862] ss:$8 sm:$0x0] %vm790, %v860
      %865 = vst [vmem:[#allocation1] sm:$0xff] %v676
      %866 = vst [vmem:[#allocation1 + $0x9] sm:$0xff] %v704
      %s867 = scalar_lea.vmem [#allocation1], 5
      %v868 = vld [vmem:[%s867] ss:$9 sm:$0xff]
      %s870 = scalar_lea.vmem [#allocation2], 26
      %871 = vst.msk [vmem:[%s870] ss:$8 sm:$0x3] %vm790, %v868
      %872 = vst.msk [vmem:[%s870] ss:$8 sm:$0x0] %vm790, %v868
      %873 = vst [vmem:[#allocation1] sm:$0xff] %v732
      %874 = vst [vmem:[#allocation1 + $0x9] sm:$0xff] %v760
      %s875 = scalar_lea.vmem [#allocation1], 5
      %v876 = vld [vmem:[%s875] ss:$9 sm:$0xff]
      %s878 = scalar_lea.vmem [#allocation2], 27
      %879 = vst.msk [vmem:[%s878] ss:$8 sm:$0x3] %vm790, %v876
      %880 = vst.msk [vmem:[%s878] ss:$8 sm:$0x0] %vm790, %v876
      %881 = vst [vmem:[#allocation1] sm:$0xff] %v676
      %882 = vst [vmem:[#allocation1 + $0x9] sm:$0xff] %v704
      %s883 = scalar_lea.vmem [#allocation1], 6
      %v884 = vld [vmem:[%s883] ss:$9 sm:$0xff]
      %s886 = scalar_lea.vmem [#allocation2], 28
      %887 = vst.msk [vmem:[%s886] ss:$8 sm:$0x3] %vm790, %v884
      %888 = vst.msk [vmem:[%s886] ss:$8 sm:$0x0] %vm790, %v884
      %889 = vst [vmem:[#allocation1] sm:$0xff] %v732
      %890 = vst [vmem:[#allocation1 + $0x9] sm:$0xff] %v760
      %s891 = scalar_lea.vmem [#allocation1], 6
      %v892 = vld [vmem:[%s891] ss:$9 sm:$0xff]
      %s894 = scalar_lea.vmem [#allocation2], 29
      %895 = vst.msk [vmem:[%s894] ss:$8 sm:$0x3] %vm790, %v892
      %896 = vst.msk [vmem:[%s894] ss:$8 sm:$0x0] %vm790, %v892
      %897 = vst [vmem:[#allocation1] sm:$0xff] %v676
      %898 = vst [vmem:[#allocation1 + $0x9] sm:$0xff] %v704
      %s899 = scalar_lea.vmem [#allocation1], 7
      %v900 = vld [vmem:[%s899] ss:$9 sm:$0xff]
      %s902 = scalar_lea.vmem [#allocation2], 30
      %903 = vst.msk [vmem:[%s902] ss:$8 sm:$0x3] %vm790, %v900
      %904 = vst.msk [vmem:[%s902] ss:$8 sm:$0x0] %vm790, %v900
      %905 = vst [vmem:[#allocation1] sm:$0xff] %v732
      %906 = vst [vmem:[#allocation1 + $0x9] sm:$0xff] %v760
      %s907 = scalar_lea.vmem [#allocation1], 7
      %v908 = vld [vmem:[%s907] ss:$9 sm:$0xff]
      %s910 = scalar_lea.vmem [#allocation2], 31
      %911 = vst.msk [vmem:[%s910] ss:$8 sm:$0x3] %vm790, %v908
      %912 = vst.msk [vmem:[%s910] ss:$8 sm:$0x0] %vm790, %v908
      %v915 = vrot.slane %v706, 7
      %v916 = vsel %vm784, %v678, %v915
      %s918 = scalar_lea.vmem [#allocation2], 48
      %919 = vst.msk [vmem:[%s918] ss:$8 sm:$0x3] %vm790, %v916
      %920 = vst.msk [vmem:[%s918] ss:$8 sm:$0x0] %vm790, %v916
      %v923 = vrot.slane %v762, 7
      %v924 = vsel %vm784, %v734, %v923
      %s926 = scalar_lea.vmem [#allocation2], 49
      %927 = vst.msk [vmem:[%s926] ss:$8 sm:$0x3] %vm790, %v924
      %928 = vst.msk [vmem:[%s926] ss:$8 sm:$0x0] %vm790, %v924
      %929 = vst [vmem:[#allocation1] sm:$0xff] %v678
      %930 = vst [vmem:[#allocation1 + $0x9] sm:$0xff] %v706
      %s931 = scalar_lea.vmem [#allocation1], 1
      %v932 = vld [vmem:[%s931] ss:$9 sm:$0xff]
      %s934 = scalar_lea.vmem [#allocation2], 50
      %935 = vst.msk [vmem:[%s934] ss:$8 sm:$0x3] %vm790, %v932
      %936 = vst.msk [vmem:[%s934] ss:$8 sm:$0x0] %vm790, %v932
      %937 = vst [vmem:[#allocation1] sm:$0xff] %v734
      %938 = vst [vmem:[#allocation1 + $0x9] sm:$0xff] %v762
      %s939 = scalar_lea.vmem [#allocation1], 1
      %v940 = vld [vmem:[%s939] ss:$9 sm:$0xff]
      %s942 = scalar_lea.vmem [#allocation2], 51
      %943 = vst.msk [vmem:[%s942] ss:$8 sm:$0x3] %vm790, %v940
      %944 = vst.msk [vmem:[%s942] ss:$8 sm:$0x0] %vm790, %v940
      %945 = vst [vmem:[#allocation1] sm:$0xff] %v678
      %946 = vst [vmem:[#allocation1 + $0x9] sm:$0xff] %v706
      %s947 = scalar_lea.vmem [#allocation1], 2
      %v948 = vld [vmem:[%s947] ss:$9 sm:$0xff]
      %s950 = scalar_lea.vmem [#allocation2], 52
      %951 = vst.msk [vmem:[%s950] ss:$8 sm:$0x3] %vm790, %v948
      %952 = vst.msk [vmem:[%s950] ss:$8 sm:$0x0] %vm790, %v948
      %953 = vst [vmem:[#allocation1] sm:$0xff] %v734
      %954 = vst [vmem:[#allocation1 + $0x9] sm:$0xff] %v762
      %s955 = scalar_lea.vmem [#allocation1], 2
      %v956 = vld [vmem:[%s955] ss:$9 sm:$0xff]
      %s958 = scalar_lea.vmem [#allocation2], 53
      %959 = vst.msk [vmem:[%s958] ss:$8 sm:$0x3] %vm790, %v956
      %960 = vst.msk [vmem:[%s958] ss:$8 sm:$0x0] %vm790, %v956
      %961 = vst [vmem:[#allocation1] sm:$0xff] %v678
      %962 = vst [vmem:[#allocation1 + $0x9] sm:$0xff] %v706
      %s963 = scalar_lea.vmem [#allocation1], 3
      %v964 = vld [vmem:[%s963] ss:$9 sm:$0xff]
      %s966 = scalar_lea.vmem [#allocation2], 54
      %967 = vst.msk [vmem:[%s966] ss:$8 sm:$0x3] %vm790, %v964
      %968 = vst.msk [vmem:[%s966] ss:$8 sm:$0x0] %vm790, %v964
      %969 = vst [vmem:[#allocation1] sm:$0xff] %v734
      %970 = vst [vmem:[#allocation1 + $0x9] sm:$0xff] %v762
      %s971 = scalar_lea.vmem [#allocation1], 3
      %v972 = vld [vmem:[%s971] ss:$9 sm:$0xff]
      %s974 = scalar_lea.vmem [#allocation2], 55
      %975 = vst.msk [vmem:[%s974] ss:$8 sm:$0x3] %vm790, %v972
      %976 = vst.msk [vmem:[%s974] ss:$8 sm:$0x0] %vm790, %v972
      %977 = vst [vmem:[#allocation1] sm:$0xff] %v678
      %978 = vst [vmem:[#allocation1 + $0x9] sm:$0xff] %v706
      %s979 = scalar_lea.vmem [#allocation1], 4
      %v980 = vld [vmem:[%s979] ss:$9 sm:$0xff]
      %s982 = scalar_lea.vmem [#allocation2], 72
      %983 = vst.msk [vmem:[%s982] ss:$8 sm:$0x3] %vm790, %v980
      %984 = vst.msk [vmem:[%s982] ss:$8 sm:$0x0] %vm790, %v980
      %985 = vst [vmem:[#allocation1] sm:$0xff] %v734
      %986 = vst [vmem:[#allocation1 + $0x9] sm:$0xff] %v762
      %s987 = scalar_lea.vmem [#allocation1], 4
      %v988 = vld [vmem:[%s987] ss:$9 sm:$0xff]
      %s990 = scalar_lea.vmem [#allocation2], 73
      %991 = vst.msk [vmem:[%s990] ss:$8 sm:$0x3] %vm790, %v988
      %992 = vst.msk [vmem:[%s990] ss:$8 sm:$0x0] %vm790, %v988
      %993 = vst [vmem:[#allocation1] sm:$0xff] %v678
      %994 = vst [vmem:[#allocation1 + $0x9] sm:$0xff] %v706
      %s995 = scalar_lea.vmem [#allocation1], 5
      %v996 = vld [vmem:[%s995] ss:$9 sm:$0xff]
      %s998 = scalar_lea.vmem [#allocation2], 74
      %999 = vst.msk [vmem:[%s998] ss:$8 sm:$0x3] %vm790, %v996
      %1000 = vst.msk [vmem:[%s998] ss:$8 sm:$0x0] %vm790, %v996
      %1001 = vst [vmem:[#allocation1] sm:$0xff] %v734
      %1002 = vst [vmem:[#allocation1 + $0x9] sm:$0xff] %v762
      %s1003 = scalar_lea.vmem [#allocation1], 5
      %v1004 = vld [vmem:[%s1003] ss:$9 sm:$0xff]
      %s1006 = scalar_lea.vmem [#allocation2], 75
      %1007 = vst.msk [vmem:[%s1006] ss:$8 sm:$0x3] %vm790, %v1004
      %1008 = vst.msk [vmem:[%s1006] ss:$8 sm:$0x0] %vm790, %v1004
      %1009 = vst [vmem:[#allocation1] sm:$0xff] %v678
      %1010 = vst [vmem:[#allocation1 + $0x9] sm:$0xff] %v706
      %s1011 = scalar_lea.vmem [#allocation1], 6
      %v1012 = vld [vmem:[%s1011] ss:$9 sm:$0xff]
      %s1014 = scalar_lea.vmem [#allocation2], 76
      %1015 = vst.msk [vmem:[%s1014] ss:$8 sm:$0x3] %vm790, %v1012
      %1016 = vst.msk [vmem:[%s1014] ss:$8 sm:$0x0] %vm790, %v1012
      %1017 = vst [vmem:[#allocation1] sm:$0xff] %v734
      %1018 = vst [vmem:[#allocation1 + $0x9] sm:$0xff] %v762
      %s1019 = scalar_lea.vmem [#allocation1], 6
      %v1020 = vld [vmem:[%s1019] ss:$9 sm:$0xff]
      %s1022 = scalar_lea.vmem [#allocation2], 77
      %1023 = vst.msk [vmem:[%s1022] ss:$8 sm:$0x3] %vm790, %v1020
      %1024 = vst.msk [vmem:[%s1022] ss:$8 sm:$0x0] %vm790, %v1020
      %1025 = vst [vmem:[#allocation1] sm:$0xff] %v678
      %1026 = vst [vmem:[#allocation1 + $0x9] sm:$0xff] %v706
      %s1027 = scalar_lea.vmem [#allocation1], 7
      %v1028 = vld [vmem:[%s1027] ss:$9 sm:$0xff]
      %s1030 = scalar_lea.vmem [#allocation2], 78
      %1031 = vst.msk [vmem:[%s1030] ss:$8 sm:$0x3] %vm790, %v1028
      %1032 = vst.msk [vmem:[%s1030] ss:$8 sm:$0x0] %vm790, %v1028
      %1033 = vst [vmem:[#allocation1] sm:$0xff] %v734
      %1034 = vst [vmem:[#allocation1 + $0x9] sm:$0xff] %v762
      %s1035 = scalar_lea.vmem [#allocation1], 7
      %v1036 = vld [vmem:[%s1035] ss:$9 sm:$0xff]
      %s1038 = scalar_lea.vmem [#allocation2], 79
      %1039 = vst.msk [vmem:[%s1038] ss:$8 sm:$0x3] %vm790, %v1036
      %1040 = vst.msk [vmem:[%s1038] ss:$8 sm:$0x0] %vm790, %v1036
      %v1041 = vld [vmem:[#allocation2] sm:$0xff]
      %v1042 = vld [vmem:[#allocation2 + $0x8] sm:$0xff]
      %v1043 = vld [vmem:[#allocation2 + $0x10] sm:$0xff]
      %v1044 = vld [vmem:[#allocation2 + $0x18] sm:$0xff]
      %v1045 = vld [vmem:[#allocation2 + $0x20] sm:$0xff]
      %v1046 = vld [vmem:[#allocation2 + $0x28] sm:$0xff]
      %v1047 = vld [vmem:[#allocation2 + $0x30] sm:$0xff]
      %v1048 = vld [vmem:[#allocation2 + $0x38] sm:$0xff]
      %v1049 = vld [vmem:[#allocation2 + $0x40] sm:$0xff]
      %v1050 = vld [vmem:[#allocation2 + $0x48] sm:$0xff]
      %v1051 = vld [vmem:[#allocation2 + $0x50] sm:$0xff]
      %v1052 = vld [vmem:[#allocation2 + $0x58] sm:$0xff]
      %v1053 = vld [vmem:[#allocation2 + $0x60] sm:$0x1]
      %v1054 = vld [vmem:[#allocation2 + $0x68] sm:$0x1]
      %v1055 = vld [vmem:[#allocation2 + $0x70] sm:$0x1]
      %1068 = vrot.lane.b32.xlu0 %v1041, 120
      %v1069 = vpop.permute.xlu0 %1068
      %1070 = vrot.lane.b32.xlu0 %v1042, 120
      %v1071 = vpop.permute.xlu0 %1070
      %1072 = vrot.lane.b32.xlu0 %v1043, 120
      %v1073 = vpop.permute.xlu0 %1072
      %1074 = vrot.lane.b32.xlu0 %v1044, 120
      %v1075 = vpop.permute.xlu0 %1074
      %1076 = vrot.lane.b32.xlu0 %v1045, 120
      %v1077 = vpop.permute.xlu0 %1076
      %1078 = vrot.lane.b32.xlu0 %v1046, 120
      %v1079 = vpop.permute.xlu0 %1078
      %1080 = vrot.lane.b32.xlu0 %v1047, 120
      %v1081 = vpop.permute.xlu0 %1080
      %1082 = vrot.lane.b32.xlu0 %v1048, 120
      %v1083 = vpop.permute.xlu0 %1082
      %1084 = vrot.lane.b32.xlu0 %v1049, 120
      %v1085 = vpop.permute.xlu0 %1084
      %1086 = vrot.lane.b32.xlu0 %v1050, 120
      %v1087 = vpop.permute.xlu0 %1086
      %1088 = vrot.lane.b32.xlu0 %v1051, 120
      %v1089 = vpop.permute.xlu0 %1088
      %1090 = vrot.lane.b32.xlu0 %v1052, 120
      %v1091 = vpop.permute.xlu0 %1090
      %vm1092 = vcmask 982016
      %v1093 = vsel %vm1092, %v1069, %v1071
      %v1094 = vsel %vm1092, %v1071, %v1073
      %v1095 = vsel %vm1092, %v1075, %v1077
      %v1096 = vsel %vm1092, %v1077, %v1079
      %v1097 = vsel %vm1092, %v1081, %v1083
      %v1098 = vsel %vm1092, %v1083, %v1085
      %v1099 = vsel %vm1092, %v1087, %v1089
      %v1100 = vsel %vm1092, %v1089, %v1091
      %v1111 = vrot.slane %v1041, 1
      %v1112 = vrot.slane %v1044, 1
      %v1113 = vsel %vm237, %v1111, %v1112
      %v1114 = vrot.slane %v1042, 1
      %v1115 = vrot.slane %v1045, 1
      %v1116 = vsel %vm237, %v1114, %v1115
      %v1117 = vrot.slane %v1047, 1
      %v1118 = vsel %vm237, %v1112, %v1117
      %v1119 = vrot.slane %v1048, 1
      %v1120 = vsel %vm237, %v1115, %v1119
      %v1121 = vrot.slane %v1050, 1
      %v1122 = vsel %vm237, %v1117, %v1121
      %v1123 = vrot.slane %v1051, 1
      %v1124 = vsel %vm237, %v1119, %v1123
      %v1125 = vrot.slane %v1053, 1
      %v1126 = vsel %vm237, %v1121, %v1125
      %v1127 = vrot.slane %v1054, 1
      %v1128 = vsel %vm237, %v1123, %v1127
      %v1138 = vrot.slane %v1043, 1
      %v1139 = vrot.slane %v1046, 1
      %v1140 = vsel %vm237, %v1138, %v1139
      %v1141 = vrot.slane %v1049, 1
      %v1142 = vsel %vm237, %v1139, %v1141
      %v1143 = vrot.slane %v1052, 1
      %v1144 = vsel %vm237, %v1141, %v1143
      %v1145 = vrot.slane %v1055, 1
      %v1146 = vsel %vm237, %v1143, %v1145
      %1147 = vrot.lane.b32.xlu0 %v1113, 120
      %v1148 = vpop.permute.xlu0 %1147
      %1149 = vrot.lane.b32.xlu0 %v1116, 120
      %v1150 = vpop.permute.xlu0 %1149
      %1151 = vrot.lane.b32.xlu0 %v1140, 120
      %v1152 = vpop.permute.xlu0 %1151
      %1153 = vrot.lane.b32.xlu0 %v1118, 120
      %v1154 = vpop.permute.xlu0 %1153
      %1155 = vrot.lane.b32.xlu0 %v1120, 120
      %v1156 = vpop.permute.xlu0 %1155
      %1157 = vrot.lane.b32.xlu0 %v1142, 120
      %v1158 = vpop.permute.xlu0 %1157
      %1159 = vrot.lane.b32.xlu0 %v1122, 120
      %v1160 = vpop.permute.xlu0 %1159
      %1161 = vrot.lane.b32.xlu0 %v1124, 120
      %v1162 = vpop.permute.xlu0 %1161
      %1163 = vrot.lane.b32.xlu0 %v1144, 120
      %v1164 = vpop.permute.xlu0 %1163
      %1165 = vrot.lane.b32.xlu0 %v1126, 120
      %v1166 = vpop.permute.xlu0 %1165
      %1167 = vrot.lane.b32.xlu0 %v1128, 120
      %v1168 = vpop.permute.xlu0 %1167
      %1169 = vrot.lane.b32.xlu0 %v1146, 120
      %v1170 = vpop.permute.xlu0 %1169
      %v1171 = vsel %vm1092, %v1148, %v1150
      %v1172 = vsel %vm1092, %v1150, %v1152
      %v1173 = vsel %vm1092, %v1154, %v1156
      %v1174 = vsel %vm1092, %v1156, %v1158
      %v1175 = vsel %vm1092, %v1160, %v1162
      %v1176 = vsel %vm1092, %v1162, %v1164
      %v1177 = vsel %vm1092, %v1166, %v1168
      %v1178 = vsel %vm1092, %v1168, %v1170
      %v1187 = vpack.c.bf16 %v1044, %v1041
      %v1188 = vpack.c.bf16 %v1045, %v1042
      %v1189 = vpack.c.bf16 %v1095, %v1093
      %v1190 = vpack.c.bf16 %v1096, %v1094
      %v1191 = vpack.c.bf16 %v1118, %v1113
      %v1192 = vpack.c.bf16 %v1120, %v1116
      %v1193 = vpack.c.bf16 %v1173, %v1171
      %v1194 = vpack.c.bf16 %v1174, %v1172
      %v1195 = vpack.c.bf16 %v1050, %v1047
      %v1196 = vpack.c.bf16 %v1051, %v1048
      %v1197 = vpack.c.bf16 %v1099, %v1097
      %v1198 = vpack.c.bf16 %v1100, %v1098
      %v1199 = vpack.c.bf16 %v1126, %v1122
      %v1200 = vpack.c.bf16 %v1128, %v1124
      %v1201 = vpack.c.bf16 %v1177, %v1175
      %v1202 = vpack.c.bf16 %v1178, %v1176
      %v1203 = vld [vmem:[%s3] sm:$0xff]
      %v1204 = vld [vmem:[%s3 + $0x8] sm:$0xff]
      %v1205 = vld [vmem:[%s3 + $0x10] sm:$0xff]
      %v1206 = vld [vmem:[%s3 + $0x18] sm:$0xff]
      %v1207 = vld [vmem:[%s3 + $0x20] sm:$0xff]
      %v1208 = vld [vmem:[%s3 + $0x28] sm:$0xff]
      %v1209 = vld [vmem:[%s3 + $0x30] sm:$0xff]
      %v1210 = vld [vmem:[%s3 + $0x38] sm:$0xff]
      %v1211 = vld [vmem:[%s3 + $0x40] sm:$0xff]
      %v1212 = vld [vmem:[%s3 + $0x48] sm:$0xff]
      %v1213 = vld [vmem:[%s3 + $0x50] sm:$0xff]
      %v1214 = vld [vmem:[%s3 + $0x58] sm:$0xff]
      %v1215 = vld [vmem:[%s3 + $0x60] sm:$0xff]
      %v1216 = vld [vmem:[%s3 + $0x68] sm:$0xff]
      %v1217 = vld [vmem:[%s3 + $0x70] sm:$0xff]
      %v1218 = vld [vmem:[%s3 + $0x78] sm:$0xff]
      %v1219 = vld [vmem:[%s3 + $0x80] sm:$0xff]
      %v1220 = vld [vmem:[%s3 + $0x88] sm:$0xff]
      %v1221 = vld [vmem:[%s3 + $0x90] sm:$0xff]
      %v1222 = vld [vmem:[%s3 + $0x98] sm:$0xff]
      %v1223 = vld [vmem:[%s3 + $0xa0] sm:$0xff]
      %v1224 = vld [vmem:[%s3 + $0xa8] sm:$0xff]
      %v1225 = vld [vmem:[%s3 + $0xb0] sm:$0xff]
      %v1226 = vld [vmem:[%s3 + $0xb8] sm:$0xff]
      %v1227 = vld [vmem:[%s3 + $0xc0] sm:$0xff]
      %v1228 = vld [vmem:[%s3 + $0xc8] sm:$0xff]
      %v1229 = vld [vmem:[%s3 + $0xd0] sm:$0xff]
      %v1230 = vld [vmem:[%s3 + $0xd8] sm:$0xff]
      %v1231 = vld [vmem:[%s3 + $0xe0] sm:$0xff]
      %v1232 = vld [vmem:[%s3 + $0xe8] sm:$0xff]
      %v1233 = vld [vmem:[%s3 + $0xf0] sm:$0xff]
      %v1234 = vld [vmem:[%s3 + $0xf8] sm:$0xff]
      %v1235 = vld [vmem:[%s3 + $0x100] sm:$0xff]
      %v1236 = vld [vmem:[%s3 + $0x108] sm:$0xff]
      %v1237 = vld [vmem:[%s3 + $0x110] sm:$0xff]
      %v1238 = vld [vmem:[%s3 + $0x118] sm:$0xff]
      %v1239 = vld [vmem:[%s3 + $0x120] sm:$0xff]
      %v1240 = vld [vmem:[%s3 + $0x128] sm:$0xff]
      %v1241 = vld [vmem:[%s3 + $0x130] sm:$0xff]
      %v1242 = vld [vmem:[%s3 + $0x138] sm:$0xff]
      %v1243 = vld [vmem:[%s3 + $0x140] sm:$0xff]
      %v1244 = vld [vmem:[%s3 + $0x148] sm:$0xff]
      %v1245 = vld [vmem:[%s3 + $0x150] sm:$0xff]
      %v1246 = vld [vmem:[%s3 + $0x158] sm:$0xff]
      %v1247 = vld [vmem:[%s3 + $0x160] sm:$0xff]
      %v1248 = vld [vmem:[%s3 + $0x168] sm:$0xff]
      %v1249 = vld [vmem:[%s3 + $0x170] sm:$0xff]
      %v1250 = vld [vmem:[%s3 + $0x178] sm:$0xff]
      %v1251 = vld [vmem:[%s3 + $0x180] sm:$0xff]
      %v1252 = vld [vmem:[%s3 + $0x188] sm:$0xff]
      %v1253 = vld [vmem:[%s3 + $0x190] sm:$0xff]
      %v1254 = vld [vmem:[%s3 + $0x198] sm:$0xff]
      %v1255 = vld [vmem:[%s3 + $0x1a0] sm:$0xff]
      %v1256 = vld [vmem:[%s3 + $0x1a8] sm:$0xff]
      %v1257 = vld [vmem:[%s3 + $0x1b0] sm:$0xff]
      %v1258 = vld [vmem:[%s3 + $0x1b8] sm:$0xff]
      %v1259 = vld [vmem:[%s3 + $0x1c0] sm:$0xff]
      %v1260 = vld [vmem:[%s3 + $0x1c8] sm:$0xff]
      %v1261 = vld [vmem:[%s3 + $0x1d0] sm:$0xff]
      %v1262 = vld [vmem:[%s3 + $0x1d8] sm:$0xff]
      %v1263 = vld [vmem:[%s3 + $0x1e0] sm:$0xff]
      %v1264 = vld [vmem:[%s3 + $0x1e8] sm:$0xff]
      %v1265 = vld [vmem:[%s3 + $0x1f0] sm:$0xff]
      %v1266 = vld [vmem:[%s3 + $0x1f8] sm:$0xff]
      %v1267 = vld [vmem:[%s3 + $0x200] sm:$0xff]
      %v1268 = vld [vmem:[%s3 + $0x208] sm:$0xff]
      %v1269 = vld [vmem:[%s3 + $0x210] sm:$0xff]
      %v1270 = vld [vmem:[%s3 + $0x218] sm:$0xff]
      %v1271 = vld [vmem:[%s3 + $0x220] sm:$0xff]
      %v1272 = vld [vmem:[%s3 + $0x228] sm:$0xff]
      %v1273 = vld [vmem:[%s3 + $0x230] sm:$0xff]
      %v1274 = vld [vmem:[%s3 + $0x238] sm:$0xff]
      %v1275 = vld [vmem:[%s3 + $0x240] sm:$0xff]
      %v1276 = vld [vmem:[%s3 + $0x248] sm:$0xff]
      %v1277 = vld [vmem:[%s3 + $0x250] sm:$0xff]
      %v1278 = vld [vmem:[%s3 + $0x258] sm:$0xff]
      %v1279 = vld [vmem:[%s3 + $0x260] sm:$0xff]
      %v1280 = vld [vmem:[%s3 + $0x268] sm:$0xff]
      %v1281 = vld [vmem:[%s3 + $0x270] sm:$0xff]
      %v1282 = vld [vmem:[%s3 + $0x278] sm:$0xff]
      %v1283 = vld [vmem:[%s3 + $0x280] sm:$0xff]
      %v1284 = vld [vmem:[%s3 + $0x288] sm:$0xff]
      %v1285 = vld [vmem:[%s3 + $0x290] sm:$0xff]
      %v1286 = vld [vmem:[%s3 + $0x298] sm:$0xff]
      %v1287 = vld [vmem:[%s3 + $0x2a0] sm:$0xff]
      %v1288 = vld [vmem:[%s3 + $0x2a8] sm:$0xff]
      %v1289 = vld [vmem:[%s3 + $0x2b0] sm:$0xff]
      %v1290 = vld [vmem:[%s3 + $0x2b8] sm:$0xff]
      %v1291 = vld [vmem:[%s3 + $0x2c0] sm:$0xff]
      %v1292 = vld [vmem:[%s3 + $0x2c8] sm:$0xff]
      %v1293 = vld [vmem:[%s3 + $0x2d0] sm:$0xff]
      %v1294 = vld [vmem:[%s3 + $0x2d8] sm:$0xff]
      %v1295 = vld [vmem:[%s3 + $0x2e0] sm:$0xff]
      %v1296 = vld [vmem:[%s3 + $0x2e8] sm:$0xff]
      %v1297 = vld [vmem:[%s3 + $0x2f0] sm:$0xff]
      %v1298 = vld [vmem:[%s3 + $0x2f8] sm:$0xff]
      %v1299 = vld [vmem:[%s3 + $0x300] sm:$0xff]
      %v1300 = vld [vmem:[%s3 + $0x308] sm:$0xff]
      %v1301 = vld [vmem:[%s3 + $0x310] sm:$0xff]
      %v1302 = vld [vmem:[%s3 + $0x318] sm:$0xff]
      %v1303 = vld [vmem:[%s3 + $0x320] sm:$0xff]
      %v1304 = vld [vmem:[%s3 + $0x328] sm:$0xff]
      %v1305 = vld [vmem:[%s3 + $0x330] sm:$0xff]
      %v1306 = vld [vmem:[%s3 + $0x338] sm:$0xff]
      %v1307 = vld [vmem:[%s3 + $0x340] sm:$0xff]
      %v1308 = vld [vmem:[%s3 + $0x348] sm:$0xff]
      %v1309 = vld [vmem:[%s3 + $0x350] sm:$0xff]
      %v1310 = vld [vmem:[%s3 + $0x358] sm:$0xff]
      %v1311 = vld [vmem:[%s3 + $0x360] sm:$0xff]
      %v1312 = vld [vmem:[%s3 + $0x368] sm:$0xff]
      %v1313 = vld [vmem:[%s3 + $0x370] sm:$0xff]
      %v1314 = vld [vmem:[%s3 + $0x378] sm:$0xff]
      %v1315 = vld [vmem:[%s3 + $0x380] sm:$0xff]
      %v1316 = vld [vmem:[%s3 + $0x388] sm:$0xff]
      %v1317 = vld [vmem:[%s3 + $0x390] sm:$0xff]
      %v1318 = vld [vmem:[%s3 + $0x398] sm:$0xff]
      %v1319 = vld [vmem:[%s3 + $0x3a0] sm:$0xff]
      %v1320 = vld [vmem:[%s3 + $0x3a8] sm:$0xff]
      %v1321 = vld [vmem:[%s3 + $0x3b0] sm:$0xff]
      %v1322 = vld [vmem:[%s3 + $0x3b8] sm:$0xff]
      %v1323 = vld [vmem:[%s3 + $0x3c0] sm:$0xff]
      %v1324 = vld [vmem:[%s3 + $0x3c8] sm:$0xff]
      %v1325 = vld [vmem:[%s3 + $0x3d0] sm:$0xff]
      %v1326 = vld [vmem:[%s3 + $0x3d8] sm:$0xff]
      %v1327 = vld [vmem:[%s3 + $0x3e0] sm:$0xff]
      %v1328 = vld [vmem:[%s3 + $0x3e8] sm:$0xff]
      %v1329 = vld [vmem:[%s3 + $0x3f0] sm:$0xff]
      %v1330 = vld [vmem:[%s3 + $0x3f8] sm:$0xff]
      %v1331 = vld [vmem:[%s3 + $0x400] sm:$0xff]
      %v1332 = vld [vmem:[%s3 + $0x408] sm:$0xff]
      %v1333 = vld [vmem:[%s3 + $0x410] sm:$0xff]
      %v1334 = vld [vmem:[%s3 + $0x418] sm:$0xff]
      %v1335 = vld [vmem:[%s3 + $0x420] sm:$0xff]
      %v1336 = vld [vmem:[%s3 + $0x428] sm:$0xff]
      %v1337 = vld [vmem:[%s3 + $0x430] sm:$0xff]
      %v1338 = vld [vmem:[%s3 + $0x438] sm:$0xff]
      %v1339 = vld [vmem:[%s3 + $0x440] sm:$0xff]
      %v1340 = vld [vmem:[%s3 + $0x448] sm:$0xff]
      %v1341 = vld [vmem:[%s3 + $0x450] sm:$0xff]
      %v1342 = vld [vmem:[%s3 + $0x458] sm:$0xff]
      %v1343 = vld [vmem:[%s3 + $0x460] sm:$0xff]
      %v1344 = vld [vmem:[%s3 + $0x468] sm:$0xff]
      %v1345 = vld [vmem:[%s3 + $0x470] sm:$0xff]
      %v1346 = vld [vmem:[%s3 + $0x478] sm:$0xff]
      %v1347 = vld [vmem:[%s3 + $0x480] sm:$0xff]
      %v1348 = vld [vmem:[%s3 + $0x488] sm:$0xff]
      %v1349 = vld [vmem:[%s3 + $0x490] sm:$0xff]
      %v1350 = vld [vmem:[%s3 + $0x498] sm:$0xff]
      %v1351 = vld [vmem:[%s3 + $0x4a0] sm:$0xff]
      %v1352 = vld [vmem:[%s3 + $0x4a8] sm:$0xff]
      %v1353 = vld [vmem:[%s3 + $0x4b0] sm:$0xff]
      %v1354 = vld [vmem:[%s3 + $0x4b8] sm:$0xff]
      %v1355 = vld [vmem:[%s3 + $0x4c0] sm:$0xff]
      %v1356 = vld [vmem:[%s3 + $0x4c8] sm:$0xff]
      %v1357 = vld [vmem:[%s3 + $0x4d0] sm:$0xff]
      %v1358 = vld [vmem:[%s3 + $0x4d8] sm:$0xff]
      %v1359 = vld [vmem:[%s3 + $0x4e0] sm:$0xff]
      %v1360 = vld [vmem:[%s3 + $0x4e8] sm:$0xff]
      %v1361 = vld [vmem:[%s3 + $0x4f0] sm:$0xff]
      %v1362 = vld [vmem:[%s3 + $0x4f8] sm:$0xff]
      %v1363 = vld [vmem:[%s3 + $0x500] sm:$0xff]
      %v1364 = vld [vmem:[%s3 + $0x508] sm:$0xff]
      %v1365 = vld [vmem:[%s3 + $0x510] sm:$0xff]
      %v1366 = vld [vmem:[%s3 + $0x518] sm:$0xff]
      %v1367 = vld [vmem:[%s3 + $0x520] sm:$0xff]
      %v1368 = vld [vmem:[%s3 + $0x528] sm:$0xff]
      %v1369 = vld [vmem:[%s3 + $0x530] sm:$0xff]
      %v1370 = vld [vmem:[%s3 + $0x538] sm:$0xff]
      %v1371 = vld [vmem:[%s3 + $0x540] sm:$0xff]
      %v1372 = vld [vmem:[%s3 + $0x548] sm:$0xff]
      %v1373 = vld [vmem:[%s3 + $0x550] sm:$0xff]
      %v1374 = vld [vmem:[%s3 + $0x558] sm:$0xff]
      %v1375 = vld [vmem:[%s3 + $0x560] sm:$0xff]
      %v1376 = vld [vmem:[%s3 + $0x568] sm:$0xff]
      %v1377 = vld [vmem:[%s3 + $0x570] sm:$0xff]
      %v1378 = vld [vmem:[%s3 + $0x578] sm:$0xff]
      %v1379 = vld [vmem:[%s3 + $0x580] sm:$0xff]
      %v1380 = vld [vmem:[%s3 + $0x588] sm:$0xff]
      %v1381 = vld [vmem:[%s3 + $0x590] sm:$0xff]
      %v1382 = vld [vmem:[%s3 + $0x598] sm:$0xff]
      %v1383 = vld [vmem:[%s3 + $0x5a0] sm:$0xff]
      %v1384 = vld [vmem:[%s3 + $0x5a8] sm:$0xff]
      %v1385 = vld [vmem:[%s3 + $0x5b0] sm:$0xff]
      %v1386 = vld [vmem:[%s3 + $0x5b8] sm:$0xff]
      %v1387 = vld [vmem:[%s3 + $0x5c0] sm:$0xff]
      %v1388 = vld [vmem:[%s3 + $0x5c8] sm:$0xff]
      %v1389 = vld [vmem:[%s3 + $0x5d0] sm:$0xff]
      %v1390 = vld [vmem:[%s3 + $0x5d8] sm:$0xff]
      %v1391 = vld [vmem:[%s3 + $0x5e0] sm:$0xff]
      %v1392 = vld [vmem:[%s3 + $0x5e8] sm:$0xff]
      %v1393 = vld [vmem:[%s3 + $0x5f0] sm:$0xff]
      %v1394 = vld [vmem:[%s3 + $0x5f8] sm:$0xff]
      %v1395 = vld [vmem:[%s3 + $0x600] sm:$0xff]
      %v1396 = vld [vmem:[%s3 + $0x608] sm:$0xff]
      %v1397 = vld [vmem:[%s3 + $0x610] sm:$0xff]
      %v1398 = vld [vmem:[%s3 + $0x618] sm:$0xff]
      %v1399 = vld [vmem:[%s3 + $0x620] sm:$0xff]
      %v1400 = vld [vmem:[%s3 + $0x628] sm:$0xff]
      %v1401 = vld [vmem:[%s3 + $0x630] sm:$0xff]
      %v1402 = vld [vmem:[%s3 + $0x638] sm:$0xff]
      %v1403 = vld [vmem:[%s3 + $0x640] sm:$0xff]
      %v1404 = vld [vmem:[%s3 + $0x648] sm:$0xff]
      %v1405 = vld [vmem:[%s3 + $0x650] sm:$0xff]
      %v1406 = vld [vmem:[%s3 + $0x658] sm:$0xff]
      %v1407 = vld [vmem:[%s3 + $0x660] sm:$0xff]
      %v1408 = vld [vmem:[%s3 + $0x668] sm:$0xff]
      %v1409 = vld [vmem:[%s3 + $0x670] sm:$0xff]
      %v1410 = vld [vmem:[%s3 + $0x678] sm:$0xff]
      %v1411 = vld [vmem:[%s3 + $0x680] sm:$0xff]
      %v1412 = vld [vmem:[%s3 + $0x688] sm:$0xff]
      %v1413 = vld [vmem:[%s3 + $0x690] sm:$0xff]
      %v1414 = vld [vmem:[%s3 + $0x698] sm:$0xff]
      %v1415 = vld [vmem:[%s3 + $0x6a0] sm:$0xff]
      %v1416 = vld [vmem:[%s3 + $0x6a8] sm:$0xff]
      %v1417 = vld [vmem:[%s3 + $0x6b0] sm:$0xff]
      %v1418 = vld [vmem:[%s3 + $0x6b8] sm:$0xff]
      %v1419 = vld [vmem:[%s3 + $0x6c0] sm:$0xff]
      %v1420 = vld [vmem:[%s3 + $0x6c8] sm:$0xff]
      %v1421 = vld [vmem:[%s3 + $0x6d0] sm:$0xff]
      %v1422 = vld [vmem:[%s3 + $0x6d8] sm:$0xff]
      %v1423 = vld [vmem:[%s3 + $0x6e0] sm:$0xff]
      %v1424 = vld [vmem:[%s3 + $0x6e8] sm:$0xff]
      %v1425 = vld [vmem:[%s3 + $0x6f0] sm:$0xff]
      %v1426 = vld [vmem:[%s3 + $0x6f8] sm:$0xff]
      %v1427 = vld [vmem:[%s3 + $0x700] sm:$0xff]
      %v1428 = vld [vmem:[%s3 + $0x708] sm:$0xff]
      %v1429 = vld [vmem:[%s3 + $0x710] sm:$0xff]
      %v1430 = vld [vmem:[%s3 + $0x718] sm:$0xff]
      %v1431 = vld [vmem:[%s3 + $0x720] sm:$0xff]
      %v1432 = vld [vmem:[%s3 + $0x728] sm:$0xff]
      %v1433 = vld [vmem:[%s3 + $0x730] sm:$0xff]
      %v1434 = vld [vmem:[%s3 + $0x738] sm:$0xff]
      %v1435 = vld [vmem:[%s3 + $0x740] sm:$0xff]
      %v1436 = vld [vmem:[%s3 + $0x748] sm:$0xff]
      %v1437 = vld [vmem:[%s3 + $0x750] sm:$0xff]
      %v1438 = vld [vmem:[%s3 + $0x758] sm:$0xff]
      %v1439 = vld [vmem:[%s3 + $0x760] sm:$0xff]
      %v1440 = vld [vmem:[%s3 + $0x768] sm:$0xff]
      %v1441 = vld [vmem:[%s3 + $0x770] sm:$0xff]
      %v1442 = vld [vmem:[%s3 + $0x778] sm:$0xff]
      %v1443 = vld [vmem:[%s3 + $0x780] sm:$0xff]
      %v1444 = vld [vmem:[%s3 + $0x788] sm:$0xff]
      %v1445 = vld [vmem:[%s3 + $0x790] sm:$0xff]
      %v1446 = vld [vmem:[%s3 + $0x798] sm:$0xff]
      %v1447 = vld [vmem:[%s3 + $0x7a0] sm:$0xff]
      %v1448 = vld [vmem:[%s3 + $0x7a8] sm:$0xff]
      %v1449 = vld [vmem:[%s3 + $0x7b0] sm:$0xff]
      %v1450 = vld [vmem:[%s3 + $0x7b8] sm:$0xff]
      %v1451 = vld [vmem:[%s3 + $0x7c0] sm:$0xff]
      %v1452 = vld [vmem:[%s3 + $0x7c8] sm:$0xff]
      %v1453 = vld [vmem:[%s3 + $0x7d0] sm:$0xff]
      %v1454 = vld [vmem:[%s3 + $0x7d8] sm:$0xff]
      %v1455 = vld [vmem:[%s3 + $0x7e0] sm:$0xff]
      %v1456 = vld [vmem:[%s3 + $0x7e8] sm:$0xff]
      %v1457 = vld [vmem:[%s3 + $0x7f0] sm:$0xff]
      %v1458 = vld [vmem:[%s3 + $0x7f8] sm:$0xff]
      %v1459 = vld [vmem:[%s3 + $0x800] sm:$0xff]
      %v1460 = vld [vmem:[%s3 + $0x808] sm:$0xff]
      %v1461 = vld [vmem:[%s3 + $0x810] sm:$0xff]
      %v1462 = vld [vmem:[%s3 + $0x818] sm:$0xff]
      %v1463 = vld [vmem:[%s3 + $0x820] sm:$0xff]
      %v1464 = vld [vmem:[%s3 + $0x828] sm:$0xff]
      %v1465 = vld [vmem:[%s3 + $0x830] sm:$0xff]
      %v1466 = vld [vmem:[%s3 + $0x838] sm:$0xff]
      %v1467 = vld [vmem:[%s3 + $0x840] sm:$0xff]
      %v1468 = vld [vmem:[%s3 + $0x848] sm:$0xff]
      %v1469 = vld [vmem:[%s3 + $0x850] sm:$0xff]
      %v1470 = vld [vmem:[%s3 + $0x858] sm:$0xff]
      %v1471 = vld [vmem:[%s3 + $0x860] sm:$0xff]
      %v1472 = vld [vmem:[%s3 + $0x868] sm:$0xff]
      %v1473 = vld [vmem:[%s3 + $0x870] sm:$0xff]
      %v1474 = vld [vmem:[%s3 + $0x878] sm:$0xff]
      %v1475 = vld [vmem:[%s3 + $0x880] sm:$0xff]
      %v1476 = vld [vmem:[%s3 + $0x888] sm:$0xff]
      %v1477 = vld [vmem:[%s3 + $0x890] sm:$0xff]
      %v1478 = vld [vmem:[%s3 + $0x898] sm:$0xff]
      %v1479 = vld [vmem:[%s3 + $0x8a0] sm:$0xff]
      %v1480 = vld [vmem:[%s3 + $0x8a8] sm:$0xff]
      %v1481 = vld [vmem:[%s3 + $0x8b0] sm:$0xff]
      %v1482 = vld [vmem:[%s3 + $0x8b8] sm:$0xff]
      %v1483 = vld [vmem:[%s3 + $0x8c0] sm:$0xff]
      %v1484 = vld [vmem:[%s3 + $0x8c8] sm:$0xff]
      %v1485 = vld [vmem:[%s3 + $0x8d0] sm:$0xff]
      %v1486 = vld [vmem:[%s3 + $0x8d8] sm:$0xff]
      %v1487 = vld [vmem:[%s3 + $0x8e0] sm:$0xff]
      %v1488 = vld [vmem:[%s3 + $0x8e8] sm:$0xff]
      %v1489 = vld [vmem:[%s3 + $0x8f0] sm:$0xff]
      %v1490 = vld [vmem:[%s3 + $0x8f8] sm:$0xff]
      %v1491 = vld [vmem:[%s3 + $0x900] sm:$0xff]
      %v1492 = vld [vmem:[%s3 + $0x908] sm:$0xff]
      %v1493 = vld [vmem:[%s3 + $0x910] sm:$0xff]
      %v1494 = vld [vmem:[%s3 + $0x918] sm:$0xff]
      %v1495 = vld [vmem:[%s3 + $0x920] sm:$0xff]
      %v1496 = vld [vmem:[%s3 + $0x928] sm:$0xff]
      %v1497 = vld [vmem:[%s3 + $0x930] sm:$0xff]
      %v1498 = vld [vmem:[%s3 + $0x938] sm:$0xff]
      %v1499 = vld [vmem:[%s3 + $0x940] sm:$0xff]
      %v1500 = vld [vmem:[%s3 + $0x948] sm:$0xff]
      %v1501 = vld [vmem:[%s3 + $0x950] sm:$0xff]
      %v1502 = vld [vmem:[%s3 + $0x958] sm:$0xff]
      %v1503 = vld [vmem:[%s3 + $0x960] sm:$0xff]
      %v1504 = vld [vmem:[%s3 + $0x968] sm:$0xff]
      %v1505 = vld [vmem:[%s3 + $0x970] sm:$0xff]
      %v1506 = vld [vmem:[%s3 + $0x978] sm:$0xff]
      %v1507 = vld [vmem:[%s3 + $0x980] sm:$0xff]
      %v1508 = vld [vmem:[%s3 + $0x988] sm:$0xff]
      %v1509 = vld [vmem:[%s3 + $0x990] sm:$0xff]
      %v1510 = vld [vmem:[%s3 + $0x998] sm:$0xff]
      %v1511 = vld [vmem:[%s3 + $0x9a0] sm:$0xff]
      %v1512 = vld [vmem:[%s3 + $0x9a8] sm:$0xff]
      %v1513 = vld [vmem:[%s3 + $0x9b0] sm:$0xff]
      %v1514 = vld [vmem:[%s3 + $0x9b8] sm:$0xff]
      %v1515 = vld [vmem:[%s3 + $0x9c0] sm:$0xff]
      %v1516 = vld [vmem:[%s3 + $0x9c8] sm:$0xff]
      %v1517 = vld [vmem:[%s3 + $0x9d0] sm:$0xff]
      %v1518 = vld [vmem:[%s3 + $0x9d8] sm:$0xff]
      %v1519 = vld [vmem:[%s3 + $0x9e0] sm:$0xff]
      %v1520 = vld [vmem:[%s3 + $0x9e8] sm:$0xff]
      %v1521 = vld [vmem:[%s3 + $0x9f0] sm:$0xff]
      %v1522 = vld [vmem:[%s3 + $0x9f8] sm:$0xff]
      %v1523 = vld [vmem:[%s3 + $0xa00] sm:$0xff]
      %v1524 = vld [vmem:[%s3 + $0xa08] sm:$0xff]
      %v1525 = vld [vmem:[%s3 + $0xa10] sm:$0xff]
      %v1526 = vld [vmem:[%s3 + $0xa18] sm:$0xff]
      %v1527 = vld [vmem:[%s3 + $0xa20] sm:$0xff]
      %v1528 = vld [vmem:[%s3 + $0xa28] sm:$0xff]
      %v1529 = vld [vmem:[%s3 + $0xa30] sm:$0xff]
      %v1530 = vld [vmem:[%s3 + $0xa38] sm:$0xff]
      %v1531 = vld [vmem:[%s3 + $0xa40] sm:$0xff]
      %v1532 = vld [vmem:[%s3 + $0xa48] sm:$0xff]
      %v1533 = vld [vmem:[%s3 + $0xa50] sm:$0xff]
      %v1534 = vld [vmem:[%s3 + $0xa58] sm:$0xff]
      %v1535 = vld [vmem:[%s3 + $0xa60] sm:$0xff]
      %v1536 = vld [vmem:[%s3 + $0xa68] sm:$0xff]
      %v1537 = vld [vmem:[%s3 + $0xa70] sm:$0xff]
      %v1538 = vld [vmem:[%s3 + $0xa78] sm:$0xff]
      %v1539 = vld [vmem:[%s3 + $0xa80] sm:$0xff]
      %v1540 = vld [vmem:[%s3 + $0xa88] sm:$0xff]
      %v1541 = vld [vmem:[%s3 + $0xa90] sm:$0xff]
      %v1542 = vld [vmem:[%s3 + $0xa98] sm:$0xff]
      %v1543 = vld [vmem:[%s3 + $0xaa0] sm:$0xff]
      %v1544 = vld [vmem:[%s3 + $0xaa8] sm:$0xff]
      %v1545 = vld [vmem:[%s3 + $0xab0] sm:$0xff]
      %v1546 = vld [vmem:[%s3 + $0xab8] sm:$0xff]
      %v1547 = vld [vmem:[%s3 + $0xac0] sm:$0xff]
      %v1548 = vld [vmem:[%s3 + $0xac8] sm:$0xff]
      %v1549 = vld [vmem:[%s3 + $0xad0] sm:$0xff]
      %v1550 = vld [vmem:[%s3 + $0xad8] sm:$0xff]
      %v1551 = vld [vmem:[%s3 + $0xae0] sm:$0xff]
      %v1552 = vld [vmem:[%s3 + $0xae8] sm:$0xff]
      %v1553 = vld [vmem:[%s3 + $0xaf0] sm:$0xff]
      %v1554 = vld [vmem:[%s3 + $0xaf8] sm:$0xff]
      %v1555 = vld [vmem:[%s3 + $0xb00] sm:$0xff]
      %v1556 = vld [vmem:[%s3 + $0xb08] sm:$0xff]
      %v1557 = vld [vmem:[%s3 + $0xb10] sm:$0xff]
      %v1558 = vld [vmem:[%s3 + $0xb18] sm:$0xff]
      %v1559 = vld [vmem:[%s3 + $0xb20] sm:$0xff]
      %v1560 = vld [vmem:[%s3 + $0xb28] sm:$0xff]
      %v1561 = vld [vmem:[%s3 + $0xb30] sm:$0xff]
      %v1562 = vld [vmem:[%s3 + $0xb38] sm:$0xff]
      %v1563 = vld [vmem:[%s3 + $0xb40] sm:$0xff]
      %v1564 = vld [vmem:[%s3 + $0xb48] sm:$0xff]
      %v1565 = vld [vmem:[%s3 + $0xb50] sm:$0xff]
      %v1566 = vld [vmem:[%s3 + $0xb58] sm:$0xff]
      %v1567 = vld [vmem:[%s3 + $0xb60] sm:$0xff]
      %v1568 = vld [vmem:[%s3 + $0xb68] sm:$0xff]
      %v1569 = vld [vmem:[%s3 + $0xb70] sm:$0xff]
      %v1570 = vld [vmem:[%s3 + $0xb78] sm:$0xff]
      %v1571 = vld [vmem:[%s3 + $0xb80] sm:$0xff]
      %v1572 = vld [vmem:[%s3 + $0xb88] sm:$0xff]
      %v1573 = vld [vmem:[%s3 + $0xb90] sm:$0xff]
      %v1574 = vld [vmem:[%s3 + $0xb98] sm:$0xff]
      %v1575 = vld [vmem:[%s3 + $0xba0] sm:$0xff]
      %v1576 = vld [vmem:[%s3 + $0xba8] sm:$0xff]
      %v1577 = vld [vmem:[%s3 + $0xbb0] sm:$0xff]
      %v1578 = vld [vmem:[%s3 + $0xbb8] sm:$0xff]
      %v1579 = vld [vmem:[%s3 + $0xbc0] sm:$0xff]
      %v1580 = vld [vmem:[%s3 + $0xbc8] sm:$0xff]
      %v1581 = vld [vmem:[%s3 + $0xbd0] sm:$0xff]
      %v1582 = vld [vmem:[%s3 + $0xbd8] sm:$0xff]
      %v1583 = vld [vmem:[%s3 + $0xbe0] sm:$0xff]
      %v1584 = vld [vmem:[%s3 + $0xbe8] sm:$0xff]
      %v1585 = vld [vmem:[%s3 + $0xbf0] sm:$0xff]
      %v1586 = vld [vmem:[%s3 + $0xbf8] sm:$0xff]
      %v1587 = vld [vmem:[%s3 + $0xc00] sm:$0xff]
      %v1588 = vld [vmem:[%s3 + $0xc08] sm:$0xff]
      %v1589 = vld [vmem:[%s3 + $0xc10] sm:$0xff]
      %v1590 = vld [vmem:[%s3 + $0xc18] sm:$0xff]
      %v1591 = vld [vmem:[%s3 + $0xc20] sm:$0xff]
      %v1592 = vld [vmem:[%s3 + $0xc28] sm:$0xff]
      %v1593 = vld [vmem:[%s3 + $0xc30] sm:$0xff]
      %v1594 = vld [vmem:[%s3 + $0xc38] sm:$0xff]
      %v1595 = vld [vmem:[%s3 + $0xc40] sm:$0xff]
      %v1596 = vld [vmem:[%s3 + $0xc48] sm:$0xff]
      %v1597 = vld [vmem:[%s3 + $0xc50] sm:$0xff]
      %v1598 = vld [vmem:[%s3 + $0xc58] sm:$0xff]
      %v1599 = vld [vmem:[%s3 + $0xc60] sm:$0xff]
      %v1600 = vld [vmem:[%s3 + $0xc68] sm:$0xff]
      %v1601 = vld [vmem:[%s3 + $0xc70] sm:$0xff]
      %v1602 = vld [vmem:[%s3 + $0xc78] sm:$0xff]
      %v1603 = vld [vmem:[%s3 + $0xc80] sm:$0xff]
      %v1604 = vld [vmem:[%s3 + $0xc88] sm:$0xff]
      %v1605 = vld [vmem:[%s3 + $0xc90] sm:$0xff]
      %v1606 = vld [vmem:[%s3 + $0xc98] sm:$0xff]
      %v1607 = vld [vmem:[%s3 + $0xca0] sm:$0xff]
      %v1608 = vld [vmem:[%s3 + $0xca8] sm:$0xff]
      %v1609 = vld [vmem:[%s3 + $0xcb0] sm:$0xff]
      %v1610 = vld [vmem:[%s3 + $0xcb8] sm:$0xff]
      %v1611 = vld [vmem:[%s3 + $0xcc0] sm:$0xff]
      %v1612 = vld [vmem:[%s3 + $0xcc8] sm:$0xff]
      %v1613 = vld [vmem:[%s3 + $0xcd0] sm:$0xff]
      %v1614 = vld [vmem:[%s3 + $0xcd8] sm:$0xff]
      %v1615 = vld [vmem:[%s3 + $0xce0] sm:$0xff]
      %v1616 = vld [vmem:[%s3 + $0xce8] sm:$0xff]
      %v1617 = vld [vmem:[%s3 + $0xcf0] sm:$0xff]
      %v1618 = vld [vmem:[%s3 + $0xcf8] sm:$0xff]
      %v1619 = vld [vmem:[%s3 + $0xd00] sm:$0xff]
      %v1620 = vld [vmem:[%s3 + $0xd08] sm:$0xff]
      %v1621 = vld [vmem:[%s3 + $0xd10] sm:$0xff]
      %v1622 = vld [vmem:[%s3 + $0xd18] sm:$0xff]
      %v1623 = vld [vmem:[%s3 + $0xd20] sm:$0xff]
      %v1624 = vld [vmem:[%s3 + $0xd28] sm:$0xff]
      %v1625 = vld [vmem:[%s3 + $0xd30] sm:$0xff]
      %v1626 = vld [vmem:[%s3 + $0xd38] sm:$0xff]
      %v1627 = vld [vmem:[%s3 + $0xd40] sm:$0xff]
      %v1628 = vld [vmem:[%s3 + $0xd48] sm:$0xff]
      %v1629 = vld [vmem:[%s3 + $0xd50] sm:$0xff]
      %v1630 = vld [vmem:[%s3 + $0xd58] sm:$0xff]
      %v1631 = vld [vmem:[%s3 + $0xd60] sm:$0xff]
      %v1632 = vld [vmem:[%s3 + $0xd68] sm:$0xff]
      %v1633 = vld [vmem:[%s3 + $0xd70] sm:$0xff]
      %v1634 = vld [vmem:[%s3 + $0xd78] sm:$0xff]
      %v1635 = vld [vmem:[%s3 + $0xd80] sm:$0xff]
      %v1636 = vld [vmem:[%s3 + $0xd88] sm:$0xff]
      %v1637 = vld [vmem:[%s3 + $0xd90] sm:$0xff]
      %v1638 = vld [vmem:[%s3 + $0xd98] sm:$0xff]
      %v1639 = vld [vmem:[%s3 + $0xda0] sm:$0xff]
      %v1640 = vld [vmem:[%s3 + $0xda8] sm:$0xff]
      %v1641 = vld [vmem:[%s3 + $0xdb0] sm:$0xff]
      %v1642 = vld [vmem:[%s3 + $0xdb8] sm:$0xff]
      %v1643 = vld [vmem:[%s3 + $0xdc0] sm:$0xff]
      %v1644 = vld [vmem:[%s3 + $0xdc8] sm:$0xff]
      %v1645 = vld [vmem:[%s3 + $0xdd0] sm:$0xff]
      %v1646 = vld [vmem:[%s3 + $0xdd8] sm:$0xff]
      %v1647 = vld [vmem:[%s3 + $0xde0] sm:$0xff]
      %v1648 = vld [vmem:[%s3 + $0xde8] sm:$0xff]
      %v1649 = vld [vmem:[%s3 + $0xdf0] sm:$0xff]
      %v1650 = vld [vmem:[%s3 + $0xdf8] sm:$0xff]
      %v1651 = vld [vmem:[%s3 + $0xe00] sm:$0xff]
      %v1652 = vld [vmem:[%s3 + $0xe08] sm:$0xff]
      %v1653 = vld [vmem:[%s3 + $0xe10] sm:$0xff]
      %v1654 = vld [vmem:[%s3 + $0xe18] sm:$0xff]
      %v1655 = vld [vmem:[%s3 + $0xe20] sm:$0xff]
      %v1656 = vld [vmem:[%s3 + $0xe28] sm:$0xff]
      %v1657 = vld [vmem:[%s3 + $0xe30] sm:$0xff]
      %v1658 = vld [vmem:[%s3 + $0xe38] sm:$0xff]
      %v1659 = vld [vmem:[%s3 + $0xe40] sm:$0xff]
      %v1660 = vld [vmem:[%s3 + $0xe48] sm:$0xff]
      %v1661 = vld [vmem:[%s3 + $0xe50] sm:$0xff]
      %v1662 = vld [vmem:[%s3 + $0xe58] sm:$0xff]
      %v1663 = vld [vmem:[%s3 + $0xe60] sm:$0xff]
      %v1664 = vld [vmem:[%s3 + $0xe68] sm:$0xff]
      %v1665 = vld [vmem:[%s3 + $0xe70] sm:$0xff]
      %v1666 = vld [vmem:[%s3 + $0xe78] sm:$0xff]
      %v1667 = vld [vmem:[%s3 + $0xe80] sm:$0xff]
      %v1668 = vld [vmem:[%s3 + $0xe88] sm:$0xff]
      %v1669 = vld [vmem:[%s3 + $0xe90] sm:$0xff]
      %v1670 = vld [vmem:[%s3 + $0xe98] sm:$0xff]
      %v1671 = vld [vmem:[%s3 + $0xea0] sm:$0xff]
      %v1672 = vld [vmem:[%s3 + $0xea8] sm:$0xff]
      %v1673 = vld [vmem:[%s3 + $0xeb0] sm:$0xff]
      %v1674 = vld [vmem:[%s3 + $0xeb8] sm:$0xff]
      %v1675 = vld [vmem:[%s3 + $0xec0] sm:$0xff]
      %v1676 = vld [vmem:[%s3 + $0xec8] sm:$0xff]
      %v1677 = vld [vmem:[%s3 + $0xed0] sm:$0xff]
      %v1678 = vld [vmem:[%s3 + $0xed8] sm:$0xff]
      %v1679 = vld [vmem:[%s3 + $0xee0] sm:$0xff]
      %v1680 = vld [vmem:[%s3 + $0xee8] sm:$0xff]
      %v1681 = vld [vmem:[%s3 + $0xef0] sm:$0xff]
      %v1682 = vld [vmem:[%s3 + $0xef8] sm:$0xff]
      %v1683 = vld [vmem:[%s3 + $0xf00] sm:$0xff]
      %v1684 = vld [vmem:[%s3 + $0xf08] sm:$0xff]
      %v1685 = vld [vmem:[%s3 + $0xf10] sm:$0xff]
      %v1686 = vld [vmem:[%s3 + $0xf18] sm:$0xff]
      %v1687 = vld [vmem:[%s3 + $0xf20] sm:$0xff]
      %v1688 = vld [vmem:[%s3 + $0xf28] sm:$0xff]
      %v1689 = vld [vmem:[%s3 + $0xf30] sm:$0xff]
      %v1690 = vld [vmem:[%s3 + $0xf38] sm:$0xff]
      %v1691 = vld [vmem:[%s3 + $0xf40] sm:$0xff]
      %v1692 = vld [vmem:[%s3 + $0xf48] sm:$0xff]
      %v1693 = vld [vmem:[%s3 + $0xf50] sm:$0xff]
      %v1694 = vld [vmem:[%s3 + $0xf58] sm:$0xff]
      %v1695 = vld [vmem:[%s3 + $0xf60] sm:$0xff]
      %v1696 = vld [vmem:[%s3 + $0xf68] sm:$0xff]
      %v1697 = vld [vmem:[%s3 + $0xf70] sm:$0xff]
      %v1698 = vld [vmem:[%s3 + $0xf78] sm:$0xff]
      %v1699 = vld [vmem:[%s3 + $0xf80] sm:$0xff]
      %v1700 = vld [vmem:[%s3 + $0xf88] sm:$0xff]
      %v1701 = vld [vmem:[%s3 + $0xf90] sm:$0xff]
      %v1702 = vld [vmem:[%s3 + $0xf98] sm:$0xff]
      %v1703 = vld [vmem:[%s3 + $0xfa0] sm:$0xff]
      %v1704 = vld [vmem:[%s3 + $0xfa8] sm:$0xff]
      %v1705 = vld [vmem:[%s3 + $0xfb0] sm:$0xff]
      %v1706 = vld [vmem:[%s3 + $0xfb8] sm:$0xff]
      %v1707 = vld [vmem:[%s3 + $0xfc0] sm:$0xff]
      %v1708 = vld [vmem:[%s3 + $0xfc8] sm:$0xff]
      %v1709 = vld [vmem:[%s3 + $0xfd0] sm:$0xff]
      %v1710 = vld [vmem:[%s3 + $0xfd8] sm:$0xff]
      %v1711 = vld [vmem:[%s3 + $0xfe0] sm:$0xff]
      %v1712 = vld [vmem:[%s3 + $0xfe8] sm:$0xff]
      %v1713 = vld [vmem:[%s3 + $0xff0] sm:$0xff]
      %v1714 = vld [vmem:[%s3 + $0xff8] sm:$0xff]
      %v1715 = vld [vmem:[%s4] sm:$0xff]
      %v1717 = vperm.slane %v1715, 0
      %v1718 = vperm.slane %v1715, 1
      %v1719 = vperm.slane %v1715, 2
      %v1720 = vperm.slane %v1715, 3
      %v1721 = vperm.slane %v1715, 4
      %v1722 = vperm.slane %v1715, 5
      %v1723 = vperm.slane %v1715, 6
      %v1724 = vperm.slane %v1715, 7
      %v2245 = vunpack.c.l.b16 %v1203
      %v2246 = vunpack.c.h.b16 %v1203
      %v2247 = vunpack.c.l.b16 %v1204
      %v2248 = vunpack.c.h.b16 %v1204
      %v2249 = vunpack.c.l.b16 %v1205
      %v2250 = vunpack.c.h.b16 %v1205
      %v2251 = vunpack.c.l.b16 %v1206
      %v2252 = vunpack.c.h.b16 %v1206
      %v2253 = vunpack.c.l.b16 %v1207
      %v2254 = vunpack.c.h.b16 %v1207
      %v2255 = vunpack.c.l.b16 %v1208
      %v2256 = vunpack.c.h.b16 %v1208
      %v2257 = vunpack.c.l.b16 %v1209
      %v2258 = vunpack.c.h.b16 %v1209
      %v2259 = vunpack.c.l.b16 %v1210
      %v2260 = vunpack.c.h.b16 %v1210
      %v2261 = vunpack.c.l.b16 %v1211
      %v2262 = vunpack.c.h.b16 %v1211
      %v2263 = vunpack.c.l.b16 %v1212
      %v2264 = vunpack.c.h.b16 %v1212
      %v2265 = vunpack.c.l.b16 %v1213
      %v2266 = vunpack.c.h.b16 %v1213
      %v2267 = vunpack.c.l.b16 %v1214
      %v2268 = vunpack.c.h.b16 %v1214
      %v2269 = vunpack.c.l.b16 %v1215
      %v2270 = vunpack.c.h.b16 %v1215
      %v2271 = vunpack.c.l.b16 %v1216
      %v2272 = vunpack.c.h.b16 %v1216
      %v2273 = vunpack.c.l.b16 %v1217
      %v2274 = vunpack.c.h.b16 %v1217
      %v2275 = vunpack.c.l.b16 %v1218
      %v2276 = vunpack.c.h.b16 %v1218
      %v2277 = vunpack.c.l.b16 %v1219
      %v2278 = vunpack.c.h.b16 %v1219
      %v2279 = vunpack.c.l.b16 %v1220
      %v2280 = vunpack.c.h.b16 %v1220
      %v2281 = vunpack.c.l.b16 %v1221
      %v2282 = vunpack.c.h.b16 %v1221
      %v2283 = vunpack.c.l.b16 %v1222
      %v2284 = vunpack.c.h.b16 %v1222
      %v2285 = vunpack.c.l.b16 %v1223
      %v2286 = vunpack.c.h.b16 %v1223
      %v2287 = vunpack.c.l.b16 %v1224
      %v2288 = vunpack.c.h.b16 %v1224
      %v2289 = vunpack.c.l.b16 %v1225
      %v2290 = vunpack.c.h.b16 %v1225
      %v2291 = vunpack.c.l.b16 %v1226
      %v2292 = vunpack.c.h.b16 %v1226
      %v2293 = vunpack.c.l.b16 %v1227
      %v2294 = vunpack.c.h.b16 %v1227
      %v2295 = vunpack.c.l.b16 %v1228
      %v2296 = vunpack.c.h.b16 %v1228
      %v2297 = vunpack.c.l.b16 %v1229
      %v2298 = vunpack.c.h.b16 %v1229
      %v2299 = vunpack.c.l.b16 %v1230
      %v2300 = vunpack.c.h.b16 %v1230
      %v2301 = vunpack.c.l.b16 %v1231
      %v2302 = vunpack.c.h.b16 %v1231
      %v2303 = vunpack.c.l.b16 %v1232
      %v2304 = vunpack.c.h.b16 %v1232
      %v2305 = vunpack.c.l.b16 %v1233
      %v2306 = vunpack.c.h.b16 %v1233
      %v2307 = vunpack.c.l.b16 %v1234
      %v2308 = vunpack.c.h.b16 %v1234
      %v2309 = vunpack.c.l.b16 %v1235
      %v2310 = vunpack.c.h.b16 %v1235
      %v2311 = vunpack.c.l.b16 %v1236
      %v2312 = vunpack.c.h.b16 %v1236
      %v2313 = vunpack.c.l.b16 %v1237
      %v2314 = vunpack.c.h.b16 %v1237
      %v2315 = vunpack.c.l.b16 %v1238
      %v2316 = vunpack.c.h.b16 %v1238
      %v2317 = vunpack.c.l.b16 %v1239
      %v2318 = vunpack.c.h.b16 %v1239
      %v2319 = vunpack.c.l.b16 %v1240
      %v2320 = vunpack.c.h.b16 %v1240
      %v2321 = vunpack.c.l.b16 %v1241
      %v2322 = vunpack.c.h.b16 %v1241
      %v2323 = vunpack.c.l.b16 %v1242
      %v2324 = vunpack.c.h.b16 %v1242
      %v2325 = vunpack.c.l.b16 %v1243
      %v2326 = vunpack.c.h.b16 %v1243
      %v2327 = vunpack.c.l.b16 %v1244
      %v2328 = vunpack.c.h.b16 %v1244
      %v2329 = vunpack.c.l.b16 %v1245
      %v2330 = vunpack.c.h.b16 %v1245
      %v2331 = vunpack.c.l.b16 %v1246
      %v2332 = vunpack.c.h.b16 %v1246
      %v2333 = vunpack.c.l.b16 %v1247
      %v2334 = vunpack.c.h.b16 %v1247
      %v2335 = vunpack.c.l.b16 %v1248
      %v2336 = vunpack.c.h.b16 %v1248
      %v2337 = vunpack.c.l.b16 %v1249
      %v2338 = vunpack.c.h.b16 %v1249
      %v2339 = vunpack.c.l.b16 %v1250
      %v2340 = vunpack.c.h.b16 %v1250
      %v2341 = vunpack.c.l.b16 %v1251
      %v2342 = vunpack.c.h.b16 %v1251
      %v2343 = vunpack.c.l.b16 %v1252
      %v2344 = vunpack.c.h.b16 %v1252
      %v2345 = vunpack.c.l.b16 %v1253
      %v2346 = vunpack.c.h.b16 %v1253
      %v2347 = vunpack.c.l.b16 %v1254
      %v2348 = vunpack.c.h.b16 %v1254
      %v2349 = vunpack.c.l.b16 %v1255
      %v2350 = vunpack.c.h.b16 %v1255
      %v2351 = vunpack.c.l.b16 %v1256
      %v2352 = vunpack.c.h.b16 %v1256
      %v2353 = vunpack.c.l.b16 %v1257
      %v2354 = vunpack.c.h.b16 %v1257
      %v2355 = vunpack.c.l.b16 %v1258
      %v2356 = vunpack.c.h.b16 %v1258
      %v2357 = vunpack.c.l.b16 %v1259
      %v2358 = vunpack.c.h.b16 %v1259
      %v2359 = vunpack.c.l.b16 %v1260
      %v2360 = vunpack.c.h.b16 %v1260
      %v2361 = vunpack.c.l.b16 %v1261
      %v2362 = vunpack.c.h.b16 %v1261
      %v2363 = vunpack.c.l.b16 %v1262
      %v2364 = vunpack.c.h.b16 %v1262
      %v2365 = vunpack.c.l.b16 %v1263
      %v2366 = vunpack.c.h.b16 %v1263
      %v2367 = vunpack.c.l.b16 %v1264
      %v2368 = vunpack.c.h.b16 %v1264
      %v2369 = vunpack.c.l.b16 %v1265
      %v2370 = vunpack.c.h.b16 %v1265
      %v2371 = vunpack.c.l.b16 %v1266
      %v2372 = vunpack.c.h.b16 %v1266
      %v2373 = vunpack.c.l.b16 %v1267
      %v2374 = vunpack.c.h.b16 %v1267
      %v2375 = vunpack.c.l.b16 %v1268
      %v2376 = vunpack.c.h.b16 %v1268
      %v2377 = vunpack.c.l.b16 %v1269
      %v2378 = vunpack.c.h.b16 %v1269
      %v2379 = vunpack.c.l.b16 %v1270
      %v2380 = vunpack.c.h.b16 %v1270
      %v2381 = vunpack.c.l.b16 %v1271
      %v2382 = vunpack.c.h.b16 %v1271
      %v2383 = vunpack.c.l.b16 %v1272
      %v2384 = vunpack.c.h.b16 %v1272
      %v2385 = vunpack.c.l.b16 %v1273
      %v2386 = vunpack.c.h.b16 %v1273
      %v2387 = vunpack.c.l.b16 %v1274
      %v2388 = vunpack.c.h.b16 %v1274
      %v2389 = vunpack.c.l.b16 %v1275
      %v2390 = vunpack.c.h.b16 %v1275
      %v2391 = vunpack.c.l.b16 %v1276
      %v2392 = vunpack.c.h.b16 %v1276
      %v2393 = vunpack.c.l.b16 %v1277
      %v2394 = vunpack.c.h.b16 %v1277
      %v2395 = vunpack.c.l.b16 %v1278
      %v2396 = vunpack.c.h.b16 %v1278
      %v2397 = vunpack.c.l.b16 %v1279
      %v2398 = vunpack.c.h.b16 %v1279
      %v2399 = vunpack.c.l.b16 %v1280
      %v2400 = vunpack.c.h.b16 %v1280
      %v2401 = vunpack.c.l.b16 %v1281
      %v2402 = vunpack.c.h.b16 %v1281
      %v2403 = vunpack.c.l.b16 %v1282
      %v2404 = vunpack.c.h.b16 %v1282
      %v2405 = vunpack.c.l.b16 %v1283
      %v2406 = vunpack.c.h.b16 %v1283
      %v2407 = vunpack.c.l.b16 %v1284
      %v2408 = vunpack.c.h.b16 %v1284
      %v2409 = vunpack.c.l.b16 %v1285
      %v2410 = vunpack.c.h.b16 %v1285
      %v2411 = vunpack.c.l.b16 %v1286
      %v2412 = vunpack.c.h.b16 %v1286
      %v2413 = vunpack.c.l.b16 %v1287
      %v2414 = vunpack.c.h.b16 %v1287
      %v2415 = vunpack.c.l.b16 %v1288
      %v2416 = vunpack.c.h.b16 %v1288
      %v2417 = vunpack.c.l.b16 %v1289
      %v2418 = vunpack.c.h.b16 %v1289
      %v2419 = vunpack.c.l.b16 %v1290
      %v2420 = vunpack.c.h.b16 %v1290
      %v2421 = vunpack.c.l.b16 %v1291
      %v2422 = vunpack.c.h.b16 %v1291
      %v2423 = vunpack.c.l.b16 %v1292
      %v2424 = vunpack.c.h.b16 %v1292
      %v2425 = vunpack.c.l.b16 %v1293
      %v2426 = vunpack.c.h.b16 %v1293
      %v2427 = vunpack.c.l.b16 %v1294
      %v2428 = vunpack.c.h.b16 %v1294
      %v2429 = vunpack.c.l.b16 %v1295
      %v2430 = vunpack.c.h.b16 %v1295
      %v2431 = vunpack.c.l.b16 %v1296
      %v2432 = vunpack.c.h.b16 %v1296
      %v2433 = vunpack.c.l.b16 %v1297
      %v2434 = vunpack.c.h.b16 %v1297
      %v2435 = vunpack.c.l.b16 %v1298
      %v2436 = vunpack.c.h.b16 %v1298
      %v2437 = vunpack.c.l.b16 %v1299
      %v2438 = vunpack.c.h.b16 %v1299
      %v2439 = vunpack.c.l.b16 %v1300
      %v2440 = vunpack.c.h.b16 %v1300
      %v2441 = vunpack.c.l.b16 %v1301
      %v2442 = vunpack.c.h.b16 %v1301
      %v2443 = vunpack.c.l.b16 %v1302
      %v2444 = vunpack.c.h.b16 %v1302
      %v2445 = vunpack.c.l.b16 %v1303
      %v2446 = vunpack.c.h.b16 %v1303
      %v2447 = vunpack.c.l.b16 %v1304
      %v2448 = vunpack.c.h.b16 %v1304
      %v2449 = vunpack.c.l.b16 %v1305
      %v2450 = vunpack.c.h.b16 %v1305
      %v2451 = vunpack.c.l.b16 %v1306
      %v2452 = vunpack.c.h.b16 %v1306
      %v2453 = vunpack.c.l.b16 %v1307
      %v2454 = vunpack.c.h.b16 %v1307
      %v2455 = vunpack.c.l.b16 %v1308
      %v2456 = vunpack.c.h.b16 %v1308
      %v2457 = vunpack.c.l.b16 %v1309
      %v2458 = vunpack.c.h.b16 %v1309
      %v2459 = vunpack.c.l.b16 %v1310
      %v2460 = vunpack.c.h.b16 %v1310
      %v2461 = vunpack.c.l.b16 %v1311
      %v2462 = vunpack.c.h.b16 %v1311
      %v2463 = vunpack.c.l.b16 %v1312
      %v2464 = vunpack.c.h.b16 %v1312
      %v2465 = vunpack.c.l.b16 %v1313
      %v2466 = vunpack.c.h.b16 %v1313
      %v2467 = vunpack.c.l.b16 %v1314
      %v2468 = vunpack.c.h.b16 %v1314
      %v2469 = vunpack.c.l.b16 %v1315
      %v2470 = vunpack.c.h.b16 %v1315
      %v2471 = vunpack.c.l.b16 %v1316
      %v2472 = vunpack.c.h.b16 %v1316
      %v2473 = vunpack.c.l.b16 %v1317
      %v2474 = vunpack.c.h.b16 %v1317
      %v2475 = vunpack.c.l.b16 %v1318
      %v2476 = vunpack.c.h.b16 %v1318
      %v2477 = vunpack.c.l.b16 %v1319
      %v2478 = vunpack.c.h.b16 %v1319
      %v2479 = vunpack.c.l.b16 %v1320
      %v2480 = vunpack.c.h.b16 %v1320
      %v2481 = vunpack.c.l.b16 %v1321
      %v2482 = vunpack.c.h.b16 %v1321
      %v2483 = vunpack.c.l.b16 %v1322
      %v2484 = vunpack.c.h.b16 %v1322
      %v2485 = vunpack.c.l.b16 %v1323
      %v2486 = vunpack.c.h.b16 %v1323
      %v2487 = vunpack.c.l.b16 %v1324
      %v2488 = vunpack.c.h.b16 %v1324
      %v2489 = vunpack.c.l.b16 %v1325
      %v2490 = vunpack.c.h.b16 %v1325
      %v2491 = vunpack.c.l.b16 %v1326
      %v2492 = vunpack.c.h.b16 %v1326
      %v2493 = vunpack.c.l.b16 %v1327
      %v2494 = vunpack.c.h.b16 %v1327
      %v2495 = vunpack.c.l.b16 %v1328
      %v2496 = vunpack.c.h.b16 %v1328
      %v2497 = vunpack.c.l.b16 %v1329
      %v2498 = vunpack.c.h.b16 %v1329
      %v2499 = vunpack.c.l.b16 %v1330
      %v2500 = vunpack.c.h.b16 %v1330
      %v2501 = vunpack.c.l.b16 %v1331
      %v2502 = vunpack.c.h.b16 %v1331
      %v2503 = vunpack.c.l.b16 %v1332
      %v2504 = vunpack.c.h.b16 %v1332
      %v2505 = vunpack.c.l.b16 %v1333
      %v2506 = vunpack.c.h.b16 %v1333
      %v2507 = vunpack.c.l.b16 %v1334
      %v2508 = vunpack.c.h.b16 %v1334
      %v2509 = vunpack.c.l.b16 %v1335
      %v2510 = vunpack.c.h.b16 %v1335
      %v2511 = vunpack.c.l.b16 %v1336
      %v2512 = vunpack.c.h.b16 %v1336
      %v2513 = vunpack.c.l.b16 %v1337
      %v2514 = vunpack.c.h.b16 %v1337
      %v2515 = vunpack.c.l.b16 %v1338
      %v2516 = vunpack.c.h.b16 %v1338
      %v2517 = vunpack.c.l.b16 %v1339
      %v2518 = vunpack.c.h.b16 %v1339
      %v2519 = vunpack.c.l.b16 %v1340
      %v2520 = vunpack.c.h.b16 %v1340
      %v2521 = vunpack.c.l.b16 %v1341
      %v2522 = vunpack.c.h.b16 %v1341
      %v2523 = vunpack.c.l.b16 %v1342
      %v2524 = vunpack.c.h.b16 %v1342
      %v2525 = vunpack.c.l.b16 %v1343
      %v2526 = vunpack.c.h.b16 %v1343
      %v2527 = vunpack.c.l.b16 %v1344
      %v2528 = vunpack.c.h.b16 %v1344
      %v2529 = vunpack.c.l.b16 %v1345
      %v2530 = vunpack.c.h.b16 %v1345
      %v2531 = vunpack.c.l.b16 %v1346
      %v2532 = vunpack.c.h.b16 %v1346
      %v2533 = vunpack.c.l.b16 %v1347
      %v2534 = vunpack.c.h.b16 %v1347
      %v2535 = vunpack.c.l.b16 %v1348
      %v2536 = vunpack.c.h.b16 %v1348
      %v2537 = vunpack.c.l.b16 %v1349
      %v2538 = vunpack.c.h.b16 %v1349
      %v2539 = vunpack.c.l.b16 %v1350
      %v2540 = vunpack.c.h.b16 %v1350
      %v2541 = vunpack.c.l.b16 %v1351
      %v2542 = vunpack.c.h.b16 %v1351
      %v2543 = vunpack.c.l.b16 %v1352
      %v2544 = vunpack.c.h.b16 %v1352
      %v2545 = vunpack.c.l.b16 %v1353
      %v2546 = vunpack.c.h.b16 %v1353
      %v2547 = vunpack.c.l.b16 %v1354
      %v2548 = vunpack.c.h.b16 %v1354
      %v2549 = vunpack.c.l.b16 %v1355
      %v2550 = vunpack.c.h.b16 %v1355
      %v2551 = vunpack.c.l.b16 %v1356
      %v2552 = vunpack.c.h.b16 %v1356
      %v2553 = vunpack.c.l.b16 %v1357
      %v2554 = vunpack.c.h.b16 %v1357
      %v2555 = vunpack.c.l.b16 %v1358
      %v2556 = vunpack.c.h.b16 %v1358
      %v2557 = vunpack.c.l.b16 %v1359
      %v2558 = vunpack.c.h.b16 %v1359
      %v2559 = vunpack.c.l.b16 %v1360
      %v2560 = vunpack.c.h.b16 %v1360
      %v2561 = vunpack.c.l.b16 %v1361
      %v2562 = vunpack.c.h.b16 %v1361
      %v2563 = vunpack.c.l.b16 %v1362
      %v2564 = vunpack.c.h.b16 %v1362
      %v2565 = vunpack.c.l.b16 %v1363
      %v2566 = vunpack.c.h.b16 %v1363
      %v2567 = vunpack.c.l.b16 %v1364
      %v2568 = vunpack.c.h.b16 %v1364
      %v2569 = vunpack.c.l.b16 %v1365
      %v2570 = vunpack.c.h.b16 %v1365
      %v2571 = vunpack.c.l.b16 %v1366
      %v2572 = vunpack.c.h.b16 %v1366
      %v2573 = vunpack.c.l.b16 %v1367
      %v2574 = vunpack.c.h.b16 %v1367
      %v2575 = vunpack.c.l.b16 %v1368
      %v2576 = vunpack.c.h.b16 %v1368
      %v2577 = vunpack.c.l.b16 %v1369
      %v2578 = vunpack.c.h.b16 %v1369
      %v2579 = vunpack.c.l.b16 %v1370
      %v2580 = vunpack.c.h.b16 %v1370
      %v2581 = vunpack.c.l.b16 %v1371
      %v2582 = vunpack.c.h.b16 %v1371
      %v2583 = vunpack.c.l.b16 %v1372
      %v2584 = vunpack.c.h.b16 %v1372
      %v2585 = vunpack.c.l.b16 %v1373
      %v2586 = vunpack.c.h.b16 %v1373
      %v2587 = vunpack.c.l.b16 %v1374
      %v2588 = vunpack.c.h.b16 %v1374
      %v2589 = vunpack.c.l.b16 %v1375
      %v2590 = vunpack.c.h.b16 %v1375
      %v2591 = vunpack.c.l.b16 %v1376
      %v2592 = vunpack.c.h.b16 %v1376
      %v2593 = vunpack.c.l.b16 %v1377
      %v2594 = vunpack.c.h.b16 %v1377
      %v2595 = vunpack.c.l.b16 %v1378
      %v2596 = vunpack.c.h.b16 %v1378
      %v2597 = vunpack.c.l.b16 %v1379
      %v2598 = vunpack.c.h.b16 %v1379
      %v2599 = vunpack.c.l.b16 %v1380
      %v2600 = vunpack.c.h.b16 %v1380
      %v2601 = vunpack.c.l.b16 %v1381
      %v2602 = vunpack.c.h.b16 %v1381
      %v2603 = vunpack.c.l.b16 %v1382
      %v2604 = vunpack.c.h.b16 %v1382
      %v2605 = vunpack.c.l.b16 %v1383
      %v2606 = vunpack.c.h.b16 %v1383
      %v2607 = vunpack.c.l.b16 %v1384
      %v2608 = vunpack.c.h.b16 %v1384
      %v2609 = vunpack.c.l.b16 %v1385
      %v2610 = vunpack.c.h.b16 %v1385
      %v2611 = vunpack.c.l.b16 %v1386
      %v2612 = vunpack.c.h.b16 %v1386
      %v2613 = vunpack.c.l.b16 %v1387
      %v2614 = vunpack.c.h.b16 %v1387
      %v2615 = vunpack.c.l.b16 %v1388
      %v2616 = vunpack.c.h.b16 %v1388
      %v2617 = vunpack.c.l.b16 %v1389
      %v2618 = vunpack.c.h.b16 %v1389
      %v2619 = vunpack.c.l.b16 %v1390
      %v2620 = vunpack.c.h.b16 %v1390
      %v2621 = vunpack.c.l.b16 %v1391
      %v2622 = vunpack.c.h.b16 %v1391
      %v2623 = vunpack.c.l.b16 %v1392
      %v2624 = vunpack.c.h.b16 %v1392
      %v2625 = vunpack.c.l.b16 %v1393
      %v2626 = vunpack.c.h.b16 %v1393
      %v2627 = vunpack.c.l.b16 %v1394
      %v2628 = vunpack.c.h.b16 %v1394
      %v2629 = vunpack.c.l.b16 %v1395
      %v2630 = vunpack.c.h.b16 %v1395
      %v2631 = vunpack.c.l.b16 %v1396
      %v2632 = vunpack.c.h.b16 %v1396
      %v2633 = vunpack.c.l.b16 %v1397
      %v2634 = vunpack.c.h.b16 %v1397
      %v2635 = vunpack.c.l.b16 %v1398
      %v2636 = vunpack.c.h.b16 %v1398
      %v2637 = vunpack.c.l.b16 %v1399
      %v2638 = vunpack.c.h.b16 %v1399
      %v2639 = vunpack.c.l.b16 %v1400
      %v2640 = vunpack.c.h.b16 %v1400
      %v2641 = vunpack.c.l.b16 %v1401
      %v2642 = vunpack.c.h.b16 %v1401
      %v2643 = vunpack.c.l.b16 %v1402
      %v2644 = vunpack.c.h.b16 %v1402
      %v2645 = vunpack.c.l.b16 %v1403
      %v2646 = vunpack.c.h.b16 %v1403
      %v2647 = vunpack.c.l.b16 %v1404
      %v2648 = vunpack.c.h.b16 %v1404
      %v2649 = vunpack.c.l.b16 %v1405
      %v2650 = vunpack.c.h.b16 %v1405
      %v2651 = vunpack.c.l.b16 %v1406
      %v2652 = vunpack.c.h.b16 %v1406
      %v2653 = vunpack.c.l.b16 %v1407
      %v2654 = vunpack.c.h.b16 %v1407
      %v2655 = vunpack.c.l.b16 %v1408
      %v2656 = vunpack.c.h.b16 %v1408
      %v2657 = vunpack.c.l.b16 %v1409
      %v2658 = vunpack.c.h.b16 %v1409
      %v2659 = vunpack.c.l.b16 %v1410
      %v2660 = vunpack.c.h.b16 %v1410
      %v2661 = vunpack.c.l.b16 %v1411
      %v2662 = vunpack.c.h.b16 %v1411
      %v2663 = vunpack.c.l.b16 %v1412
      %v2664 = vunpack.c.h.b16 %v1412
      %v2665 = vunpack.c.l.b16 %v1413
      %v2666 = vunpack.c.h.b16 %v1413
      %v2667 = vunpack.c.l.b16 %v1414
      %v2668 = vunpack.c.h.b16 %v1414
      %v2669 = vunpack.c.l.b16 %v1415
      %v2670 = vunpack.c.h.b16 %v1415
      %v2671 = vunpack.c.l.b16 %v1416
      %v2672 = vunpack.c.h.b16 %v1416
      %v2673 = vunpack.c.l.b16 %v1417
      %v2674 = vunpack.c.h.b16 %v1417
      %v2675 = vunpack.c.l.b16 %v1418
      %v2676 = vunpack.c.h.b16 %v1418
      %v2677 = vunpack.c.l.b16 %v1419
      %v2678 = vunpack.c.h.b16 %v1419
      %v2679 = vunpack.c.l.b16 %v1420
      %v2680 = vunpack.c.h.b16 %v1420
      %v2681 = vunpack.c.l.b16 %v1421
      %v2682 = vunpack.c.h.b16 %v1421
      %v2683 = vunpack.c.l.b16 %v1422
      %v2684 = vunpack.c.h.b16 %v1422
      %v2685 = vunpack.c.l.b16 %v1423
      %v2686 = vunpack.c.h.b16 %v1423
      %v2687 = vunpack.c.l.b16 %v1424
      %v2688 = vunpack.c.h.b16 %v1424
      %v2689 = vunpack.c.l.b16 %v1425
      %v2690 = vunpack.c.h.b16 %v1425
      %v2691 = vunpack.c.l.b16 %v1426
      %v2692 = vunpack.c.h.b16 %v1426
      %v2693 = vunpack.c.l.b16 %v1427
      %v2694 = vunpack.c.h.b16 %v1427
      %v2695 = vunpack.c.l.b16 %v1428
      %v2696 = vunpack.c.h.b16 %v1428
      %v2697 = vunpack.c.l.b16 %v1429
      %v2698 = vunpack.c.h.b16 %v1429
      %v2699 = vunpack.c.l.b16 %v1430
      %v2700 = vunpack.c.h.b16 %v1430
      %v2701 = vunpack.c.l.b16 %v1431
      %v2702 = vunpack.c.h.b16 %v1431
      %v2703 = vunpack.c.l.b16 %v1432
      %v2704 = vunpack.c.h.b16 %v1432
      %v2705 = vunpack.c.l.b16 %v1433
      %v2706 = vunpack.c.h.b16 %v1433
      %v2707 = vunpack.c.l.b16 %v1434
      %v2708 = vunpack.c.h.b16 %v1434
      %v2709 = vunpack.c.l.b16 %v1435
      %v2710 = vunpack.c.h.b16 %v1435
      %v2711 = vunpack.c.l.b16 %v1436
      %v2712 = vunpack.c.h.b16 %v1436
      %v2713 = vunpack.c.l.b16 %v1437
      %v2714 = vunpack.c.h.b16 %v1437
      %v2715 = vunpack.c.l.b16 %v1438
      %v2716 = vunpack.c.h.b16 %v1438
      %v2717 = vunpack.c.l.b16 %v1439
      %v2718 = vunpack.c.h.b16 %v1439
      %v2719 = vunpack.c.l.b16 %v1440
      %v2720 = vunpack.c.h.b16 %v1440
      %v2721 = vunpack.c.l.b16 %v1441
      %v2722 = vunpack.c.h.b16 %v1441
      %v2723 = vunpack.c.l.b16 %v1442
      %v2724 = vunpack.c.h.b16 %v1442
      %v2725 = vunpack.c.l.b16 %v1443
      %v2726 = vunpack.c.h.b16 %v1443
      %v2727 = vunpack.c.l.b16 %v1444
      %v2728 = vunpack.c.h.b16 %v1444
      %v2729 = vunpack.c.l.b16 %v1445
      %v2730 = vunpack.c.h.b16 %v1445
      %v2731 = vunpack.c.l.b16 %v1446
      %v2732 = vunpack.c.h.b16 %v1446
      %v2733 = vunpack.c.l.b16 %v1447
      %v2734 = vunpack.c.h.b16 %v1447
      %v2735 = vunpack.c.l.b16 %v1448
      %v2736 = vunpack.c.h.b16 %v1448
      %v2737 = vunpack.c.l.b16 %v1449
      %v2738 = vunpack.c.h.b16 %v1449
      %v2739 = vunpack.c.l.b16 %v1450
      %v2740 = vunpack.c.h.b16 %v1450
      %v2741 = vunpack.c.l.b16 %v1451
      %v2742 = vunpack.c.h.b16 %v1451
      %v2743 = vunpack.c.l.b16 %v1452
      %v2744 = vunpack.c.h.b16 %v1452
      %v2745 = vunpack.c.l.b16 %v1453
      %v2746 = vunpack.c.h.b16 %v1453
      %v2747 = vunpack.c.l.b16 %v1454
      %v2748 = vunpack.c.h.b16 %v1454
      %v2749 = vunpack.c.l.b16 %v1455
      %v2750 = vunpack.c.h.b16 %v1455
      %v2751 = vunpack.c.l.b16 %v1456
      %v2752 = vunpack.c.h.b16 %v1456
      %v2753 = vunpack.c.l.b16 %v1457
      %v2754 = vunpack.c.h.b16 %v1457
      %v2755 = vunpack.c.l.b16 %v1458
      %v2756 = vunpack.c.h.b16 %v1458
      %v2757 = vunpack.c.l.b16 %v1459
      %v2758 = vunpack.c.h.b16 %v1459
      %v2759 = vunpack.c.l.b16 %v1460
      %v2760 = vunpack.c.h.b16 %v1460
      %v2761 = vunpack.c.l.b16 %v1461
      %v2762 = vunpack.c.h.b16 %v1461
      %v2763 = vunpack.c.l.b16 %v1462
      %v2764 = vunpack.c.h.b16 %v1462
      %v2765 = vunpack.c.l.b16 %v1463
      %v2766 = vunpack.c.h.b16 %v1463
      %v2767 = vunpack.c.l.b16 %v1464
      %v2768 = vunpack.c.h.b16 %v1464
      %v2769 = vunpack.c.l.b16 %v1465
      %v2770 = vunpack.c.h.b16 %v1465
      %v2771 = vunpack.c.l.b16 %v1466
      %v2772 = vunpack.c.h.b16 %v1466
      %v2773 = vunpack.c.l.b16 %v1467
      %v2774 = vunpack.c.h.b16 %v1467
      %v2775 = vunpack.c.l.b16 %v1468
      %v2776 = vunpack.c.h.b16 %v1468
      %v2777 = vunpack.c.l.b16 %v1469
      %v2778 = vunpack.c.h.b16 %v1469
      %v2779 = vunpack.c.l.b16 %v1470
      %v2780 = vunpack.c.h.b16 %v1470
      %v2781 = vunpack.c.l.b16 %v1471
      %v2782 = vunpack.c.h.b16 %v1471
      %v2783 = vunpack.c.l.b16 %v1472
      %v2784 = vunpack.c.h.b16 %v1472
      %v2785 = vunpack.c.l.b16 %v1473
      %v2786 = vunpack.c.h.b16 %v1473
      %v2787 = vunpack.c.l.b16 %v1474
      %v2788 = vunpack.c.h.b16 %v1474
      %v2789 = vunpack.c.l.b16 %v1475
      %v2790 = vunpack.c.h.b16 %v1475
      %v2791 = vunpack.c.l.b16 %v1476
      %v2792 = vunpack.c.h.b16 %v1476
      %v2793 = vunpack.c.l.b16 %v1477
      %v2794 = vunpack.c.h.b16 %v1477
      %v2795 = vunpack.c.l.b16 %v1478
      %v2796 = vunpack.c.h.b16 %v1478
      %v2797 = vunpack.c.l.b16 %v1479
      %v2798 = vunpack.c.h.b16 %v1479
      %v2799 = vunpack.c.l.b16 %v1480
      %v2800 = vunpack.c.h.b16 %v1480
      %v2801 = vunpack.c.l.b16 %v1481
      %v2802 = vunpack.c.h.b16 %v1481
      %v2803 = vunpack.c.l.b16 %v1482
      %v2804 = vunpack.c.h.b16 %v1482
      %v2805 = vunpack.c.l.b16 %v1483
      %v2806 = vunpack.c.h.b16 %v1483
      %v2807 = vunpack.c.l.b16 %v1484
      %v2808 = vunpack.c.h.b16 %v1484
      %v2809 = vunpack.c.l.b16 %v1485
      %v2810 = vunpack.c.h.b16 %v1485
      %v2811 = vunpack.c.l.b16 %v1486
      %v2812 = vunpack.c.h.b16 %v1486
      %v2813 = vunpack.c.l.b16 %v1487
      %v2814 = vunpack.c.h.b16 %v1487
      %v2815 = vunpack.c.l.b16 %v1488
      %v2816 = vunpack.c.h.b16 %v1488
      %v2817 = vunpack.c.l.b16 %v1489
      %v2818 = vunpack.c.h.b16 %v1489
      %v2819 = vunpack.c.l.b16 %v1490
      %v2820 = vunpack.c.h.b16 %v1490
      %v2821 = vunpack.c.l.b16 %v1491
      %v2822 = vunpack.c.h.b16 %v1491
      %v2823 = vunpack.c.l.b16 %v1492
      %v2824 = vunpack.c.h.b16 %v1492
      %v2825 = vunpack.c.l.b16 %v1493
      %v2826 = vunpack.c.h.b16 %v1493
      %v2827 = vunpack.c.l.b16 %v1494
      %v2828 = vunpack.c.h.b16 %v1494
      %v2829 = vunpack.c.l.b16 %v1495
      %v2830 = vunpack.c.h.b16 %v1495
      %v2831 = vunpack.c.l.b16 %v1496
      %v2832 = vunpack.c.h.b16 %v1496
      %v2833 = vunpack.c.l.b16 %v1497
      %v2834 = vunpack.c.h.b16 %v1497
      %v2835 = vunpack.c.l.b16 %v1498
      %v2836 = vunpack.c.h.b16 %v1498
      %v2837 = vunpack.c.l.b16 %v1499
      %v2838 = vunpack.c.h.b16 %v1499
      %v2839 = vunpack.c.l.b16 %v1500
      %v2840 = vunpack.c.h.b16 %v1500
      %v2841 = vunpack.c.l.b16 %v1501
      %v2842 = vunpack.c.h.b16 %v1501
      %v2843 = vunpack.c.l.b16 %v1502
      %v2844 = vunpack.c.h.b16 %v1502
      %v2845 = vunpack.c.l.b16 %v1503
      %v2846 = vunpack.c.h.b16 %v1503
      %v2847 = vunpack.c.l.b16 %v1504
      %v2848 = vunpack.c.h.b16 %v1504
      %v2849 = vunpack.c.l.b16 %v1505
      %v2850 = vunpack.c.h.b16 %v1505
      %v2851 = vunpack.c.l.b16 %v1506
      %v2852 = vunpack.c.h.b16 %v1506
      %v2853 = vunpack.c.l.b16 %v1507
      %v2854 = vunpack.c.h.b16 %v1507
      %v2855 = vunpack.c.l.b16 %v1508
      %v2856 = vunpack.c.h.b16 %v1508
      %v2857 = vunpack.c.l.b16 %v1509
      %v2858 = vunpack.c.h.b16 %v1509
      %v2859 = vunpack.c.l.b16 %v1510
      %v2860 = vunpack.c.h.b16 %v1510
      %v2861 = vunpack.c.l.b16 %v1511
      %v2862 = vunpack.c.h.b16 %v1511
      %v2863 = vunpack.c.l.b16 %v1512
      %v2864 = vunpack.c.h.b16 %v1512
      %v2865 = vunpack.c.l.b16 %v1513
      %v2866 = vunpack.c.h.b16 %v1513
      %v2867 = vunpack.c.l.b16 %v1514
      %v2868 = vunpack.c.h.b16 %v1514
      %v2869 = vunpack.c.l.b16 %v1515
      %v2870 = vunpack.c.h.b16 %v1515
      %v2871 = vunpack.c.l.b16 %v1516
      %v2872 = vunpack.c.h.b16 %v1516
      %v2873 = vunpack.c.l.b16 %v1517
      %v2874 = vunpack.c.h.b16 %v1517
      %v2875 = vunpack.c.l.b16 %v1518
      %v2876 = vunpack.c.h.b16 %v1518
      %v2877 = vunpack.c.l.b16 %v1519
      %v2878 = vunpack.c.h.b16 %v1519
      %v2879 = vunpack.c.l.b16 %v1520
      %v2880 = vunpack.c.h.b16 %v1520
      %v2881 = vunpack.c.l.b16 %v1521
      %v2882 = vunpack.c.h.b16 %v1521
      %v2883 = vunpack.c.l.b16 %v1522
      %v2884 = vunpack.c.h.b16 %v1522
      %v2885 = vunpack.c.l.b16 %v1523
      %v2886 = vunpack.c.h.b16 %v1523
      %v2887 = vunpack.c.l.b16 %v1524
      %v2888 = vunpack.c.h.b16 %v1524
      %v2889 = vunpack.c.l.b16 %v1525
      %v2890 = vunpack.c.h.b16 %v1525
      %v2891 = vunpack.c.l.b16 %v1526
      %v2892 = vunpack.c.h.b16 %v1526
      %v2893 = vunpack.c.l.b16 %v1527
      %v2894 = vunpack.c.h.b16 %v1527
      %v2895 = vunpack.c.l.b16 %v1528
      %v2896 = vunpack.c.h.b16 %v1528
      %v2897 = vunpack.c.l.b16 %v1529
      %v2898 = vunpack.c.h.b16 %v1529
      %v2899 = vunpack.c.l.b16 %v1530
      %v2900 = vunpack.c.h.b16 %v1530
      %v2901 = vunpack.c.l.b16 %v1531
      %v2902 = vunpack.c.h.b16 %v1531
      %v2903 = vunpack.c.l.b16 %v1532
      %v2904 = vunpack.c.h.b16 %v1532
      %v2905 = vunpack.c.l.b16 %v1533
      %v2906 = vunpack.c.h.b16 %v1533
      %v2907 = vunpack.c.l.b16 %v1534
      %v2908 = vunpack.c.h.b16 %v1534
      %v2909 = vunpack.c.l.b16 %v1535
      %v2910 = vunpack.c.h.b16 %v1535
      %v2911 = vunpack.c.l.b16 %v1536
      %v2912 = vunpack.c.h.b16 %v1536
      %v2913 = vunpack.c.l.b16 %v1537
      %v2914 = vunpack.c.h.b16 %v1537
      %v2915 = vunpack.c.l.b16 %v1538
      %v2916 = vunpack.c.h.b16 %v1538
      %v2917 = vunpack.c.l.b16 %v1539
      %v2918 = vunpack.c.h.b16 %v1539
      %v2919 = vunpack.c.l.b16 %v1540
      %v2920 = vunpack.c.h.b16 %v1540
      %v2921 = vunpack.c.l.b16 %v1541
      %v2922 = vunpack.c.h.b16 %v1541
      %v2923 = vunpack.c.l.b16 %v1542
      %v2924 = vunpack.c.h.b16 %v1542
      %v2925 = vunpack.c.l.b16 %v1543
      %v2926 = vunpack.c.h.b16 %v1543
      %v2927 = vunpack.c.l.b16 %v1544
      %v2928 = vunpack.c.h.b16 %v1544
      %v2929 = vunpack.c.l.b16 %v1545
      %v2930 = vunpack.c.h.b16 %v1545
      %v2931 = vunpack.c.l.b16 %v1546
      %v2932 = vunpack.c.h.b16 %v1546
      %v2933 = vunpack.c.l.b16 %v1547
      %v2934 = vunpack.c.h.b16 %v1547
      %v2935 = vunpack.c.l.b16 %v1548
      %v2936 = vunpack.c.h.b16 %v1548
      %v2937 = vunpack.c.l.b16 %v1549
      %v2938 = vunpack.c.h.b16 %v1549
      %v2939 = vunpack.c.l.b16 %v1550
      %v2940 = vunpack.c.h.b16 %v1550
      %v2941 = vunpack.c.l.b16 %v1551
      %v2942 = vunpack.c.h.b16 %v1551
      %v2943 = vunpack.c.l.b16 %v1552
      %v2944 = vunpack.c.h.b16 %v1552
      %v2945 = vunpack.c.l.b16 %v1553
      %v2946 = vunpack.c.h.b16 %v1553
      %v2947 = vunpack.c.l.b16 %v1554
      %v2948 = vunpack.c.h.b16 %v1554
      %v2949 = vunpack.c.l.b16 %v1555
      %v2950 = vunpack.c.h.b16 %v1555
      %v2951 = vunpack.c.l.b16 %v1556
      %v2952 = vunpack.c.h.b16 %v1556
      %v2953 = vunpack.c.l.b16 %v1557
      %v2954 = vunpack.c.h.b16 %v1557
      %v2955 = vunpack.c.l.b16 %v1558
      %v2956 = vunpack.c.h.b16 %v1558
      %v2957 = vunpack.c.l.b16 %v1559
      %v2958 = vunpack.c.h.b16 %v1559
      %v2959 = vunpack.c.l.b16 %v1560
      %v2960 = vunpack.c.h.b16 %v1560
      %v2961 = vunpack.c.l.b16 %v1561
      %v2962 = vunpack.c.h.b16 %v1561
      %v2963 = vunpack.c.l.b16 %v1562
      %v2964 = vunpack.c.h.b16 %v1562
      %v2965 = vunpack.c.l.b16 %v1563
      %v2966 = vunpack.c.h.b16 %v1563
      %v2967 = vunpack.c.l.b16 %v1564
      %v2968 = vunpack.c.h.b16 %v1564
      %v2969 = vunpack.c.l.b16 %v1565
      %v2970 = vunpack.c.h.b16 %v1565
      %v2971 = vunpack.c.l.b16 %v1566
      %v2972 = vunpack.c.h.b16 %v1566
      %v2973 = vunpack.c.l.b16 %v1567
      %v2974 = vunpack.c.h.b16 %v1567
      %v2975 = vunpack.c.l.b16 %v1568
      %v2976 = vunpack.c.h.b16 %v1568
      %v2977 = vunpack.c.l.b16 %v1569
      %v2978 = vunpack.c.h.b16 %v1569
      %v2979 = vunpack.c.l.b16 %v1570
      %v2980 = vunpack.c.h.b16 %v1570
      %v2981 = vunpack.c.l.b16 %v1571
      %v2982 = vunpack.c.h.b16 %v1571
      %v2983 = vunpack.c.l.b16 %v1572
      %v2984 = vunpack.c.h.b16 %v1572
      %v2985 = vunpack.c.l.b16 %v1573
      %v2986 = vunpack.c.h.b16 %v1573
      %v2987 = vunpack.c.l.b16 %v1574
      %v2988 = vunpack.c.h.b16 %v1574
      %v2989 = vunpack.c.l.b16 %v1575
      %v2990 = vunpack.c.h.b16 %v1575
      %v2991 = vunpack.c.l.b16 %v1576
      %v2992 = vunpack.c.h.b16 %v1576
      %v2993 = vunpack.c.l.b16 %v1577
      %v2994 = vunpack.c.h.b16 %v1577
      %v2995 = vunpack.c.l.b16 %v1578
      %v2996 = vunpack.c.h.b16 %v1578
      %v2997 = vunpack.c.l.b16 %v1579
      %v2998 = vunpack.c.h.b16 %v1579
      %v2999 = vunpack.c.l.b16 %v1580
      %v3000 = vunpack.c.h.b16 %v1580
      %v3001 = vunpack.c.l.b16 %v1581
      %v3002 = vunpack.c.h.b16 %v1581
      %v3003 = vunpack.c.l.b16 %v1582
      %v3004 = vunpack.c.h.b16 %v1582
      %v3005 = vunpack.c.l.b16 %v1583
      %v3006 = vunpack.c.h.b16 %v1583
      %v3007 = vunpack.c.l.b16 %v1584
      %v3008 = vunpack.c.h.b16 %v1584
      %v3009 = vunpack.c.l.b16 %v1585
      %v3010 = vunpack.c.h.b16 %v1585
      %v3011 = vunpack.c.l.b16 %v1586
      %v3012 = vunpack.c.h.b16 %v1586
      %v3013 = vunpack.c.l.b16 %v1587
      %v3014 = vunpack.c.h.b16 %v1587
      %v3015 = vunpack.c.l.b16 %v1588
      %v3016 = vunpack.c.h.b16 %v1588
      %v3017 = vunpack.c.l.b16 %v1589
      %v3018 = vunpack.c.h.b16 %v1589
      %v3019 = vunpack.c.l.b16 %v1590
      %v3020 = vunpack.c.h.b16 %v1590
      %v3021 = vunpack.c.l.b16 %v1591
      %v3022 = vunpack.c.h.b16 %v1591
      %v3023 = vunpack.c.l.b16 %v1592
      %v3024 = vunpack.c.h.b16 %v1592
      %v3025 = vunpack.c.l.b16 %v1593
      %v3026 = vunpack.c.h.b16 %v1593
      %v3027 = vunpack.c.l.b16 %v1594
      %v3028 = vunpack.c.h.b16 %v1594
      %v3029 = vunpack.c.l.b16 %v1595
      %v3030 = vunpack.c.h.b16 %v1595
      %v3031 = vunpack.c.l.b16 %v1596
      %v3032 = vunpack.c.h.b16 %v1596
      %v3033 = vunpack.c.l.b16 %v1597
      %v3034 = vunpack.c.h.b16 %v1597
      %v3035 = vunpack.c.l.b16 %v1598
      %v3036 = vunpack.c.h.b16 %v1598
      %v3037 = vunpack.c.l.b16 %v1599
      %v3038 = vunpack.c.h.b16 %v1599
      %v3039 = vunpack.c.l.b16 %v1600
      %v3040 = vunpack.c.h.b16 %v1600
      %v3041 = vunpack.c.l.b16 %v1601
      %v3042 = vunpack.c.h.b16 %v1601
      %v3043 = vunpack.c.l.b16 %v1602
      %v3044 = vunpack.c.h.b16 %v1602
      %v3045 = vunpack.c.l.b16 %v1603
      %v3046 = vunpack.c.h.b16 %v1603
      %v3047 = vunpack.c.l.b16 %v1604
      %v3048 = vunpack.c.h.b16 %v1604
      %v3049 = vunpack.c.l.b16 %v1605
      %v3050 = vunpack.c.h.b16 %v1605
      %v3051 = vunpack.c.l.b16 %v1606
      %v3052 = vunpack.c.h.b16 %v1606
      %v3053 = vunpack.c.l.b16 %v1607
      %v3054 = vunpack.c.h.b16 %v1607
      %v3055 = vunpack.c.l.b16 %v1608
      %v3056 = vunpack.c.h.b16 %v1608
      %v3057 = vunpack.c.l.b16 %v1609
      %v3058 = vunpack.c.h.b16 %v1609
      %v3059 = vunpack.c.l.b16 %v1610
      %v3060 = vunpack.c.h.b16 %v1610
      %v3061 = vunpack.c.l.b16 %v1611
      %v3062 = vunpack.c.h.b16 %v1611
      %v3063 = vunpack.c.l.b16 %v1612
      %v3064 = vunpack.c.h.b16 %v1612
      %v3065 = vunpack.c.l.b16 %v1613
      %v3066 = vunpack.c.h.b16 %v1613
      %v3067 = vunpack.c.l.b16 %v1614
      %v3068 = vunpack.c.h.b16 %v1614
      %v3069 = vunpack.c.l.b16 %v1615
      %v3070 = vunpack.c.h.b16 %v1615
      %v3071 = vunpack.c.l.b16 %v1616
      %v3072 = vunpack.c.h.b16 %v1616
      %v3073 = vunpack.c.l.b16 %v1617
      %v3074 = vunpack.c.h.b16 %v1617
      %v3075 = vunpack.c.l.b16 %v1618
      %v3076 = vunpack.c.h.b16 %v1618
      %v3077 = vunpack.c.l.b16 %v1619
      %v3078 = vunpack.c.h.b16 %v1619
      %v3079 = vunpack.c.l.b16 %v1620
      %v3080 = vunpack.c.h.b16 %v1620
      %v3081 = vunpack.c.l.b16 %v1621
      %v3082 = vunpack.c.h.b16 %v1621
      %v3083 = vunpack.c.l.b16 %v1622
      %v3084 = vunpack.c.h.b16 %v1622
      %v3085 = vunpack.c.l.b16 %v1623
      %v3086 = vunpack.c.h.b16 %v1623
      %v3087 = vunpack.c.l.b16 %v1624
      %v3088 = vunpack.c.h.b16 %v1624
      %v3089 = vunpack.c.l.b16 %v1625
      %v3090 = vunpack.c.h.b16 %v1625
      %v3091 = vunpack.c.l.b16 %v1626
      %v3092 = vunpack.c.h.b16 %v1626
      %v3093 = vunpack.c.l.b16 %v1627
      %v3094 = vunpack.c.h.b16 %v1627
      %v3095 = vunpack.c.l.b16 %v1628
      %v3096 = vunpack.c.h.b16 %v1628
      %v3097 = vunpack.c.l.b16 %v1629
      %v3098 = vunpack.c.h.b16 %v1629
      %v3099 = vunpack.c.l.b16 %v1630
      %v3100 = vunpack.c.h.b16 %v1630
      %v3101 = vunpack.c.l.b16 %v1631
      %v3102 = vunpack.c.h.b16 %v1631
      %v3103 = vunpack.c.l.b16 %v1632
      %v3104 = vunpack.c.h.b16 %v1632
      %v3105 = vunpack.c.l.b16 %v1633
      %v3106 = vunpack.c.h.b16 %v1633
      %v3107 = vunpack.c.l.b16 %v1634
      %v3108 = vunpack.c.h.b16 %v1634
      %v3109 = vunpack.c.l.b16 %v1635
      %v3110 = vunpack.c.h.b16 %v1635
      %v3111 = vunpack.c.l.b16 %v1636
      %v3112 = vunpack.c.h.b16 %v1636
      %v3113 = vunpack.c.l.b16 %v1637
      %v3114 = vunpack.c.h.b16 %v1637
      %v3115 = vunpack.c.l.b16 %v1638
      %v3116 = vunpack.c.h.b16 %v1638
      %v3117 = vunpack.c.l.b16 %v1639
      %v3118 = vunpack.c.h.b16 %v1639
      %v3119 = vunpack.c.l.b16 %v1640
      %v3120 = vunpack.c.h.b16 %v1640
      %v3121 = vunpack.c.l.b16 %v1641
      %v3122 = vunpack.c.h.b16 %v1641
      %v3123 = vunpack.c.l.b16 %v1642
      %v3124 = vunpack.c.h.b16 %v1642
      %v3125 = vunpack.c.l.b16 %v1643
      %v3126 = vunpack.c.h.b16 %v1643
      %v3127 = vunpack.c.l.b16 %v1644
      %v3128 = vunpack.c.h.b16 %v1644
      %v3129 = vunpack.c.l.b16 %v1645
      %v3130 = vunpack.c.h.b16 %v1645
      %v3131 = vunpack.c.l.b16 %v1646
      %v3132 = vunpack.c.h.b16 %v1646
      %v3133 = vunpack.c.l.b16 %v1647
      %v3134 = vunpack.c.h.b16 %v1647
      %v3135 = vunpack.c.l.b16 %v1648
      %v3136 = vunpack.c.h.b16 %v1648
      %v3137 = vunpack.c.l.b16 %v1649
      %v3138 = vunpack.c.h.b16 %v1649
      %v3139 = vunpack.c.l.b16 %v1650
      %v3140 = vunpack.c.h.b16 %v1650
      %v3141 = vunpack.c.l.b16 %v1651
      %v3142 = vunpack.c.h.b16 %v1651
      %v3143 = vunpack.c.l.b16 %v1652
      %v3144 = vunpack.c.h.b16 %v1652
      %v3145 = vunpack.c.l.b16 %v1653
      %v3146 = vunpack.c.h.b16 %v1653
      %v3147 = vunpack.c.l.b16 %v1654
      %v3148 = vunpack.c.h.b16 %v1654
      %v3149 = vunpack.c.l.b16 %v1655
      %v3150 = vunpack.c.h.b16 %v1655
      %v3151 = vunpack.c.l.b16 %v1656
      %v3152 = vunpack.c.h.b16 %v1656
      %v3153 = vunpack.c.l.b16 %v1657
      %v3154 = vunpack.c.h.b16 %v1657
      %v3155 = vunpack.c.l.b16 %v1658
      %v3156 = vunpack.c.h.b16 %v1658
      %v3157 = vunpack.c.l.b16 %v1659
      %v3158 = vunpack.c.h.b16 %v1659
      %v3159 = vunpack.c.l.b16 %v1660
      %v3160 = vunpack.c.h.b16 %v1660
      %v3161 = vunpack.c.l.b16 %v1661
      %v3162 = vunpack.c.h.b16 %v1661
      %v3163 = vunpack.c.l.b16 %v1662
      %v3164 = vunpack.c.h.b16 %v1662
      %v3165 = vunpack.c.l.b16 %v1663
      %v3166 = vunpack.c.h.b16 %v1663
      %v3167 = vunpack.c.l.b16 %v1664
      %v3168 = vunpack.c.h.b16 %v1664
      %v3169 = vunpack.c.l.b16 %v1665
      %v3170 = vunpack.c.h.b16 %v1665
      %v3171 = vunpack.c.l.b16 %v1666
      %v3172 = vunpack.c.h.b16 %v1666
      %v3173 = vunpack.c.l.b16 %v1667
      %v3174 = vunpack.c.h.b16 %v1667
      %v3175 = vunpack.c.l.b16 %v1668
      %v3176 = vunpack.c.h.b16 %v1668
      %v3177 = vunpack.c.l.b16 %v1669
      %v3178 = vunpack.c.h.b16 %v1669
      %v3179 = vunpack.c.l.b16 %v1670
      %v3180 = vunpack.c.h.b16 %v1670
      %v3181 = vunpack.c.l.b16 %v1671
      %v3182 = vunpack.c.h.b16 %v1671
      %v3183 = vunpack.c.l.b16 %v1672
      %v3184 = vunpack.c.h.b16 %v1672
      %v3185 = vunpack.c.l.b16 %v1673
      %v3186 = vunpack.c.h.b16 %v1673
      %v3187 = vunpack.c.l.b16 %v1674
      %v3188 = vunpack.c.h.b16 %v1674
      %v3189 = vunpack.c.l.b16 %v1675
      %v3190 = vunpack.c.h.b16 %v1675
      %v3191 = vunpack.c.l.b16 %v1676
      %v3192 = vunpack.c.h.b16 %v1676
      %v3193 = vunpack.c.l.b16 %v1677
      %v3194 = vunpack.c.h.b16 %v1677
      %v3195 = vunpack.c.l.b16 %v1678
      %v3196 = vunpack.c.h.b16 %v1678
      %v3197 = vunpack.c.l.b16 %v1679
      %v3198 = vunpack.c.h.b16 %v1679
      %v3199 = vunpack.c.l.b16 %v1680
      %v3200 = vunpack.c.h.b16 %v1680
      %v3201 = vunpack.c.l.b16 %v1681
      %v3202 = vunpack.c.h.b16 %v1681
      %v3203 = vunpack.c.l.b16 %v1682
      %v3204 = vunpack.c.h.b16 %v1682
      %v3205 = vunpack.c.l.b16 %v1683
      %v3206 = vunpack.c.h.b16 %v1683
      %v3207 = vunpack.c.l.b16 %v1684
      %v3208 = vunpack.c.h.b16 %v1684
      %v3209 = vunpack.c.l.b16 %v1685
      %v3210 = vunpack.c.h.b16 %v1685
      %v3211 = vunpack.c.l.b16 %v1686
      %v3212 = vunpack.c.h.b16 %v1686
      %v3213 = vunpack.c.l.b16 %v1687
      %v3214 = vunpack.c.h.b16 %v1687
      %v3215 = vunpack.c.l.b16 %v1688
      %v3216 = vunpack.c.h.b16 %v1688
      %v3217 = vunpack.c.l.b16 %v1689
      %v3218 = vunpack.c.h.b16 %v1689
      %v3219 = vunpack.c.l.b16 %v1690
      %v3220 = vunpack.c.h.b16 %v1690
      %v3221 = vunpack.c.l.b16 %v1691
      %v3222 = vunpack.c.h.b16 %v1691
      %v3223 = vunpack.c.l.b16 %v1692
      %v3224 = vunpack.c.h.b16 %v1692
      %v3225 = vunpack.c.l.b16 %v1693
      %v3226 = vunpack.c.h.b16 %v1693
      %v3227 = vunpack.c.l.b16 %v1694
      %v3228 = vunpack.c.h.b16 %v1694
      %v3229 = vunpack.c.l.b16 %v1695
      %v3230 = vunpack.c.h.b16 %v1695
      %v3231 = vunpack.c.l.b16 %v1696
      %v3232 = vunpack.c.h.b16 %v1696
      %v3233 = vunpack.c.l.b16 %v1697
      %v3234 = vunpack.c.h.b16 %v1697
      %v3235 = vunpack.c.l.b16 %v1698
      %v3236 = vunpack.c.h.b16 %v1698
      %v3237 = vunpack.c.l.b16 %v1699
      %v3238 = vunpack.c.h.b16 %v1699
      %v3239 = vunpack.c.l.b16 %v1700
      %v3240 = vunpack.c.h.b16 %v1700
      %v3241 = vunpack.c.l.b16 %v1701
      %v3242 = vunpack.c.h.b16 %v1701
      %v3243 = vunpack.c.l.b16 %v1702
      %v3244 = vunpack.c.h.b16 %v1702
      %v3245 = vunpack.c.l.b16 %v1703
      %v3246 = vunpack.c.h.b16 %v1703
      %v3247 = vunpack.c.l.b16 %v1704
      %v3248 = vunpack.c.h.b16 %v1704
      %v3249 = vunpack.c.l.b16 %v1705
      %v3250 = vunpack.c.h.b16 %v1705
      %v3251 = vunpack.c.l.b16 %v1706
      %v3252 = vunpack.c.h.b16 %v1706
      %v3253 = vunpack.c.l.b16 %v1707
      %v3254 = vunpack.c.h.b16 %v1707
      %v3255 = vunpack.c.l.b16 %v1708
      %v3256 = vunpack.c.h.b16 %v1708
      %v3257 = vunpack.c.l.b16 %v1709
      %v3258 = vunpack.c.h.b16 %v1709
      %v3259 = vunpack.c.l.b16 %v1710
      %v3260 = vunpack.c.h.b16 %v1710
      %v3261 = vunpack.c.l.b16 %v1711
      %v3262 = vunpack.c.h.b16 %v1711
      %v3263 = vunpack.c.l.b16 %v1712
      %v3264 = vunpack.c.h.b16 %v1712
      %v3265 = vunpack.c.l.b16 %v1713
      %v3266 = vunpack.c.h.b16 %v1713
      %v3267 = vunpack.c.l.b16 %v1714
      %v3268 = vunpack.c.h.b16 %v1714
      %v3269 = vpack.c.b16 %v2253, %v2245
      %v3270 = vpack.c.b16 %v2254, %v2246
      %v3271 = vpack.c.b16 %v2255, %v2247
      %v3272 = vpack.c.b16 %v2256, %v2248
      %v3273 = vpack.c.b16 %v2257, %v2249
      %v3274 = vpack.c.b16 %v2258, %v2250
      %v3275 = vpack.c.b16 %v2259, %v2251
      %v3276 = vpack.c.b16 %v2260, %v2252
      %v3277 = vpack.c.b16 %v2269, %v2261
      %v3278 = vpack.c.b16 %v2270, %v2262
      %v3279 = vpack.c.b16 %v2271, %v2263
      %v3280 = vpack.c.b16 %v2272, %v2264
      %v3281 = vpack.c.b16 %v2273, %v2265
      %v3282 = vpack.c.b16 %v2274, %v2266
      %v3283 = vpack.c.b16 %v2275, %v2267
      %v3284 = vpack.c.b16 %v2276, %v2268
      %v3285 = vpack.c.b16 %v2285, %v2277
      %v3286 = vpack.c.b16 %v2286, %v2278
      %v3287 = vpack.c.b16 %v2287, %v2279
      %v3288 = vpack.c.b16 %v2288, %v2280
      %v3289 = vpack.c.b16 %v2289, %v2281
      %v3290 = vpack.c.b16 %v2290, %v2282
      %v3291 = vpack.c.b16 %v2291, %v2283
      %v3292 = vpack.c.b16 %v2292, %v2284
      %v3293 = vpack.c.b16 %v2301, %v2293
      %v3294 = vpack.c.b16 %v2302, %v2294
      %v3295 = vpack.c.b16 %v2303, %v2295
      %v3296 = vpack.c.b16 %v2304, %v2296
      %v3297 = vpack.c.b16 %v2305, %v2297
      %v3298 = vpack.c.b16 %v2306, %v2298
      %v3299 = vpack.c.b16 %v2307, %v2299
      %v3300 = vpack.c.b16 %v2308, %v2300
      %v3301 = vpack.c.b16 %v2317, %v2309
      %v3302 = vpack.c.b16 %v2318, %v2310
      %v3303 = vpack.c.b16 %v2319, %v2311
      %v3304 = vpack.c.b16 %v2320, %v2312
      %v3305 = vpack.c.b16 %v2321, %v2313
      %v3306 = vpack.c.b16 %v2322, %v2314
      %v3307 = vpack.c.b16 %v2323, %v2315
      %v3308 = vpack.c.b16 %v2324, %v2316
      %v3309 = vpack.c.b16 %v2333, %v2325
      %v3310 = vpack.c.b16 %v2334, %v2326
      %v3311 = vpack.c.b16 %v2335, %v2327
      %v3312 = vpack.c.b16 %v2336, %v2328
      %v3313 = vpack.c.b16 %v2337, %v2329
      %v3314 = vpack.c.b16 %v2338, %v2330
      %v3315 = vpack.c.b16 %v2339, %v2331
      %v3316 = vpack.c.b16 %v2340, %v2332
      %v3317 = vpack.c.b16 %v2349, %v2341
      %v3318 = vpack.c.b16 %v2350, %v2342
      %v3319 = vpack.c.b16 %v2351, %v2343
      %v3320 = vpack.c.b16 %v2352, %v2344
      %v3321 = vpack.c.b16 %v2353, %v2345
      %v3322 = vpack.c.b16 %v2354, %v2346
      %v3323 = vpack.c.b16 %v2355, %v2347
      %v3324 = vpack.c.b16 %v2356, %v2348
      %v3325 = vpack.c.b16 %v2365, %v2357
      %v3326 = vpack.c.b16 %v2366, %v2358
      %v3327 = vpack.c.b16 %v2367, %v2359
      %v3328 = vpack.c.b16 %v2368, %v2360
      %v3329 = vpack.c.b16 %v2369, %v2361
      %v3330 = vpack.c.b16 %v2370, %v2362
      %v3331 = vpack.c.b16 %v2371, %v2363
      %v3332 = vpack.c.b16 %v2372, %v2364
      %v3333 = vpack.c.b16 %v2381, %v2373
      %v3334 = vpack.c.b16 %v2382, %v2374
      %v3335 = vpack.c.b16 %v2383, %v2375
      %v3336 = vpack.c.b16 %v2384, %v2376
      %v3337 = vpack.c.b16 %v2385, %v2377
      %v3338 = vpack.c.b16 %v2386, %v2378
      %v3339 = vpack.c.b16 %v2387, %v2379
      %v3340 = vpack.c.b16 %v2388, %v2380
      %v3341 = vpack.c.b16 %v2397, %v2389
      %v3342 = vpack.c.b16 %v2398, %v2390
      %v3343 = vpack.c.b16 %v2399, %v2391
      %v3344 = vpack.c.b16 %v2400, %v2392
      %v3345 = vpack.c.b16 %v2401, %v2393
      %v3346 = vpack.c.b16 %v2402, %v2394
      %v3347 = vpack.c.b16 %v2403, %v2395
      %v3348 = vpack.c.b16 %v2404, %v2396
      %v3349 = vpack.c.b16 %v2413, %v2405
      %v3350 = vpack.c.b16 %v2414, %v2406
      %v3351 = vpack.c.b16 %v2415, %v2407
      %v3352 = vpack.c.b16 %v2416, %v2408
      %v3353 = vpack.c.b16 %v2417, %v2409
      %v3354 = vpack.c.b16 %v2418, %v2410
      %v3355 = vpack.c.b16 %v2419, %v2411
      %v3356 = vpack.c.b16 %v2420, %v2412
      %v3357 = vpack.c.b16 %v2429, %v2421
      %v3358 = vpack.c.b16 %v2430, %v2422
      %v3359 = vpack.c.b16 %v2431, %v2423
      %v3360 = vpack.c.b16 %v2432, %v2424
      %v3361 = vpack.c.b16 %v2433, %v2425
      %v3362 = vpack.c.b16 %v2434, %v2426
      %v3363 = vpack.c.b16 %v2435, %v2427
      %v3364 = vpack.c.b16 %v2436, %v2428
      %v3365 = vpack.c.b16 %v2445, %v2437
      %v3366 = vpack.c.b16 %v2446, %v2438
      %v3367 = vpack.c.b16 %v2447, %v2439
      %v3368 = vpack.c.b16 %v2448, %v2440
      %v3369 = vpack.c.b16 %v2449, %v2441
      %v3370 = vpack.c.b16 %v2450, %v2442
      %v3371 = vpack.c.b16 %v2451, %v2443
      %v3372 = vpack.c.b16 %v2452, %v2444
      %v3373 = vpack.c.b16 %v2461, %v2453
      %v3374 = vpack.c.b16 %v2462, %v2454
      %v3375 = vpack.c.b16 %v2463, %v2455
      %v3376 = vpack.c.b16 %v2464, %v2456
      %v3377 = vpack.c.b16 %v2465, %v2457
      %v3378 = vpack.c.b16 %v2466, %v2458
      %v3379 = vpack.c.b16 %v2467, %v2459
      %v3380 = vpack.c.b16 %v2468, %v2460
      %v3381 = vpack.c.b16 %v2477, %v2469
      %v3382 = vpack.c.b16 %v2478, %v2470
      %v3383 = vpack.c.b16 %v2479, %v2471
      %v3384 = vpack.c.b16 %v2480, %v2472
      %v3385 = vpack.c.b16 %v2481, %v2473
      %v3386 = vpack.c.b16 %v2482, %v2474
      %v3387 = vpack.c.b16 %v2483, %v2475
      %v3388 = vpack.c.b16 %v2484, %v2476
      %v3389 = vpack.c.b16 %v2493, %v2485
      %v3390 = vpack.c.b16 %v2494, %v2486
      %v3391 = vpack.c.b16 %v2495, %v2487
      %v3392 = vpack.c.b16 %v2496, %v2488
      %v3393 = vpack.c.b16 %v2497, %v2489
      %v3394 = vpack.c.b16 %v2498, %v2490
      %v3395 = vpack.c.b16 %v2499, %v2491
      %v3396 = vpack.c.b16 %v2500, %v2492
      %v3397 = vpack.c.b16 %v2509, %v2501
      %v3398 = vpack.c.b16 %v2510, %v2502
      %v3399 = vpack.c.b16 %v2511, %v2503
      %v3400 = vpack.c.b16 %v2512, %v2504
      %v3401 = vpack.c.b16 %v2513, %v2505
      %v3402 = vpack.c.b16 %v2514, %v2506
      %v3403 = vpack.c.b16 %v2515, %v2507
      %v3404 = vpack.c.b16 %v2516, %v2508
      %v3405 = vpack.c.b16 %v2525, %v2517
      %v3406 = vpack.c.b16 %v2526, %v2518
      %v3407 = vpack.c.b16 %v2527, %v2519
      %v3408 = vpack.c.b16 %v2528, %v2520
      %v3409 = vpack.c.b16 %v2529, %v2521
      %v3410 = vpack.c.b16 %v2530, %v2522
      %v3411 = vpack.c.b16 %v2531, %v2523
      %v3412 = vpack.c.b16 %v2532, %v2524
      %v3413 = vpack.c.b16 %v2541, %v2533
      %v3414 = vpack.c.b16 %v2542, %v2534
      %v3415 = vpack.c.b16 %v2543, %v2535
      %v3416 = vpack.c.b16 %v2544, %v2536
      %v3417 = vpack.c.b16 %v2545, %v2537
      %v3418 = vpack.c.b16 %v2546, %v2538
      %v3419 = vpack.c.b16 %v2547, %v2539
      %v3420 = vpack.c.b16 %v2548, %v2540
      %v3421 = vpack.c.b16 %v2557, %v2549
      %v3422 = vpack.c.b16 %v2558, %v2550
      %v3423 = vpack.c.b16 %v2559, %v2551
      %v3424 = vpack.c.b16 %v2560, %v2552
      %v3425 = vpack.c.b16 %v2561, %v2553
      %v3426 = vpack.c.b16 %v2562, %v2554
      %v3427 = vpack.c.b16 %v2563, %v2555
      %v3428 = vpack.c.b16 %v2564, %v2556
      %v3429 = vpack.c.b16 %v2573, %v2565
      %v3430 = vpack.c.b16 %v2574, %v2566
      %v3431 = vpack.c.b16 %v2575, %v2567
      %v3432 = vpack.c.b16 %v2576, %v2568
      %v3433 = vpack.c.b16 %v2577, %v2569
      %v3434 = vpack.c.b16 %v2578, %v2570
      %v3435 = vpack.c.b16 %v2579, %v2571
      %v3436 = vpack.c.b16 %v2580, %v2572
      %v3437 = vpack.c.b16 %v2589, %v2581
      %v3438 = vpack.c.b16 %v2590, %v2582
      %v3439 = vpack.c.b16 %v2591, %v2583
      %v3440 = vpack.c.b16 %v2592, %v2584
      %v3441 = vpack.c.b16 %v2593, %v2585
      %v3442 = vpack.c.b16 %v2594, %v2586
      %v3443 = vpack.c.b16 %v2595, %v2587
      %v3444 = vpack.c.b16 %v2596, %v2588
      %v3445 = vpack.c.b16 %v2605, %v2597
      %v3446 = vpack.c.b16 %v2606, %v2598
      %v3447 = vpack.c.b16 %v2607, %v2599
      %v3448 = vpack.c.b16 %v2608, %v2600
      %v3449 = vpack.c.b16 %v2609, %v2601
      %v3450 = vpack.c.b16 %v2610, %v2602
      %v3451 = vpack.c.b16 %v2611, %v2603
      %v3452 = vpack.c.b16 %v2612, %v2604
      %v3453 = vpack.c.b16 %v2621, %v2613
      %v3454 = vpack.c.b16 %v2622, %v2614
      %v3455 = vpack.c.b16 %v2623, %v2615
      %v3456 = vpack.c.b16 %v2624, %v2616
      %v3457 = vpack.c.b16 %v2625, %v2617
      %v3458 = vpack.c.b16 %v2626, %v2618
      %v3459 = vpack.c.b16 %v2627, %v2619
      %v3460 = vpack.c.b16 %v2628, %v2620
      %v3461 = vpack.c.b16 %v2637, %v2629
      %v3462 = vpack.c.b16 %v2638, %v2630
      %v3463 = vpack.c.b16 %v2639, %v2631
      %v3464 = vpack.c.b16 %v2640, %v2632
      %v3465 = vpack.c.b16 %v2641, %v2633
      %v3466 = vpack.c.b16 %v2642, %v2634
      %v3467 = vpack.c.b16 %v2643, %v2635
      %v3468 = vpack.c.b16 %v2644, %v2636
      %v3469 = vpack.c.b16 %v2653, %v2645
      %v3470 = vpack.c.b16 %v2654, %v2646
      %v3471 = vpack.c.b16 %v2655, %v2647
      %v3472 = vpack.c.b16 %v2656, %v2648
      %v3473 = vpack.c.b16 %v2657, %v2649
      %v3474 = vpack.c.b16 %v2658, %v2650
      %v3475 = vpack.c.b16 %v2659, %v2651
      %v3476 = vpack.c.b16 %v2660, %v2652
      %v3477 = vpack.c.b16 %v2669, %v2661
      %v3478 = vpack.c.b16 %v2670, %v2662
      %v3479 = vpack.c.b16 %v2671, %v2663
      %v3480 = vpack.c.b16 %v2672, %v2664
      %v3481 = vpack.c.b16 %v2673, %v2665
      %v3482 = vpack.c.b16 %v2674, %v2666
      %v3483 = vpack.c.b16 %v2675, %v2667
      %v3484 = vpack.c.b16 %v2676, %v2668
      %v3485 = vpack.c.b16 %v2685, %v2677
      %v3486 = vpack.c.b16 %v2686, %v2678
      %v3487 = vpack.c.b16 %v2687, %v2679
      %v3488 = vpack.c.b16 %v2688, %v2680
      %v3489 = vpack.c.b16 %v2689, %v2681
      %v3490 = vpack.c.b16 %v2690, %v2682
      %v3491 = vpack.c.b16 %v2691, %v2683
      %v3492 = vpack.c.b16 %v2692, %v2684
      %v3493 = vpack.c.b16 %v2701, %v2693
      %v3494 = vpack.c.b16 %v2702, %v2694
      %v3495 = vpack.c.b16 %v2703, %v2695
      %v3496 = vpack.c.b16 %v2704, %v2696
      %v3497 = vpack.c.b16 %v2705, %v2697
      %v3498 = vpack.c.b16 %v2706, %v2698
      %v3499 = vpack.c.b16 %v2707, %v2699
      %v3500 = vpack.c.b16 %v2708, %v2700
      %v3501 = vpack.c.b16 %v2717, %v2709
      %v3502 = vpack.c.b16 %v2718, %v2710
      %v3503 = vpack.c.b16 %v2719, %v2711
      %v3504 = vpack.c.b16 %v2720, %v2712
      %v3505 = vpack.c.b16 %v2721, %v2713
      %v3506 = vpack.c.b16 %v2722, %v2714
      %v3507 = vpack.c.b16 %v2723, %v2715
      %v3508 = vpack.c.b16 %v2724, %v2716
      %v3509 = vpack.c.b16 %v2733, %v2725
      %v3510 = vpack.c.b16 %v2734, %v2726
      %v3511 = vpack.c.b16 %v2735, %v2727
      %v3512 = vpack.c.b16 %v2736, %v2728
      %v3513 = vpack.c.b16 %v2737, %v2729
      %v3514 = vpack.c.b16 %v2738, %v2730
      %v3515 = vpack.c.b16 %v2739, %v2731
      %v3516 = vpack.c.b16 %v2740, %v2732
      %v3517 = vpack.c.b16 %v2749, %v2741
      %v3518 = vpack.c.b16 %v2750, %v2742
      %v3519 = vpack.c.b16 %v2751, %v2743
      %v3520 = vpack.c.b16 %v2752, %v2744
      %v3521 = vpack.c.b16 %v2753, %v2745
      %v3522 = vpack.c.b16 %v2754, %v2746
      %v3523 = vpack.c.b16 %v2755, %v2747
      %v3524 = vpack.c.b16 %v2756, %v2748
      %v3525 = vpack.c.b16 %v2765, %v2757
      %v3526 = vpack.c.b16 %v2766, %v2758
      %v3527 = vpack.c.b16 %v2767, %v2759
      %v3528 = vpack.c.b16 %v2768, %v2760
      %v3529 = vpack.c.b16 %v2769, %v2761
      %v3530 = vpack.c.b16 %v2770, %v2762
      %v3531 = vpack.c.b16 %v2771, %v2763
      %v3532 = vpack.c.b16 %v2772, %v2764
      %v3533 = vpack.c.b16 %v2781, %v2773
      %v3534 = vpack.c.b16 %v2782, %v2774
      %v3535 = vpack.c.b16 %v2783, %v2775
      %v3536 = vpack.c.b16 %v2784, %v2776
      %v3537 = vpack.c.b16 %v2785, %v2777
      %v3538 = vpack.c.b16 %v2786, %v2778
      %v3539 = vpack.c.b16 %v2787, %v2779
      %v3540 = vpack.c.b16 %v2788, %v2780
      %v3541 = vpack.c.b16 %v2797, %v2789
      %v3542 = vpack.c.b16 %v2798, %v2790
      %v3543 = vpack.c.b16 %v2799, %v2791
      %v3544 = vpack.c.b16 %v2800, %v2792
      %v3545 = vpack.c.b16 %v2801, %v2793
      %v3546 = vpack.c.b16 %v2802, %v2794
      %v3547 = vpack.c.b16 %v2803, %v2795
      %v3548 = vpack.c.b16 %v2804, %v2796
      %v3549 = vpack.c.b16 %v2813, %v2805
      %v3550 = vpack.c.b16 %v2814, %v2806
      %v3551 = vpack.c.b16 %v2815, %v2807
      %v3552 = vpack.c.b16 %v2816, %v2808
      %v3553 = vpack.c.b16 %v2817, %v2809
      %v3554 = vpack.c.b16 %v2818, %v2810
      %v3555 = vpack.c.b16 %v2819, %v2811
      %v3556 = vpack.c.b16 %v2820, %v2812
      %v3557 = vpack.c.b16 %v2829, %v2821
      %v3558 = vpack.c.b16 %v2830, %v2822
      %v3559 = vpack.c.b16 %v2831, %v2823
      %v3560 = vpack.c.b16 %v2832, %v2824
      %v3561 = vpack.c.b16 %v2833, %v2825
      %v3562 = vpack.c.b16 %v2834, %v2826
      %v3563 = vpack.c.b16 %v2835, %v2827
      %v3564 = vpack.c.b16 %v2836, %v2828
      %v3565 = vpack.c.b16 %v2845, %v2837
      %v3566 = vpack.c.b16 %v2846, %v2838
      %v3567 = vpack.c.b16 %v2847, %v2839
      %v3568 = vpack.c.b16 %v2848, %v2840
      %v3569 = vpack.c.b16 %v2849, %v2841
      %v3570 = vpack.c.b16 %v2850, %v2842
      %v3571 = vpack.c.b16 %v2851, %v2843
      %v3572 = vpack.c.b16 %v2852, %v2844
      %v3573 = vpack.c.b16 %v2861, %v2853
      %v3574 = vpack.c.b16 %v2862, %v2854
      %v3575 = vpack.c.b16 %v2863, %v2855
      %v3576 = vpack.c.b16 %v2864, %v2856
      %v3577 = vpack.c.b16 %v2865, %v2857
      %v3578 = vpack.c.b16 %v2866, %v2858
      %v3579 = vpack.c.b16 %v2867, %v2859
      %v3580 = vpack.c.b16 %v2868, %v2860
      %v3581 = vpack.c.b16 %v2877, %v2869
      %v3582 = vpack.c.b16 %v2878, %v2870
      %v3583 = vpack.c.b16 %v2879, %v2871
      %v3584 = vpack.c.b16 %v2880, %v2872
      %v3585 = vpack.c.b16 %v2881, %v2873
      %v3586 = vpack.c.b16 %v2882, %v2874
      %v3587 = vpack.c.b16 %v2883, %v2875
      %v3588 = vpack.c.b16 %v2884, %v2876
      %v3589 = vpack.c.b16 %v2893, %v2885
      %v3590 = vpack.c.b16 %v2894, %v2886
      %v3591 = vpack.c.b16 %v2895, %v2887
      %v3592 = vpack.c.b16 %v2896, %v2888
      %v3593 = vpack.c.b16 %v2897, %v2889
      %v3594 = vpack.c.b16 %v2898, %v2890
      %v3595 = vpack.c.b16 %v2899, %v2891
      %v3596 = vpack.c.b16 %v2900, %v2892
      %v3597 = vpack.c.b16 %v2909, %v2901
      %v3598 = vpack.c.b16 %v2910, %v2902
      %v3599 = vpack.c.b16 %v2911, %v2903
      %v3600 = vpack.c.b16 %v2912, %v2904
      %v3601 = vpack.c.b16 %v2913, %v2905
      %v3602 = vpack.c.b16 %v2914, %v2906
      %v3603 = vpack.c.b16 %v2915, %v2907
      %v3604 = vpack.c.b16 %v2916, %v2908
      %v3605 = vpack.c.b16 %v2925, %v2917
      %v3606 = vpack.c.b16 %v2926, %v2918
      %v3607 = vpack.c.b16 %v2927, %v2919
      %v3608 = vpack.c.b16 %v2928, %v2920
      %v3609 = vpack.c.b16 %v2929, %v2921
      %v3610 = vpack.c.b16 %v2930, %v2922
      %v3611 = vpack.c.b16 %v2931, %v2923
      %v3612 = vpack.c.b16 %v2932, %v2924
      %v3613 = vpack.c.b16 %v2941, %v2933
      %v3614 = vpack.c.b16 %v2942, %v2934
      %v3615 = vpack.c.b16 %v2943, %v2935
      %v3616 = vpack.c.b16 %v2944, %v2936
      %v3617 = vpack.c.b16 %v2945, %v2937
      %v3618 = vpack.c.b16 %v2946, %v2938
      %v3619 = vpack.c.b16 %v2947, %v2939
      %v3620 = vpack.c.b16 %v2948, %v2940
      %v3621 = vpack.c.b16 %v2957, %v2949
      %v3622 = vpack.c.b16 %v2958, %v2950
      %v3623 = vpack.c.b16 %v2959, %v2951
      %v3624 = vpack.c.b16 %v2960, %v2952
      %v3625 = vpack.c.b16 %v2961, %v2953
      %v3626 = vpack.c.b16 %v2962, %v2954
      %v3627 = vpack.c.b16 %v2963, %v2955
      %v3628 = vpack.c.b16 %v2964, %v2956
      %v3629 = vpack.c.b16 %v2973, %v2965
      %v3630 = vpack.c.b16 %v2974, %v2966
      %v3631 = vpack.c.b16 %v2975, %v2967
      %v3632 = vpack.c.b16 %v2976, %v2968
      %v3633 = vpack.c.b16 %v2977, %v2969
      %v3634 = vpack.c.b16 %v2978, %v2970
      %v3635 = vpack.c.b16 %v2979, %v2971
      %v3636 = vpack.c.b16 %v2980, %v2972
      %v3637 = vpack.c.b16 %v2989, %v2981
      %v3638 = vpack.c.b16 %v2990, %v2982
      %v3639 = vpack.c.b16 %v2991, %v2983
      %v3640 = vpack.c.b16 %v2992, %v2984
      %v3641 = vpack.c.b16 %v2993, %v2985
      %v3642 = vpack.c.b16 %v2994, %v2986
      %v3643 = vpack.c.b16 %v2995, %v2987
      %v3644 = vpack.c.b16 %v2996, %v2988
      %v3645 = vpack.c.b16 %v3005, %v2997
      %v3646 = vpack.c.b16 %v3006, %v2998
      %v3647 = vpack.c.b16 %v3007, %v2999
      %v3648 = vpack.c.b16 %v3008, %v3000
      %v3649 = vpack.c.b16 %v3009, %v3001
      %v3650 = vpack.c.b16 %v3010, %v3002
      %v3651 = vpack.c.b16 %v3011, %v3003
      %v3652 = vpack.c.b16 %v3012, %v3004
      %v3653 = vpack.c.b16 %v3021, %v3013
      %v3654 = vpack.c.b16 %v3022, %v3014
      %v3655 = vpack.c.b16 %v3023, %v3015
      %v3656 = vpack.c.b16 %v3024, %v3016
      %v3657 = vpack.c.b16 %v3025, %v3017
      %v3658 = vpack.c.b16 %v3026, %v3018
      %v3659 = vpack.c.b16 %v3027, %v3019
      %v3660 = vpack.c.b16 %v3028, %v3020
      %v3661 = vpack.c.b16 %v3037, %v3029
      %v3662 = vpack.c.b16 %v3038, %v3030
      %v3663 = vpack.c.b16 %v3039, %v3031
      %v3664 = vpack.c.b16 %v3040, %v3032
      %v3665 = vpack.c.b16 %v3041, %v3033
      %v3666 = vpack.c.b16 %v3042, %v3034
      %v3667 = vpack.c.b16 %v3043, %v3035
      %v3668 = vpack.c.b16 %v3044, %v3036
      %v3669 = vpack.c.b16 %v3053, %v3045
      %v3670 = vpack.c.b16 %v3054, %v3046
      %v3671 = vpack.c.b16 %v3055, %v3047
      %v3672 = vpack.c.b16 %v3056, %v3048
      %v3673 = vpack.c.b16 %v3057, %v3049
      %v3674 = vpack.c.b16 %v3058, %v3050
      %v3675 = vpack.c.b16 %v3059, %v3051
      %v3676 = vpack.c.b16 %v3060, %v3052
      %v3677 = vpack.c.b16 %v3069, %v3061
      %v3678 = vpack.c.b16 %v3070, %v3062
      %v3679 = vpack.c.b16 %v3071, %v3063
      %v3680 = vpack.c.b16 %v3072, %v3064
      %v3681 = vpack.c.b16 %v3073, %v3065
      %v3682 = vpack.c.b16 %v3074, %v3066
      %v3683 = vpack.c.b16 %v3075, %v3067
      %v3684 = vpack.c.b16 %v3076, %v3068
      %v3685 = vpack.c.b16 %v3085, %v3077
      %v3686 = vpack.c.b16 %v3086, %v3078
      %v3687 = vpack.c.b16 %v3087, %v3079
      %v3688 = vpack.c.b16 %v3088, %v3080
      %v3689 = vpack.c.b16 %v3089, %v3081
      %v3690 = vpack.c.b16 %v3090, %v3082
      %v3691 = vpack.c.b16 %v3091, %v3083
      %v3692 = vpack.c.b16 %v3092, %v3084
      %v3693 = vpack.c.b16 %v3101, %v3093
      %v3694 = vpack.c.b16 %v3102, %v3094
      %v3695 = vpack.c.b16 %v3103, %v3095
      %v3696 = vpack.c.b16 %v3104, %v3096
      %v3697 = vpack.c.b16 %v3105, %v3097
      %v3698 = vpack.c.b16 %v3106, %v3098
      %v3699 = vpack.c.b16 %v3107, %v3099
      %v3700 = vpack.c.b16 %v3108, %v3100
      %v3701 = vpack.c.b16 %v3117, %v3109
      %v3702 = vpack.c.b16 %v3118, %v3110
      %v3703 = vpack.c.b16 %v3119, %v3111
      %v3704 = vpack.c.b16 %v3120, %v3112
      %v3705 = vpack.c.b16 %v3121, %v3113
      %v3706 = vpack.c.b16 %v3122, %v3114
      %v3707 = vpack.c.b16 %v3123, %v3115
      %v3708 = vpack.c.b16 %v3124, %v3116
      %v3709 = vpack.c.b16 %v3133, %v3125
      %v3710 = vpack.c.b16 %v3134, %v3126
      %v3711 = vpack.c.b16 %v3135, %v3127
      %v3712 = vpack.c.b16 %v3136, %v3128
      %v3713 = vpack.c.b16 %v3137, %v3129
      %v3714 = vpack.c.b16 %v3138, %v3130
      %v3715 = vpack.c.b16 %v3139, %v3131
      %v3716 = vpack.c.b16 %v3140, %v3132
      %v3717 = vpack.c.b16 %v3149, %v3141
      %v3718 = vpack.c.b16 %v3150, %v3142
      %v3719 = vpack.c.b16 %v3151, %v3143
      %v3720 = vpack.c.b16 %v3152, %v3144
      %v3721 = vpack.c.b16 %v3153, %v3145
      %v3722 = vpack.c.b16 %v3154, %v3146
      %v3723 = vpack.c.b16 %v3155, %v3147
      %v3724 = vpack.c.b16 %v3156, %v3148
      %v3725 = vpack.c.b16 %v3165, %v3157
      %v3726 = vpack.c.b16 %v3166, %v3158
      %v3727 = vpack.c.b16 %v3167, %v3159
      %v3728 = vpack.c.b16 %v3168, %v3160
      %v3729 = vpack.c.b16 %v3169, %v3161
      %v3730 = vpack.c.b16 %v3170, %v3162
      %v3731 = vpack.c.b16 %v3171, %v3163
      %v3732 = vpack.c.b16 %v3172, %v3164
      %v3733 = vpack.c.b16 %v3181, %v3173
      %v3734 = vpack.c.b16 %v3182, %v3174
      %v3735 = vpack.c.b16 %v3183, %v3175
      %v3736 = vpack.c.b16 %v3184, %v3176
      %v3737 = vpack.c.b16 %v3185, %v3177
      %v3738 = vpack.c.b16 %v3186, %v3178
      %v3739 = vpack.c.b16 %v3187, %v3179
      %v3740 = vpack.c.b16 %v3188, %v3180
      %v3741 = vpack.c.b16 %v3197, %v3189
      %v3742 = vpack.c.b16 %v3198, %v3190
      %v3743 = vpack.c.b16 %v3199, %v3191
      %v3744 = vpack.c.b16 %v3200, %v3192
      %v3745 = vpack.c.b16 %v3201, %v3193
      %v3746 = vpack.c.b16 %v3202, %v3194
      %v3747 = vpack.c.b16 %v3203, %v3195
      %v3748 = vpack.c.b16 %v3204, %v3196
      %v3749 = vpack.c.b16 %v3213, %v3205
      %v3750 = vpack.c.b16 %v3214, %v3206
      %v3751 = vpack.c.b16 %v3215, %v3207
      %v3752 = vpack.c.b16 %v3216, %v3208
      %v3753 = vpack.c.b16 %v3217, %v3209
      %v3754 = vpack.c.b16 %v3218, %v3210
      %v3755 = vpack.c.b16 %v3219, %v3211
      %v3756 = vpack.c.b16 %v3220, %v3212
      %v3757 = vpack.c.b16 %v3229, %v3221
      %v3758 = vpack.c.b16 %v3230, %v3222
      %v3759 = vpack.c.b16 %v3231, %v3223
      %v3760 = vpack.c.b16 %v3232, %v3224
      %v3761 = vpack.c.b16 %v3233, %v3225
      %v3762 = vpack.c.b16 %v3234, %v3226
      %v3763 = vpack.c.b16 %v3235, %v3227
      %v3764 = vpack.c.b16 %v3236, %v3228
      %v3765 = vpack.c.b16 %v3245, %v3237
      %v3766 = vpack.c.b16 %v3246, %v3238
      %v3767 = vpack.c.b16 %v3247, %v3239
      %v3768 = vpack.c.b16 %v3248, %v3240
      %v3769 = vpack.c.b16 %v3249, %v3241
      %v3770 = vpack.c.b16 %v3250, %v3242
      %v3771 = vpack.c.b16 %v3251, %v3243
      %v3772 = vpack.c.b16 %v3252, %v3244
      %v3773 = vpack.c.b16 %v3261, %v3253
      %v3774 = vpack.c.b16 %v3262, %v3254
      %v3775 = vpack.c.b16 %v3263, %v3255
      %v3776 = vpack.c.b16 %v3264, %v3256
      %v3777 = vpack.c.b16 %v3265, %v3257
      %v3778 = vpack.c.b16 %v3266, %v3258
      %v3779 = vpack.c.b16 %v3267, %v3259
      %v3780 = vpack.c.b16 %v3268, %v3260
      %4293 = vmatpush.bf16.msra.mxu0 %v3325
      %4294 = vmatpush.bf16.msra.mxu0 %v3317
      %4295 = vmatpush.bf16.msra.mxu0 %v3309
      %4296 = vmatpush.bf16.msra.mxu0 %v3301
      %4297 = vmatpush.bf16.msra.mxu0 %v3293
      %4298 = vmatpush.bf16.msra.mxu0 %v3285
      %4299 = vmatpush.bf16.msra.mxu0 %v3277
      %4300 = vmatpush.bf16.msra.mxu0 %v3269
      %4301 = vmatmul.bf16.gmra.mxu0 %v1187
      %v4302 = vpop.f32.mrf.mxu0
      %v4303 = vadd.f32 %v1717, %v4302
      %v4304 = vpop.f32.mrf.mxu0
      %v4305 = vadd.f32 %v1717, %v4304
      %4306 = vmatmul.bf16.gmra.mxu0 %v1195
      %v4307 = vpop.f32.mrf.mxu0
      %v4308 = vadd.f32 %v1717, %v4307
      %v4309 = vpop.f32.mrf.mxu0
      %v4310 = vadd.f32 %v1717, %v4309
      %4311 = vdwg.mxu0
      %4312 = vmatpush.bf16.msra.mxu0 %v3389
      %4313 = vmatpush.bf16.msra.mxu0 %v3381
      %4314 = vmatpush.bf16.msra.mxu0 %v3373
      %4315 = vmatpush.bf16.msra.mxu0 %v3365
      %4316 = vmatpush.bf16.msra.mxu0 %v3357
      %4317 = vmatpush.bf16.msra.mxu0 %v3349
      %4318 = vmatpush.bf16.msra.mxu0 %v3341
      %4319 = vmatpush.bf16.msra.mxu0 %v3333
      %4320 = vmatmul.bf16.gmra.mxu0 %v1188
      %v4321 = vpop.f32.mrf.mxu0
      %v4322 = vadd.f32 %v4303, %v4321
      %v4323 = vpop.f32.mrf.mxu0
      %v4324 = vadd.f32 %v4305, %v4323
      %4325 = vmatmul.bf16.gmra.mxu0 %v1196
      %v4326 = vpop.f32.mrf.mxu0
      %v4327 = vadd.f32 %v4308, %v4326
      %v4328 = vpop.f32.mrf.mxu0
      %v4329 = vadd.f32 %v4310, %v4328
      %4330 = vdwg.mxu0
      %4331 = vmatpush.bf16.msra.mxu0 %v3453
      %4332 = vmatpush.bf16.msra.mxu0 %v3445
      %4333 = vmatpush.bf16.msra.mxu0 %v3437
      %4334 = vmatpush.bf16.msra.mxu0 %v3429
      %4335 = vmatpush.bf16.msra.mxu0 %v3421
      %4336 = vmatpush.bf16.msra.mxu0 %v3413
      %4337 = vmatpush.bf16.msra.mxu0 %v3405
      %4338 = vmatpush.bf16.msra.mxu0 %v3397
      %4339 = vmatmul.bf16.gmra.mxu0 %v1189
      %v4340 = vpop.f32.mrf.mxu0
      %v4341 = vadd.f32 %v4322, %v4340
      %v4342 = vpop.f32.mrf.mxu0
      %v4343 = vadd.f32 %v4324, %v4342
      %4344 = vmatmul.bf16.gmra.mxu0 %v1197
      %v4345 = vpop.f32.mrf.mxu0
      %v4346 = vadd.f32 %v4327, %v4345
      %v4347 = vpop.f32.mrf.mxu0
      %v4348 = vadd.f32 %v4329, %v4347
      %4349 = vdwg.mxu0
      %4350 = vmatpush.bf16.msra.mxu0 %v3517
      %4351 = vmatpush.bf16.msra.mxu0 %v3509
      %4352 = vmatpush.bf16.msra.mxu0 %v3501
      %4353 = vmatpush.bf16.msra.mxu0 %v3493
      %4354 = vmatpush.bf16.msra.mxu0 %v3485
      %4355 = vmatpush.bf16.msra.mxu0 %v3477
      %4356 = vmatpush.bf16.msra.mxu0 %v3469
      %4357 = vmatpush.bf16.msra.mxu0 %v3461
      %4358 = vmatmul.bf16.gmra.mxu0 %v1190
      %v4359 = vpop.f32.mrf.mxu0
      %v4360 = vadd.f32 %v4341, %v4359
      %v4361 = vpop.f32.mrf.mxu0
      %v4362 = vadd.f32 %v4343, %v4361
      %4363 = vmatmul.bf16.gmra.mxu0 %v1198
      %v4364 = vpop.f32.mrf.mxu0
      %v4365 = vadd.f32 %v4346, %v4364
      %v4366 = vpop.f32.mrf.mxu0
      %v4367 = vadd.f32 %v4348, %v4366
      %4368 = vdwg.mxu0
      %4369 = vmatpush.bf16.msra.mxu0 %v3581
      %4370 = vmatpush.bf16.msra.mxu0 %v3573
      %4371 = vmatpush.bf16.msra.mxu0 %v3565
      %4372 = vmatpush.bf16.msra.mxu0 %v3557
      %4373 = vmatpush.bf16.msra.mxu0 %v3549
      %4374 = vmatpush.bf16.msra.mxu0 %v3541
      %4375 = vmatpush.bf16.msra.mxu0 %v3533
      %4376 = vmatpush.bf16.msra.mxu0 %v3525
      %4377 = vmatmul.bf16.gmra.mxu0 %v1191
      %v4378 = vpop.f32.mrf.mxu0
      %v4379 = vadd.f32 %v4360, %v4378
      %v4380 = vpop.f32.mrf.mxu0
      %v4381 = vadd.f32 %v4362, %v4380
      %4382 = vmatmul.bf16.gmra.mxu0 %v1199
      %v4383 = vpop.f32.mrf.mxu0
      %v4384 = vadd.f32 %v4365, %v4383
      %v4385 = vpop.f32.mrf.mxu0
      %v4386 = vadd.f32 %v4367, %v4385
      %4387 = vdwg.mxu0
      %4388 = vmatpush.bf16.msra.mxu0 %v3645
      %4389 = vmatpush.bf16.msra.mxu0 %v3637
      %4390 = vmatpush.bf16.msra.mxu0 %v3629
      %4391 = vmatpush.bf16.msra.mxu0 %v3621
      %4392 = vmatpush.bf16.msra.mxu0 %v3613
      %4393 = vmatpush.bf16.msra.mxu0 %v3605
      %4394 = vmatpush.bf16.msra.mxu0 %v3597
      %4395 = vmatpush.bf16.msra.mxu0 %v3589
      %4396 = vmatmul.bf16.gmra.mxu0 %v1192
      %v4397 = vpop.f32.mrf.mxu0
      %v4398 = vadd.f32 %v4379, %v4397
      %v4399 = vpop.f32.mrf.mxu0
      %v4400 = vadd.f32 %v4381, %v4399
      %4401 = vmatmul.bf16.gmra.mxu0 %v1200
      %v4402 = vpop.f32.mrf.mxu0
      %v4403 = vadd.f32 %v4384, %v4402
      %v4404 = vpop.f32.mrf.mxu0
      %v4405 = vadd.f32 %v4386, %v4404
      %4406 = vdwg.mxu0
      %4407 = vmatpush.bf16.msra.mxu0 %v3709
      %4408 = vmatpush.bf16.msra.mxu0 %v3701
      %4409 = vmatpush.bf16.msra.mxu0 %v3693
      %4410 = vmatpush.bf16.msra.mxu0 %v3685
      %4411 = vmatpush.bf16.msra.mxu0 %v3677
      %4412 = vmatpush.bf16.msra.mxu0 %v3669
      %4413 = vmatpush.bf16.msra.mxu0 %v3661
      %4414 = vmatpush.bf16.msra.mxu0 %v3653
      %4415 = vmatmul.bf16.gmra.mxu0 %v1193
      %v4416 = vpop.f32.mrf.mxu0
      %v4417 = vadd.f32 %v4398, %v4416
      %v4418 = vpop.f32.mrf.mxu0
      %v4419 = vadd.f32 %v4400, %v4418
      %4420 = vmatmul.bf16.gmra.mxu0 %v1201
      %v4421 = vpop.f32.mrf.mxu0
      %v4422 = vadd.f32 %v4403, %v4421
      %v4423 = vpop.f32.mrf.mxu0
      %v4424 = vadd.f32 %v4405, %v4423
      %4425 = vdwg.mxu0
      %4426 = vmatpush.bf16.msra.mxu0 %v3773
      %4427 = vmatpush.bf16.msra.mxu0 %v3765
      %4428 = vmatpush.bf16.msra.mxu0 %v3757
      %4429 = vmatpush.bf16.msra.mxu0 %v3749
      %4430 = vmatpush.bf16.msra.mxu0 %v3741
      %4431 = vmatpush.bf16.msra.mxu0 %v3733
      %4432 = vmatpush.bf16.msra.mxu0 %v3725
      %4433 = vmatpush.bf16.msra.mxu0 %v3717
      %4434 = vmatmul.bf16.gmra.mxu0 %v1194
      %v4435 = vpop.f32.mrf.mxu0
      %v4436 = vadd.f32 %v4417, %v4435
      %v4437 = vpop.f32.mrf.mxu0
      %v4438 = vadd.f32 %v4419, %v4437
      %4439 = vmatmul.bf16.gmra.mxu0 %v1202
      %v4440 = vpop.f32.mrf.mxu0
      %v4441 = vadd.f32 %v4422, %v4440
      %v4442 = vpop.f32.mrf.mxu0
      %v4443 = vadd.f32 %v4424, %v4442
      %4444 = vdwg.mxu0
      %4445 = vmatpush.bf16.msra.mxu0 %v3326
      %4446 = vmatpush.bf16.msra.mxu0 %v3318
      %4447 = vmatpush.bf16.msra.mxu0 %v3310
      %4448 = vmatpush.bf16.msra.mxu0 %v3302
      %4449 = vmatpush.bf16.msra.mxu0 %v3294
      %4450 = vmatpush.bf16.msra.mxu0 %v3286
      %4451 = vmatpush.bf16.msra.mxu0 %v3278
      %4452 = vmatpush.bf16.msra.mxu0 %v3270
      %4453 = vmatmul.bf16.gmra.mxu0 %v1187
      %v4454 = vpop.f32.mrf.mxu0
      %v4455 = vadd.f32 %v1718, %v4454
      %v4456 = vpop.f32.mrf.mxu0
      %v4457 = vadd.f32 %v1718, %v4456
      %4458 = vmatmul.bf16.gmra.mxu0 %v1195
      %v4459 = vpop.f32.mrf.mxu0
      %v4460 = vadd.f32 %v1718, %v4459
      %v4461 = vpop.f32.mrf.mxu0
      %v4462 = vadd.f32 %v1718, %v4461
      %4463 = vdwg.mxu0
      %4464 = vmatpush.bf16.msra.mxu0 %v3390
      %4465 = vmatpush.bf16.msra.mxu0 %v3382
      %4466 = vmatpush.bf16.msra.mxu0 %v3374
      %4467 = vmatpush.bf16.msra.mxu0 %v3366
      %4468 = vmatpush.bf16.msra.mxu0 %v3358
      %4469 = vmatpush.bf16.msra.mxu0 %v3350
      %4470 = vmatpush.bf16.msra.mxu0 %v3342
      %4471 = vmatpush.bf16.msra.mxu0 %v3334
      %4472 = vmatmul.bf16.gmra.mxu0 %v1188
      %v4473 = vpop.f32.mrf.mxu0
      %v4474 = vadd.f32 %v4455, %v4473
      %v4475 = vpop.f32.mrf.mxu0
      %v4476 = vadd.f32 %v4457, %v4475
      %4477 = vmatmul.bf16.gmra.mxu0 %v1196
      %v4478 = vpop.f32.mrf.mxu0
      %v4479 = vadd.f32 %v4460, %v4478
      %v4480 = vpop.f32.mrf.mxu0
      %v4481 = vadd.f32 %v4462, %v4480
      %4482 = vdwg.mxu0
      %4483 = vmatpush.bf16.msra.mxu0 %v3454
      %4484 = vmatpush.bf16.msra.mxu0 %v3446
      %4485 = vmatpush.bf16.msra.mxu0 %v3438
      %4486 = vmatpush.bf16.msra.mxu0 %v3430
      %4487 = vmatpush.bf16.msra.mxu0 %v3422
      %4488 = vmatpush.bf16.msra.mxu0 %v3414
      %4489 = vmatpush.bf16.msra.mxu0 %v3406
      %4490 = vmatpush.bf16.msra.mxu0 %v3398
      %4491 = vmatmul.bf16.gmra.mxu0 %v1189
      %v4492 = vpop.f32.mrf.mxu0
      %v4493 = vadd.f32 %v4474, %v4492
      %v4494 = vpop.f32.mrf.mxu0
      %v4495 = vadd.f32 %v4476, %v4494
      %4496 = vmatmul.bf16.gmra.mxu0 %v1197
      %v4497 = vpop.f32.mrf.mxu0
      %v4498 = vadd.f32 %v4479, %v4497
      %v4499 = vpop.f32.mrf.mxu0
      %v4500 = vadd.f32 %v4481, %v4499
      %4501 = vdwg.mxu0
      %4502 = vmatpush.bf16.msra.mxu0 %v3518
      %4503 = vmatpush.bf16.msra.mxu0 %v3510
      %4504 = vmatpush.bf16.msra.mxu0 %v3502
      %4505 = vmatpush.bf16.msra.mxu0 %v3494
      %4506 = vmatpush.bf16.msra.mxu0 %v3486
      %4507 = vmatpush.bf16.msra.mxu0 %v3478
      %4508 = vmatpush.bf16.msra.mxu0 %v3470
      %4509 = vmatpush.bf16.msra.mxu0 %v3462
      %4510 = vmatmul.bf16.gmra.mxu0 %v1190
      %v4511 = vpop.f32.mrf.mxu0
      %v4512 = vadd.f32 %v4493, %v4511
      %v4513 = vpop.f32.mrf.mxu0
      %v4514 = vadd.f32 %v4495, %v4513
      %4515 = vmatmul.bf16.gmra.mxu0 %v1198
      %v4516 = vpop.f32.mrf.mxu0
      %v4517 = vadd.f32 %v4498, %v4516
      %v4518 = vpop.f32.mrf.mxu0
      %v4519 = vadd.f32 %v4500, %v4518
      %4520 = vdwg.mxu0
      %4521 = vmatpush.bf16.msra.mxu0 %v3582
      %4522 = vmatpush.bf16.msra.mxu0 %v3574
      %4523 = vmatpush.bf16.msra.mxu0 %v3566
      %4524 = vmatpush.bf16.msra.mxu0 %v3558
      %4525 = vmatpush.bf16.msra.mxu0 %v3550
      %4526 = vmatpush.bf16.msra.mxu0 %v3542
      %4527 = vmatpush.bf16.msra.mxu0 %v3534
      %4528 = vmatpush.bf16.msra.mxu0 %v3526
      %4529 = vmatmul.bf16.gmra.mxu0 %v1191
      %v4530 = vpop.f32.mrf.mxu0
      %v4531 = vadd.f32 %v4512, %v4530
      %v4532 = vpop.f32.mrf.mxu0
      %v4533 = vadd.f32 %v4514, %v4532
      %4534 = vmatmul.bf16.gmra.mxu0 %v1199
      %v4535 = vpop.f32.mrf.mxu0
      %v4536 = vadd.f32 %v4517, %v4535
      %v4537 = vpop.f32.mrf.mxu0
      %v4538 = vadd.f32 %v4519, %v4537
      %4539 = vdwg.mxu0
      %4540 = vmatpush.bf16.msra.mxu0 %v3646
      %4541 = vmatpush.bf16.msra.mxu0 %v3638
      %4542 = vmatpush.bf16.msra.mxu0 %v3630
      %4543 = vmatpush.bf16.msra.mxu0 %v3622
      %4544 = vmatpush.bf16.msra.mxu0 %v3614
      %4545 = vmatpush.bf16.msra.mxu0 %v3606
      %4546 = vmatpush.bf16.msra.mxu0 %v3598
      %4547 = vmatpush.bf16.msra.mxu0 %v3590
      %4548 = vmatmul.bf16.gmra.mxu0 %v1192
      %v4549 = vpop.f32.mrf.mxu0
      %v4550 = vadd.f32 %v4531, %v4549
      %v4551 = vpop.f32.mrf.mxu0
      %v4552 = vadd.f32 %v4533, %v4551
      %4553 = vmatmul.bf16.gmra.mxu0 %v1200
      %v4554 = vpop.f32.mrf.mxu0
      %v4555 = vadd.f32 %v4536, %v4554
      %v4556 = vpop.f32.mrf.mxu0
      %v4557 = vadd.f32 %v4538, %v4556
      %4558 = vdwg.mxu0
      %4559 = vmatpush.bf16.msra.mxu0 %v3710
      %4560 = vmatpush.bf16.msra.mxu0 %v3702
      %4561 = vmatpush.bf16.msra.mxu0 %v3694
      %4562 = vmatpush.bf16.msra.mxu0 %v3686
      %4563 = vmatpush.bf16.msra.mxu0 %v3678
      %4564 = vmatpush.bf16.msra.mxu0 %v3670
      %4565 = vmatpush.bf16.msra.mxu0 %v3662
      %4566 = vmatpush.bf16.msra.mxu0 %v3654
      %4567 = vmatmul.bf16.gmra.mxu0 %v1193
      %v4568 = vpop.f32.mrf.mxu0
      %v4569 = vadd.f32 %v4550, %v4568
      %v4570 = vpop.f32.mrf.mxu0
      %v4571 = vadd.f32 %v4552, %v4570
      %4572 = vmatmul.bf16.gmra.mxu0 %v1201
      %v4573 = vpop.f32.mrf.mxu0
      %v4574 = vadd.f32 %v4555, %v4573
      %v4575 = vpop.f32.mrf.mxu0
      %v4576 = vadd.f32 %v4557, %v4575
      %4577 = vdwg.mxu0
      %4578 = vmatpush.bf16.msra.mxu0 %v3774
      %4579 = vmatpush.bf16.msra.mxu0 %v3766
      %4580 = vmatpush.bf16.msra.mxu0 %v3758
      %4581 = vmatpush.bf16.msra.mxu0 %v3750
      %4582 = vmatpush.bf16.msra.mxu0 %v3742
      %4583 = vmatpush.bf16.msra.mxu0 %v3734
      %4584 = vmatpush.bf16.msra.mxu0 %v3726
      %4585 = vmatpush.bf16.msra.mxu0 %v3718
      %4586 = vmatmul.bf16.gmra.mxu0 %v1194
      %v4587 = vpop.f32.mrf.mxu0
      %v4588 = vadd.f32 %v4569, %v4587
      %v4589 = vpop.f32.mrf.mxu0
      %v4590 = vadd.f32 %v4571, %v4589
      %4591 = vmatmul.bf16.gmra.mxu0 %v1202
      %v4592 = vpop.f32.mrf.mxu0
      %v4593 = vadd.f32 %v4574, %v4592
      %v4594 = vpop.f32.mrf.mxu0
      %v4595 = vadd.f32 %v4576, %v4594
      %4596 = vdwg.mxu0
      %4597 = vmatpush.bf16.msra.mxu0 %v3327
      %4598 = vmatpush.bf16.msra.mxu0 %v3319
      %4599 = vmatpush.bf16.msra.mxu0 %v3311
      %4600 = vmatpush.bf16.msra.mxu0 %v3303
      %4601 = vmatpush.bf16.msra.mxu0 %v3295
      %4602 = vmatpush.bf16.msra.mxu0 %v3287
      %4603 = vmatpush.bf16.msra.mxu0 %v3279
      %4604 = vmatpush.bf16.msra.mxu0 %v3271
      %4605 = vmatmul.bf16.gmra.mxu0 %v1187
      %v4606 = vpop.f32.mrf.mxu0
      %v4607 = vadd.f32 %v1719, %v4606
      %v4608 = vpop.f32.mrf.mxu0
      %v4609 = vadd.f32 %v1719, %v4608
      %4610 = vmatmul.bf16.gmra.mxu0 %v1195
      %v4611 = vpop.f32.mrf.mxu0
      %v4612 = vadd.f32 %v1719, %v4611
      %v4613 = vpop.f32.mrf.mxu0
      %v4614 = vadd.f32 %v1719, %v4613
      %4615 = vdwg.mxu0
      %4616 = vmatpush.bf16.msra.mxu0 %v3391
      %4617 = vmatpush.bf16.msra.mxu0 %v3383
      %4618 = vmatpush.bf16.msra.mxu0 %v3375
      %4619 = vmatpush.bf16.msra.mxu0 %v3367
      %4620 = vmatpush.bf16.msra.mxu0 %v3359
      %4621 = vmatpush.bf16.msra.mxu0 %v3351
      %4622 = vmatpush.bf16.msra.mxu0 %v3343
      %4623 = vmatpush.bf16.msra.mxu0 %v3335
      %4624 = vmatmul.bf16.gmra.mxu0 %v1188
      %v4625 = vpop.f32.mrf.mxu0
      %v4626 = vadd.f32 %v4607, %v4625
      %v4627 = vpop.f32.mrf.mxu0
      %v4628 = vadd.f32 %v4609, %v4627
      %4629 = vmatmul.bf16.gmra.mxu0 %v1196
      %v4630 = vpop.f32.mrf.mxu0
      %v4631 = vadd.f32 %v4612, %v4630
      %v4632 = vpop.f32.mrf.mxu0
      %v4633 = vadd.f32 %v4614, %v4632
      %4634 = vdwg.mxu0
      %4635 = vmatpush.bf16.msra.mxu0 %v3455
      %4636 = vmatpush.bf16.msra.mxu0 %v3447
      %4637 = vmatpush.bf16.msra.mxu0 %v3439
      %4638 = vmatpush.bf16.msra.mxu0 %v3431
      %4639 = vmatpush.bf16.msra.mxu0 %v3423
      %4640 = vmatpush.bf16.msra.mxu0 %v3415
      %4641 = vmatpush.bf16.msra.mxu0 %v3407
      %4642 = vmatpush.bf16.msra.mxu0 %v3399
      %4643 = vmatmul.bf16.gmra.mxu0 %v1189
      %v4644 = vpop.f32.mrf.mxu0
      %v4645 = vadd.f32 %v4626, %v4644
      %v4646 = vpop.f32.mrf.mxu0
      %v4647 = vadd.f32 %v4628, %v4646
      %4648 = vmatmul.bf16.gmra.mxu0 %v1197
      %v4649 = vpop.f32.mrf.mxu0
      %v4650 = vadd.f32 %v4631, %v4649
      %v4651 = vpop.f32.mrf.mxu0
      %v4652 = vadd.f32 %v4633, %v4651
      %4653 = vdwg.mxu0
      %4654 = vmatpush.bf16.msra.mxu0 %v3519
      %4655 = vmatpush.bf16.msra.mxu0 %v3511
      %4656 = vmatpush.bf16.msra.mxu0 %v3503
      %4657 = vmatpush.bf16.msra.mxu0 %v3495
      %4658 = vmatpush.bf16.msra.mxu0 %v3487
      %4659 = vmatpush.bf16.msra.mxu0 %v3479
      %4660 = vmatpush.bf16.msra.mxu0 %v3471
      %4661 = vmatpush.bf16.msra.mxu0 %v3463
      %4662 = vmatmul.bf16.gmra.mxu0 %v1190
      %v4663 = vpop.f32.mrf.mxu0
      %v4664 = vadd.f32 %v4645, %v4663
      %v4665 = vpop.f32.mrf.mxu0
      %v4666 = vadd.f32 %v4647, %v4665
      %4667 = vmatmul.bf16.gmra.mxu0 %v1198
      %v4668 = vpop.f32.mrf.mxu0
      %v4669 = vadd.f32 %v4650, %v4668
      %v4670 = vpop.f32.mrf.mxu0
      %v4671 = vadd.f32 %v4652, %v4670
      %4672 = vdwg.mxu0
      %4673 = vmatpush.bf16.msra.mxu0 %v3583
      %4674 = vmatpush.bf16.msra.mxu0 %v3575
      %4675 = vmatpush.bf16.msra.mxu0 %v3567
      %4676 = vmatpush.bf16.msra.mxu0 %v3559
      %4677 = vmatpush.bf16.msra.mxu0 %v3551
      %4678 = vmatpush.bf16.msra.mxu0 %v3543
      %4679 = vmatpush.bf16.msra.mxu0 %v3535
      %4680 = vmatpush.bf16.msra.mxu0 %v3527
      %4681 = vmatmul.bf16.gmra.mxu0 %v1191
      %v4682 = vpop.f32.mrf.mxu0
      %v4683 = vadd.f32 %v4664, %v4682
      %v4684 = vpop.f32.mrf.mxu0
      %v4685 = vadd.f32 %v4666, %v4684
      %4686 = vmatmul.bf16.gmra.mxu0 %v1199
      %v4687 = vpop.f32.mrf.mxu0
      %v4688 = vadd.f32 %v4669, %v4687
      %v4689 = vpop.f32.mrf.mxu0
      %v4690 = vadd.f32 %v4671, %v4689
      %4691 = vdwg.mxu0
      %4692 = vmatpush.bf16.msra.mxu0 %v3647
      %4693 = vmatpush.bf16.msra.mxu0 %v3639
      %4694 = vmatpush.bf16.msra.mxu0 %v3631
      %4695 = vmatpush.bf16.msra.mxu0 %v3623
      %4696 = vmatpush.bf16.msra.mxu0 %v3615
      %4697 = vmatpush.bf16.msra.mxu0 %v3607
      %4698 = vmatpush.bf16.msra.mxu0 %v3599
      %4699 = vmatpush.bf16.msra.mxu0 %v3591
      %4700 = vmatmul.bf16.gmra.mxu0 %v1192
      %v4701 = vpop.f32.mrf.mxu0
      %v4702 = vadd.f32 %v4683, %v4701
      %v4703 = vpop.f32.mrf.mxu0
      %v4704 = vadd.f32 %v4685, %v4703
      %4705 = vmatmul.bf16.gmra.mxu0 %v1200
      %v4706 = vpop.f32.mrf.mxu0
      %v4707 = vadd.f32 %v4688, %v4706
      %v4708 = vpop.f32.mrf.mxu0
      %v4709 = vadd.f32 %v4690, %v4708
      %4710 = vdwg.mxu0
      %4711 = vmatpush.bf16.msra.mxu0 %v3711
      %4712 = vmatpush.bf16.msra.mxu0 %v3703
      %4713 = vmatpush.bf16.msra.mxu0 %v3695
      %4714 = vmatpush.bf16.msra.mxu0 %v3687
      %4715 = vmatpush.bf16.msra.mxu0 %v3679
      %4716 = vmatpush.bf16.msra.mxu0 %v3671
      %4717 = vmatpush.bf16.msra.mxu0 %v3663
      %4718 = vmatpush.bf16.msra.mxu0 %v3655
      %4719 = vmatmul.bf16.gmra.mxu0 %v1193
      %v4720 = vpop.f32.mrf.mxu0
      %v4721 = vadd.f32 %v4702, %v4720
      %v4722 = vpop.f32.mrf.mxu0
      %v4723 = vadd.f32 %v4704, %v4722
      %4724 = vmatmul.bf16.gmra.mxu0 %v1201
      %v4725 = vpop.f32.mrf.mxu0
      %v4726 = vadd.f32 %v4707, %v4725
      %v4727 = vpop.f32.mrf.mxu0
      %v4728 = vadd.f32 %v4709, %v4727
      %4729 = vdwg.mxu0
      %4730 = vmatpush.bf16.msra.mxu0 %v3775
      %4731 = vmatpush.bf16.msra.mxu0 %v3767
      %4732 = vmatpush.bf16.msra.mxu0 %v3759
      %4733 = vmatpush.bf16.msra.mxu0 %v3751
      %4734 = vmatpush.bf16.msra.mxu0 %v3743
      %4735 = vmatpush.bf16.msra.mxu0 %v3735
      %4736 = vmatpush.bf16.msra.mxu0 %v3727
      %4737 = vmatpush.bf16.msra.mxu0 %v3719
      %4738 = vmatmul.bf16.gmra.mxu0 %v1194
      %v4739 = vpop.f32.mrf.mxu0
      %v4740 = vadd.f32 %v4721, %v4739
      %v4741 = vpop.f32.mrf.mxu0
      %v4742 = vadd.f32 %v4723, %v4741
      %4743 = vmatmul.bf16.gmra.mxu0 %v1202
      %v4744 = vpop.f32.mrf.mxu0
      %v4745 = vadd.f32 %v4726, %v4744
      %v4746 = vpop.f32.mrf.mxu0
      %v4747 = vadd.f32 %v4728, %v4746
      %4748 = vdwg.mxu0
      %4749 = vmatpush.bf16.msra.mxu0 %v3328
      %4750 = vmatpush.bf16.msra.mxu0 %v3320
      %4751 = vmatpush.bf16.msra.mxu0 %v3312
      %4752 = vmatpush.bf16.msra.mxu0 %v3304
      %4753 = vmatpush.bf16.msra.mxu0 %v3296
      %4754 = vmatpush.bf16.msra.mxu0 %v3288
      %4755 = vmatpush.bf16.msra.mxu0 %v3280
      %4756 = vmatpush.bf16.msra.mxu0 %v3272
      %4757 = vmatmul.bf16.gmra.mxu0 %v1187
      %v4758 = vpop.f32.mrf.mxu0
      %v4759 = vadd.f32 %v1720, %v4758
      %v4760 = vpop.f32.mrf.mxu0
      %v4761 = vadd.f32 %v1720, %v4760
      %4762 = vmatmul.bf16.gmra.mxu0 %v1195
      %v4763 = vpop.f32.mrf.mxu0
      %v4764 = vadd.f32 %v1720, %v4763
      %v4765 = vpop.f32.mrf.mxu0
      %v4766 = vadd.f32 %v1720, %v4765
      %4767 = vdwg.mxu0
      %4768 = vmatpush.bf16.msra.mxu0 %v3392
      %4769 = vmatpush.bf16.msra.mxu0 %v3384
      %4770 = vmatpush.bf16.msra.mxu0 %v3376
      %4771 = vmatpush.bf16.msra.mxu0 %v3368
      %4772 = vmatpush.bf16.msra.mxu0 %v3360
      %4773 = vmatpush.bf16.msra.mxu0 %v3352
      %4774 = vmatpush.bf16.msra.mxu0 %v3344
      %4775 = vmatpush.bf16.msra.mxu0 %v3336
      %4776 = vmatmul.bf16.gmra.mxu0 %v1188
      %v4777 = vpop.f32.mrf.mxu0
      %v4778 = vadd.f32 %v4759, %v4777
      %v4779 = vpop.f32.mrf.mxu0
      %v4780 = vadd.f32 %v4761, %v4779
      %4781 = vmatmul.bf16.gmra.mxu0 %v1196
      %v4782 = vpop.f32.mrf.mxu0
      %v4783 = vadd.f32 %v4764, %v4782
      %v4784 = vpop.f32.mrf.mxu0
      %v4785 = vadd.f32 %v4766, %v4784
      %4786 = vdwg.mxu0
      %4787 = vmatpush.bf16.msra.mxu0 %v3456
      %4788 = vmatpush.bf16.msra.mxu0 %v3448
      %4789 = vmatpush.bf16.msra.mxu0 %v3440
      %4790 = vmatpush.bf16.msra.mxu0 %v3432
      %4791 = vmatpush.bf16.msra.mxu0 %v3424
      %4792 = vmatpush.bf16.msra.mxu0 %v3416
      %4793 = vmatpush.bf16.msra.mxu0 %v3408
      %4794 = vmatpush.bf16.msra.mxu0 %v3400
      %4795 = vmatmul.bf16.gmra.mxu0 %v1189
      %v4796 = vpop.f32.mrf.mxu0
      %v4797 = vadd.f32 %v4778, %v4796
      %v4798 = vpop.f32.mrf.mxu0
      %v4799 = vadd.f32 %v4780, %v4798
      %4800 = vmatmul.bf16.gmra.mxu0 %v1197
      %v4801 = vpop.f32.mrf.mxu0
      %v4802 = vadd.f32 %v4783, %v4801
      %v4803 = vpop.f32.mrf.mxu0
      %v4804 = vadd.f32 %v4785, %v4803
      %4805 = vdwg.mxu0
      %4806 = vmatpush.bf16.msra.mxu0 %v3520
      %4807 = vmatpush.bf16.msra.mxu0 %v3512
      %4808 = vmatpush.bf16.msra.mxu0 %v3504
      %4809 = vmatpush.bf16.msra.mxu0 %v3496
      %4810 = vmatpush.bf16.msra.mxu0 %v3488
      %4811 = vmatpush.bf16.msra.mxu0 %v3480
      %4812 = vmatpush.bf16.msra.mxu0 %v3472
      %4813 = vmatpush.bf16.msra.mxu0 %v3464
      %4814 = vmatmul.bf16.gmra.mxu0 %v1190
      %v4815 = vpop.f32.mrf.mxu0
      %v4816 = vadd.f32 %v4797, %v4815
      %v4817 = vpop.f32.mrf.mxu0
      %v4818 = vadd.f32 %v4799, %v4817
      %4819 = vmatmul.bf16.gmra.mxu0 %v1198
      %v4820 = vpop.f32.mrf.mxu0
      %v4821 = vadd.f32 %v4802, %v4820
      %v4822 = vpop.f32.mrf.mxu0
      %v4823 = vadd.f32 %v4804, %v4822
      %4824 = vdwg.mxu0
      %4825 = vmatpush.bf16.msra.mxu0 %v3584
      %4826 = vmatpush.bf16.msra.mxu0 %v3576
      %4827 = vmatpush.bf16.msra.mxu0 %v3568
      %4828 = vmatpush.bf16.msra.mxu0 %v3560
      %4829 = vmatpush.bf16.msra.mxu0 %v3552
      %4830 = vmatpush.bf16.msra.mxu0 %v3544
      %4831 = vmatpush.bf16.msra.mxu0 %v3536
      %4832 = vmatpush.bf16.msra.mxu0 %v3528
      %4833 = vmatmul.bf16.gmra.mxu0 %v1191
      %v4834 = vpop.f32.mrf.mxu0
      %v4835 = vadd.f32 %v4816, %v4834
      %v4836 = vpop.f32.mrf.mxu0
      %v4837 = vadd.f32 %v4818, %v4836
      %4838 = vmatmul.bf16.gmra.mxu0 %v1199
      %v4839 = vpop.f32.mrf.mxu0
      %v4840 = vadd.f32 %v4821, %v4839
      %v4841 = vpop.f32.mrf.mxu0
      %v4842 = vadd.f32 %v4823, %v4841
      %4843 = vdwg.mxu0
      %4844 = vmatpush.bf16.msra.mxu0 %v3648
      %4845 = vmatpush.bf16.msra.mxu0 %v3640
      %4846 = vmatpush.bf16.msra.mxu0 %v3632
      %4847 = vmatpush.bf16.msra.mxu0 %v3624
      %4848 = vmatpush.bf16.msra.mxu0 %v3616
      %4849 = vmatpush.bf16.msra.mxu0 %v3608
      %4850 = vmatpush.bf16.msra.mxu0 %v3600
      %4851 = vmatpush.bf16.msra.mxu0 %v3592
      %4852 = vmatmul.bf16.gmra.mxu0 %v1192
      %v4853 = vpop.f32.mrf.mxu0
      %v4854 = vadd.f32 %v4835, %v4853
      %v4855 = vpop.f32.mrf.mxu0
      %v4856 = vadd.f32 %v4837, %v4855
      %4857 = vmatmul.bf16.gmra.mxu0 %v1200
      %v4858 = vpop.f32.mrf.mxu0
      %v4859 = vadd.f32 %v4840, %v4858
      %v4860 = vpop.f32.mrf.mxu0
      %v4861 = vadd.f32 %v4842, %v4860
      %4862 = vdwg.mxu0
      %4863 = vmatpush.bf16.msra.mxu0 %v3712
      %4864 = vmatpush.bf16.msra.mxu0 %v3704
      %4865 = vmatpush.bf16.msra.mxu0 %v3696
      %4866 = vmatpush.bf16.msra.mxu0 %v3688
      %4867 = vmatpush.bf16.msra.mxu0 %v3680
      %4868 = vmatpush.bf16.msra.mxu0 %v3672
      %4869 = vmatpush.bf16.msra.mxu0 %v3664
      %4870 = vmatpush.bf16.msra.mxu0 %v3656
      %4871 = vmatmul.bf16.gmra.mxu0 %v1193
      %v4872 = vpop.f32.mrf.mxu0
      %v4873 = vadd.f32 %v4854, %v4872
      %v4874 = vpop.f32.mrf.mxu0
      %v4875 = vadd.f32 %v4856, %v4874
      %4876 = vmatmul.bf16.gmra.mxu0 %v1201
      %v4877 = vpop.f32.mrf.mxu0
      %v4878 = vadd.f32 %v4859, %v4877
      %v4879 = vpop.f32.mrf.mxu0
      %v4880 = vadd.f32 %v4861, %v4879
      %4881 = vdwg.mxu0
      %4882 = vmatpush.bf16.msra.mxu0 %v3776
      %4883 = vmatpush.bf16.msra.mxu0 %v3768
      %4884 = vmatpush.bf16.msra.mxu0 %v3760
      %4885 = vmatpush.bf16.msra.mxu0 %v3752
      %4886 = vmatpush.bf16.msra.mxu0 %v3744
      %4887 = vmatpush.bf16.msra.mxu0 %v3736
      %4888 = vmatpush.bf16.msra.mxu0 %v3728
      %4889 = vmatpush.bf16.msra.mxu0 %v3720
      %4890 = vmatmul.bf16.gmra.mxu0 %v1194
      %v4891 = vpop.f32.mrf.mxu0
      %v4892 = vadd.f32 %v4873, %v4891
      %v4893 = vpop.f32.mrf.mxu0
      %v4894 = vadd.f32 %v4875, %v4893
      %4895 = vmatmul.bf16.gmra.mxu0 %v1202
      %v4896 = vpop.f32.mrf.mxu0
      %v4897 = vadd.f32 %v4878, %v4896
      %v4898 = vpop.f32.mrf.mxu0
      %v4899 = vadd.f32 %v4880, %v4898
      %4900 = vdwg.mxu0
      %4901 = vmatpush.bf16.msra.mxu0 %v3329
      %4902 = vmatpush.bf16.msra.mxu0 %v3321
      %4903 = vmatpush.bf16.msra.mxu0 %v3313
      %4904 = vmatpush.bf16.msra.mxu0 %v3305
      %4905 = vmatpush.bf16.msra.mxu0 %v3297
      %4906 = vmatpush.bf16.msra.mxu0 %v3289
      %4907 = vmatpush.bf16.msra.mxu0 %v3281
      %4908 = vmatpush.bf16.msra.mxu0 %v3273
      %4909 = vmatmul.bf16.gmra.mxu0 %v1187
      %v4910 = vpop.f32.mrf.mxu0
      %v4911 = vadd.f32 %v1721, %v4910
      %v4912 = vpop.f32.mrf.mxu0
      %v4913 = vadd.f32 %v1721, %v4912
      %4914 = vmatmul.bf16.gmra.mxu0 %v1195
      %v4915 = vpop.f32.mrf.mxu0
      %v4916 = vadd.f32 %v1721, %v4915
      %v4917 = vpop.f32.mrf.mxu0
      %v4918 = vadd.f32 %v1721, %v4917
      %4919 = vdwg.mxu0
      %4920 = vmatpush.bf16.msra.mxu0 %v3393
      %4921 = vmatpush.bf16.msra.mxu0 %v3385
      %4922 = vmatpush.bf16.msra.mxu0 %v3377
      %4923 = vmatpush.bf16.msra.mxu0 %v3369
      %4924 = vmatpush.bf16.msra.mxu0 %v3361
      %4925 = vmatpush.bf16.msra.mxu0 %v3353
      %4926 = vmatpush.bf16.msra.mxu0 %v3345
      %4927 = vmatpush.bf16.msra.mxu0 %v3337
      %4928 = vmatmul.bf16.gmra.mxu0 %v1188
      %v4929 = vpop.f32.mrf.mxu0
      %v4930 = vadd.f32 %v4911, %v4929
      %v4931 = vpop.f32.mrf.mxu0
      %v4932 = vadd.f32 %v4913, %v4931
      %4933 = vmatmul.bf16.gmra.mxu0 %v1196
      %v4934 = vpop.f32.mrf.mxu0
      %v4935 = vadd.f32 %v4916, %v4934
      %v4936 = vpop.f32.mrf.mxu0
      %v4937 = vadd.f32 %v4918, %v4936
      %4938 = vdwg.mxu0
      %4939 = vmatpush.bf16.msra.mxu0 %v3457
      %4940 = vmatpush.bf16.msra.mxu0 %v3449
      %4941 = vmatpush.bf16.msra.mxu0 %v3441
      %4942 = vmatpush.bf16.msra.mxu0 %v3433
      %4943 = vmatpush.bf16.msra.mxu0 %v3425
      %4944 = vmatpush.bf16.msra.mxu0 %v3417
      %4945 = vmatpush.bf16.msra.mxu0 %v3409
      %4946 = vmatpush.bf16.msra.mxu0 %v3401
      %4947 = vmatmul.bf16.gmra.mxu0 %v1189
      %v4948 = vpop.f32.mrf.mxu0
      %v4949 = vadd.f32 %v4930, %v4948
      %v4950 = vpop.f32.mrf.mxu0
      %v4951 = vadd.f32 %v4932, %v4950
      %4952 = vmatmul.bf16.gmra.mxu0 %v1197
      %v4953 = vpop.f32.mrf.mxu0
      %v4954 = vadd.f32 %v4935, %v4953
      %v4955 = vpop.f32.mrf.mxu0
      %v4956 = vadd.f32 %v4937, %v4955
      %4957 = vdwg.mxu0
      %4958 = vmatpush.bf16.msra.mxu0 %v3521
      %4959 = vmatpush.bf16.msra.mxu0 %v3513
      %4960 = vmatpush.bf16.msra.mxu0 %v3505
      %4961 = vmatpush.bf16.msra.mxu0 %v3497
      %4962 = vmatpush.bf16.msra.mxu0 %v3489
      %4963 = vmatpush.bf16.msra.mxu0 %v3481
      %4964 = vmatpush.bf16.msra.mxu0 %v3473
      %4965 = vmatpush.bf16.msra.mxu0 %v3465
      %4966 = vmatmul.bf16.gmra.mxu0 %v1190
      %v4967 = vpop.f32.mrf.mxu0
      %v4968 = vadd.f32 %v4949, %v4967
      %v4969 = vpop.f32.mrf.mxu0
      %v4970 = vadd.f32 %v4951, %v4969
      %4971 = vmatmul.bf16.gmra.mxu0 %v1198
      %v4972 = vpop.f32.mrf.mxu0
      %v4973 = vadd.f32 %v4954, %v4972
      %v4974 = vpop.f32.mrf.mxu0
      %v4975 = vadd.f32 %v4956, %v4974
      %4976 = vdwg.mxu0
      %4977 = vmatpush.bf16.msra.mxu0 %v3585
      %4978 = vmatpush.bf16.msra.mxu0 %v3577
      %4979 = vmatpush.bf16.msra.mxu0 %v3569
      %4980 = vmatpush.bf16.msra.mxu0 %v3561
      %4981 = vmatpush.bf16.msra.mxu0 %v3553
      %4982 = vmatpush.bf16.msra.mxu0 %v3545
      %4983 = vmatpush.bf16.msra.mxu0 %v3537
      %4984 = vmatpush.bf16.msra.mxu0 %v3529
      %4985 = vmatmul.bf16.gmra.mxu0 %v1191
      %v4986 = vpop.f32.mrf.mxu0
      %v4987 = vadd.f32 %v4968, %v4986
      %v4988 = vpop.f32.mrf.mxu0
      %v4989 = vadd.f32 %v4970, %v4988
      %4990 = vmatmul.bf16.gmra.mxu0 %v1199
      %v4991 = vpop.f32.mrf.mxu0
      %v4992 = vadd.f32 %v4973, %v4991
      %v4993 = vpop.f32.mrf.mxu0
      %v4994 = vadd.f32 %v4975, %v4993
      %4995 = vdwg.mxu0
      %4996 = vmatpush.bf16.msra.mxu0 %v3649
      %4997 = vmatpush.bf16.msra.mxu0 %v3641
      %4998 = vmatpush.bf16.msra.mxu0 %v3633
      %4999 = vmatpush.bf16.msra.mxu0 %v3625
      %5000 = vmatpush.bf16.msra.mxu0 %v3617
      %5001 = vmatpush.bf16.msra.mxu0 %v3609
      %5002 = vmatpush.bf16.msra.mxu0 %v3601
      %5003 = vmatpush.bf16.msra.mxu0 %v3593
      %5004 = vmatmul.bf16.gmra.mxu0 %v1192
      %v5005 = vpop.f32.mrf.mxu0
      %v5006 = vadd.f32 %v4987, %v5005
      %v5007 = vpop.f32.mrf.mxu0
      %v5008 = vadd.f32 %v4989, %v5007
      %5009 = vmatmul.bf16.gmra.mxu0 %v1200
      %v5010 = vpop.f32.mrf.mxu0
      %v5011 = vadd.f32 %v4992, %v5010
      %v5012 = vpop.f32.mrf.mxu0
      %v5013 = vadd.f32 %v4994, %v5012
      %5014 = vdwg.mxu0
      %5015 = vmatpush.bf16.msra.mxu0 %v3713
      %5016 = vmatpush.bf16.msra.mxu0 %v3705
      %5017 = vmatpush.bf16.msra.mxu0 %v3697
      %5018 = vmatpush.bf16.msra.mxu0 %v3689
      %5019 = vmatpush.bf16.msra.mxu0 %v3681
      %5020 = vmatpush.bf16.msra.mxu0 %v3673
      %5021 = vmatpush.bf16.msra.mxu0 %v3665
      %5022 = vmatpush.bf16.msra.mxu0 %v3657
      %5023 = vmatmul.bf16.gmra.mxu0 %v1193
      %v5024 = vpop.f32.mrf.mxu0
      %v5025 = vadd.f32 %v5006, %v5024
      %v5026 = vpop.f32.mrf.mxu0
      %v5027 = vadd.f32 %v5008, %v5026
      %5028 = vmatmul.bf16.gmra.mxu0 %v1201
      %v5029 = vpop.f32.mrf.mxu0
      %v5030 = vadd.f32 %v5011, %v5029
      %v5031 = vpop.f32.mrf.mxu0
      %v5032 = vadd.f32 %v5013, %v5031
      %5033 = vdwg.mxu0
      %5034 = vmatpush.bf16.msra.mxu0 %v3777
      %5035 = vmatpush.bf16.msra.mxu0 %v3769
      %5036 = vmatpush.bf16.msra.mxu0 %v3761
      %5037 = vmatpush.bf16.msra.mxu0 %v3753
      %5038 = vmatpush.bf16.msra.mxu0 %v3745
      %5039 = vmatpush.bf16.msra.mxu0 %v3737
      %5040 = vmatpush.bf16.msra.mxu0 %v3729
      %5041 = vmatpush.bf16.msra.mxu0 %v3721
      %5042 = vmatmul.bf16.gmra.mxu0 %v1194
      %v5043 = vpop.f32.mrf.mxu0
      %v5044 = vadd.f32 %v5025, %v5043
      %v5045 = vpop.f32.mrf.mxu0
      %v5046 = vadd.f32 %v5027, %v5045
      %5047 = vmatmul.bf16.gmra.mxu0 %v1202
      %v5048 = vpop.f32.mrf.mxu0
      %v5049 = vadd.f32 %v5030, %v5048
      %v5050 = vpop.f32.mrf.mxu0
      %v5051 = vadd.f32 %v5032, %v5050
      %5052 = vdwg.mxu0
      %5053 = vmatpush.bf16.msra.mxu0 %v3330
      %5054 = vmatpush.bf16.msra.mxu0 %v3322
      %5055 = vmatpush.bf16.msra.mxu0 %v3314
      %5056 = vmatpush.bf16.msra.mxu0 %v3306
      %5057 = vmatpush.bf16.msra.mxu0 %v3298
      %5058 = vmatpush.bf16.msra.mxu0 %v3290
      %5059 = vmatpush.bf16.msra.mxu0 %v3282
      %5060 = vmatpush.bf16.msra.mxu0 %v3274
      %5061 = vmatmul.bf16.gmra.mxu0 %v1187
      %v5062 = vpop.f32.mrf.mxu0
      %v5063 = vadd.f32 %v1722, %v5062
      %v5064 = vpop.f32.mrf.mxu0
      %v5065 = vadd.f32 %v1722, %v5064
      %5066 = vmatmul.bf16.gmra.mxu0 %v1195
      %v5067 = vpop.f32.mrf.mxu0
      %v5068 = vadd.f32 %v1722, %v5067
      %v5069 = vpop.f32.mrf.mxu0
      %v5070 = vadd.f32 %v1722, %v5069
      %5071 = vdwg.mxu0
      %5072 = vmatpush.bf16.msra.mxu0 %v3394
      %5073 = vmatpush.bf16.msra.mxu0 %v3386
      %5074 = vmatpush.bf16.msra.mxu0 %v3378
      %5075 = vmatpush.bf16.msra.mxu0 %v3370
      %5076 = vmatpush.bf16.msra.mxu0 %v3362
      %5077 = vmatpush.bf16.msra.mxu0 %v3354
      %5078 = vmatpush.bf16.msra.mxu0 %v3346
      %5079 = vmatpush.bf16.msra.mxu0 %v3338
      %5080 = vmatmul.bf16.gmra.mxu0 %v1188
      %v5081 = vpop.f32.mrf.mxu0
      %v5082 = vadd.f32 %v5063, %v5081
      %v5083 = vpop.f32.mrf.mxu0
      %v5084 = vadd.f32 %v5065, %v5083
      %5085 = vmatmul.bf16.gmra.mxu0 %v1196
      %v5086 = vpop.f32.mrf.mxu0
      %v5087 = vadd.f32 %v5068, %v5086
      %v5088 = vpop.f32.mrf.mxu0
      %v5089 = vadd.f32 %v5070, %v5088
      %5090 = vdwg.mxu0
      %5091 = vmatpush.bf16.msra.mxu0 %v3458
      %5092 = vmatpush.bf16.msra.mxu0 %v3450
      %5093 = vmatpush.bf16.msra.mxu0 %v3442
      %5094 = vmatpush.bf16.msra.mxu0 %v3434
      %5095 = vmatpush.bf16.msra.mxu0 %v3426
      %5096 = vmatpush.bf16.msra.mxu0 %v3418
      %5097 = vmatpush.bf16.msra.mxu0 %v3410
      %5098 = vmatpush.bf16.msra.mxu0 %v3402
      %5099 = vmatmul.bf16.gmra.mxu0 %v1189
      %v5100 = vpop.f32.mrf.mxu0
      %v5101 = vadd.f32 %v5082, %v5100
      %v5102 = vpop.f32.mrf.mxu0
      %v5103 = vadd.f32 %v5084, %v5102
      %5104 = vmatmul.bf16.gmra.mxu0 %v1197
      %v5105 = vpop.f32.mrf.mxu0
      %v5106 = vadd.f32 %v5087, %v5105
      %v5107 = vpop.f32.mrf.mxu0
      %v5108 = vadd.f32 %v5089, %v5107
      %5109 = vdwg.mxu0
      %5110 = vmatpush.bf16.msra.mxu0 %v3522
      %5111 = vmatpush.bf16.msra.mxu0 %v3514
      %5112 = vmatpush.bf16.msra.mxu0 %v3506
      %5113 = vmatpush.bf16.msra.mxu0 %v3498
      %5114 = vmatpush.bf16.msra.mxu0 %v3490
      %5115 = vmatpush.bf16.msra.mxu0 %v3482
      %5116 = vmatpush.bf16.msra.mxu0 %v3474
      %5117 = vmatpush.bf16.msra.mxu0 %v3466
      %5118 = vmatmul.bf16.gmra.mxu0 %v1190
      %v5119 = vpop.f32.mrf.mxu0
      %v5120 = vadd.f32 %v5101, %v5119
      %v5121 = vpop.f32.mrf.mxu0
      %v5122 = vadd.f32 %v5103, %v5121
      %5123 = vmatmul.bf16.gmra.mxu0 %v1198
      %v5124 = vpop.f32.mrf.mxu0
      %v5125 = vadd.f32 %v5106, %v5124
      %v5126 = vpop.f32.mrf.mxu0
      %v5127 = vadd.f32 %v5108, %v5126
      %5128 = vdwg.mxu0
      %5129 = vmatpush.bf16.msra.mxu0 %v3586
      %5130 = vmatpush.bf16.msra.mxu0 %v3578
      %5131 = vmatpush.bf16.msra.mxu0 %v3570
      %5132 = vmatpush.bf16.msra.mxu0 %v3562
      %5133 = vmatpush.bf16.msra.mxu0 %v3554
      %5134 = vmatpush.bf16.msra.mxu0 %v3546
      %5135 = vmatpush.bf16.msra.mxu0 %v3538
      %5136 = vmatpush.bf16.msra.mxu0 %v3530
      %5137 = vmatmul.bf16.gmra.mxu0 %v1191
      %v5138 = vpop.f32.mrf.mxu0
      %v5139 = vadd.f32 %v5120, %v5138
      %v5140 = vpop.f32.mrf.mxu0
      %v5141 = vadd.f32 %v5122, %v5140
      %5142 = vmatmul.bf16.gmra.mxu0 %v1199
      %v5143 = vpop.f32.mrf.mxu0
      %v5144 = vadd.f32 %v5125, %v5143
      %v5145 = vpop.f32.mrf.mxu0
      %v5146 = vadd.f32 %v5127, %v5145
      %5147 = vdwg.mxu0
      %5148 = vmatpush.bf16.msra.mxu0 %v3650
      %5149 = vmatpush.bf16.msra.mxu0 %v3642
      %5150 = vmatpush.bf16.msra.mxu0 %v3634
      %5151 = vmatpush.bf16.msra.mxu0 %v3626
      %5152 = vmatpush.bf16.msra.mxu0 %v3618
      %5153 = vmatpush.bf16.msra.mxu0 %v3610
      %5154 = vmatpush.bf16.msra.mxu0 %v3602
      %5155 = vmatpush.bf16.msra.mxu0 %v3594
      %5156 = vmatmul.bf16.gmra.mxu0 %v1192
      %v5157 = vpop.f32.mrf.mxu0
      %v5158 = vadd.f32 %v5139, %v5157
      %v5159 = vpop.f32.mrf.mxu0
      %v5160 = vadd.f32 %v5141, %v5159
      %5161 = vmatmul.bf16.gmra.mxu0 %v1200
      %v5162 = vpop.f32.mrf.mxu0
      %v5163 = vadd.f32 %v5144, %v5162
      %v5164 = vpop.f32.mrf.mxu0
      %v5165 = vadd.f32 %v5146, %v5164
      %5166 = vdwg.mxu0
      %5167 = vmatpush.bf16.msra.mxu0 %v3714
      %5168 = vmatpush.bf16.msra.mxu0 %v3706
      %5169 = vmatpush.bf16.msra.mxu0 %v3698
      %5170 = vmatpush.bf16.msra.mxu0 %v3690
      %5171 = vmatpush.bf16.msra.mxu0 %v3682
      %5172 = vmatpush.bf16.msra.mxu0 %v3674
      %5173 = vmatpush.bf16.msra.mxu0 %v3666
      %5174 = vmatpush.bf16.msra.mxu0 %v3658
      %5175 = vmatmul.bf16.gmra.mxu0 %v1193
      %v5176 = vpop.f32.mrf.mxu0
      %v5177 = vadd.f32 %v5158, %v5176
      %v5178 = vpop.f32.mrf.mxu0
      %v5179 = vadd.f32 %v5160, %v5178
      %5180 = vmatmul.bf16.gmra.mxu0 %v1201
      %v5181 = vpop.f32.mrf.mxu0
      %v5182 = vadd.f32 %v5163, %v5181
      %v5183 = vpop.f32.mrf.mxu0
      %v5184 = vadd.f32 %v5165, %v5183
      %5185 = vdwg.mxu0
      %5186 = vmatpush.bf16.msra.mxu0 %v3778
      %5187 = vmatpush.bf16.msra.mxu0 %v3770
      %5188 = vmatpush.bf16.msra.mxu0 %v3762
      %5189 = vmatpush.bf16.msra.mxu0 %v3754
      %5190 = vmatpush.bf16.msra.mxu0 %v3746
      %5191 = vmatpush.bf16.msra.mxu0 %v3738
      %5192 = vmatpush.bf16.msra.mxu0 %v3730
      %5193 = vmatpush.bf16.msra.mxu0 %v3722
      %5194 = vmatmul.bf16.gmra.mxu0 %v1194
      %v5195 = vpop.f32.mrf.mxu0
      %v5196 = vadd.f32 %v5177, %v5195
      %v5197 = vpop.f32.mrf.mxu0
      %v5198 = vadd.f32 %v5179, %v5197
      %5199 = vmatmul.bf16.gmra.mxu0 %v1202
      %v5200 = vpop.f32.mrf.mxu0
      %v5201 = vadd.f32 %v5182, %v5200
      %v5202 = vpop.f32.mrf.mxu0
      %v5203 = vadd.f32 %v5184, %v5202
      %5204 = vdwg.mxu0
      %5205 = vmatpush.bf16.msra.mxu0 %v3331
      %5206 = vmatpush.bf16.msra.mxu0 %v3323
      %5207 = vmatpush.bf16.msra.mxu0 %v3315
      %5208 = vmatpush.bf16.msra.mxu0 %v3307
      %5209 = vmatpush.bf16.msra.mxu0 %v3299
      %5210 = vmatpush.bf16.msra.mxu0 %v3291
      %5211 = vmatpush.bf16.msra.mxu0 %v3283
      %5212 = vmatpush.bf16.msra.mxu0 %v3275
      %5213 = vmatmul.bf16.gmra.mxu0 %v1187
      %v5214 = vpop.f32.mrf.mxu0
      %v5215 = vadd.f32 %v1723, %v5214
      %v5216 = vpop.f32.mrf.mxu0
      %v5217 = vadd.f32 %v1723, %v5216
      %5218 = vmatmul.bf16.gmra.mxu0 %v1195
      %v5219 = vpop.f32.mrf.mxu0
      %v5220 = vadd.f32 %v1723, %v5219
      %v5221 = vpop.f32.mrf.mxu0
      %v5222 = vadd.f32 %v1723, %v5221
      %5223 = vdwg.mxu0
      %5224 = vmatpush.bf16.msra.mxu0 %v3395
      %5225 = vmatpush.bf16.msra.mxu0 %v3387
      %5226 = vmatpush.bf16.msra.mxu0 %v3379
      %5227 = vmatpush.bf16.msra.mxu0 %v3371
      %5228 = vmatpush.bf16.msra.mxu0 %v3363
      %5229 = vmatpush.bf16.msra.mxu0 %v3355
      %5230 = vmatpush.bf16.msra.mxu0 %v3347
      %5231 = vmatpush.bf16.msra.mxu0 %v3339
      %5232 = vmatmul.bf16.gmra.mxu0 %v1188
      %v5233 = vpop.f32.mrf.mxu0
      %v5234 = vadd.f32 %v5215, %v5233
      %v5235 = vpop.f32.mrf.mxu0
      %v5236 = vadd.f32 %v5217, %v5235
      %5237 = vmatmul.bf16.gmra.mxu0 %v1196
      %v5238 = vpop.f32.mrf.mxu0
      %v5239 = vadd.f32 %v5220, %v5238
      %v5240 = vpop.f32.mrf.mxu0
      %v5241 = vadd.f32 %v5222, %v5240
      %5242 = vdwg.mxu0
      %5243 = vmatpush.bf16.msra.mxu0 %v3459
      %5244 = vmatpush.bf16.msra.mxu0 %v3451
      %5245 = vmatpush.bf16.msra.mxu0 %v3443
      %5246 = vmatpush.bf16.msra.mxu0 %v3435
      %5247 = vmatpush.bf16.msra.mxu0 %v3427
      %5248 = vmatpush.bf16.msra.mxu0 %v3419
      %5249 = vmatpush.bf16.msra.mxu0 %v3411
      %5250 = vmatpush.bf16.msra.mxu0 %v3403
      %5251 = vmatmul.bf16.gmra.mxu0 %v1189
      %v5252 = vpop.f32.mrf.mxu0
      %v5253 = vadd.f32 %v5234, %v5252
      %v5254 = vpop.f32.mrf.mxu0
      %v5255 = vadd.f32 %v5236, %v5254
      %5256 = vmatmul.bf16.gmra.mxu0 %v1197
      %v5257 = vpop.f32.mrf.mxu0
      %v5258 = vadd.f32 %v5239, %v5257
      %v5259 = vpop.f32.mrf.mxu0
      %v5260 = vadd.f32 %v5241, %v5259
      %5261 = vdwg.mxu0
      %5262 = vmatpush.bf16.msra.mxu0 %v3523
      %5263 = vmatpush.bf16.msra.mxu0 %v3515
      %5264 = vmatpush.bf16.msra.mxu0 %v3507
      %5265 = vmatpush.bf16.msra.mxu0 %v3499
      %5266 = vmatpush.bf16.msra.mxu0 %v3491
      %5267 = vmatpush.bf16.msra.mxu0 %v3483
      %5268 = vmatpush.bf16.msra.mxu0 %v3475
      %5269 = vmatpush.bf16.msra.mxu0 %v3467
      %5270 = vmatmul.bf16.gmra.mxu0 %v1190
      %v5271 = vpop.f32.mrf.mxu0
      %v5272 = vadd.f32 %v5253, %v5271
      %v5273 = vpop.f32.mrf.mxu0
      %v5274 = vadd.f32 %v5255, %v5273
      %5275 = vmatmul.bf16.gmra.mxu0 %v1198
      %v5276 = vpop.f32.mrf.mxu0
      %v5277 = vadd.f32 %v5258, %v5276
      %v5278 = vpop.f32.mrf.mxu0
      %v5279 = vadd.f32 %v5260, %v5278
      %5280 = vdwg.mxu0
      %5281 = vmatpush.bf16.msra.mxu0 %v3587
      %5282 = vmatpush.bf16.msra.mxu0 %v3579
      %5283 = vmatpush.bf16.msra.mxu0 %v3571
      %5284 = vmatpush.bf16.msra.mxu0 %v3563
      %5285 = vmatpush.bf16.msra.mxu0 %v3555
      %5286 = vmatpush.bf16.msra.mxu0 %v3547
      %5287 = vmatpush.bf16.msra.mxu0 %v3539
      %5288 = vmatpush.bf16.msra.mxu0 %v3531
      %5289 = vmatmul.bf16.gmra.mxu0 %v1191
      %v5290 = vpop.f32.mrf.mxu0
      %v5291 = vadd.f32 %v5272, %v5290
      %v5292 = vpop.f32.mrf.mxu0
      %v5293 = vadd.f32 %v5274, %v5292
      %5294 = vmatmul.bf16.gmra.mxu0 %v1199
      %v5295 = vpop.f32.mrf.mxu0
      %v5296 = vadd.f32 %v5277, %v5295
      %v5297 = vpop.f32.mrf.mxu0
      %v5298 = vadd.f32 %v5279, %v5297
      %5299 = vdwg.mxu0
      %5300 = vmatpush.bf16.msra.mxu0 %v3651
      %5301 = vmatpush.bf16.msra.mxu0 %v3643
      %5302 = vmatpush.bf16.msra.mxu0 %v3635
      %5303 = vmatpush.bf16.msra.mxu0 %v3627
      %5304 = vmatpush.bf16.msra.mxu0 %v3619
      %5305 = vmatpush.bf16.msra.mxu0 %v3611
      %5306 = vmatpush.bf16.msra.mxu0 %v3603
      %5307 = vmatpush.bf16.msra.mxu0 %v3595
      %5308 = vmatmul.bf16.gmra.mxu0 %v1192
      %v5309 = vpop.f32.mrf.mxu0
      %v5310 = vadd.f32 %v5291, %v5309
      %v5311 = vpop.f32.mrf.mxu0
      %v5312 = vadd.f32 %v5293, %v5311
      %5313 = vmatmul.bf16.gmra.mxu0 %v1200
      %v5314 = vpop.f32.mrf.mxu0
      %v5315 = vadd.f32 %v5296, %v5314
      %v5316 = vpop.f32.mrf.mxu0
      %v5317 = vadd.f32 %v5298, %v5316
      %5318 = vdwg.mxu0
      %5319 = vmatpush.bf16.msra.mxu0 %v3715
      %5320 = vmatpush.bf16.msra.mxu0 %v3707
      %5321 = vmatpush.bf16.msra.mxu0 %v3699
      %5322 = vmatpush.bf16.msra.mxu0 %v3691
      %5323 = vmatpush.bf16.msra.mxu0 %v3683
      %5324 = vmatpush.bf16.msra.mxu0 %v3675
      %5325 = vmatpush.bf16.msra.mxu0 %v3667
      %5326 = vmatpush.bf16.msra.mxu0 %v3659
      %5327 = vmatmul.bf16.gmra.mxu0 %v1193
      %v5328 = vpop.f32.mrf.mxu0
      %v5329 = vadd.f32 %v5310, %v5328
      %v5330 = vpop.f32.mrf.mxu0
      %v5331 = vadd.f32 %v5312, %v5330
      %5332 = vmatmul.bf16.gmra.mxu0 %v1201
      %v5333 = vpop.f32.mrf.mxu0
      %v5334 = vadd.f32 %v5315, %v5333
      %v5335 = vpop.f32.mrf.mxu0
      %v5336 = vadd.f32 %v5317, %v5335
      %5337 = vdwg.mxu0
      %5338 = vmatpush.bf16.msra.mxu0 %v3779
      %5339 = vmatpush.bf16.msra.mxu0 %v3771
      %5340 = vmatpush.bf16.msra.mxu0 %v3763
      %5341 = vmatpush.bf16.msra.mxu0 %v3755
      %5342 = vmatpush.bf16.msra.mxu0 %v3747
      %5343 = vmatpush.bf16.msra.mxu0 %v3739
      %5344 = vmatpush.bf16.msra.mxu0 %v3731
      %5345 = vmatpush.bf16.msra.mxu0 %v3723
      %5346 = vmatmul.bf16.gmra.mxu0 %v1194
      %v5347 = vpop.f32.mrf.mxu0
      %v5348 = vadd.f32 %v5329, %v5347
      %v5349 = vpop.f32.mrf.mxu0
      %v5350 = vadd.f32 %v5331, %v5349
      %5351 = vmatmul.bf16.gmra.mxu0 %v1202
      %v5352 = vpop.f32.mrf.mxu0
      %v5353 = vadd.f32 %v5334, %v5352
      %v5354 = vpop.f32.mrf.mxu0
      %v5355 = vadd.f32 %v5336, %v5354
      %5356 = vdwg.mxu0
      %5357 = vmatpush.bf16.msra.mxu0 %v3332
      %5358 = vmatpush.bf16.msra.mxu0 %v3324
      %5359 = vmatpush.bf16.msra.mxu0 %v3316
      %5360 = vmatpush.bf16.msra.mxu0 %v3308
      %5361 = vmatpush.bf16.msra.mxu0 %v3300
      %5362 = vmatpush.bf16.msra.mxu0 %v3292
      %5363 = vmatpush.bf16.msra.mxu0 %v3284
      %5364 = vmatpush.bf16.msra.mxu0 %v3276
      %5365 = vmatmul.bf16.gmra.mxu0 %v1187
      %v5366 = vpop.f32.mrf.mxu0
      %v5367 = vadd.f32 %v1724, %v5366
      %v5368 = vpop.f32.mrf.mxu0
      %v5369 = vadd.f32 %v1724, %v5368
      %5370 = vmatmul.bf16.gmra.mxu0 %v1195
      %v5371 = vpop.f32.mrf.mxu0
      %v5372 = vadd.f32 %v1724, %v5371
      %v5373 = vpop.f32.mrf.mxu0
      %v5374 = vadd.f32 %v1724, %v5373
      %5375 = vdwg.mxu0
      %5376 = vmatpush.bf16.msra.mxu0 %v3396
      %5377 = vmatpush.bf16.msra.mxu0 %v3388
      %5378 = vmatpush.bf16.msra.mxu0 %v3380
      %5379 = vmatpush.bf16.msra.mxu0 %v3372
      %5380 = vmatpush.bf16.msra.mxu0 %v3364
      %5381 = vmatpush.bf16.msra.mxu0 %v3356
      %5382 = vmatpush.bf16.msra.mxu0 %v3348
      %5383 = vmatpush.bf16.msra.mxu0 %v3340
      %5384 = vmatmul.bf16.gmra.mxu0 %v1188
      %v5385 = vpop.f32.mrf.mxu0
      %v5386 = vadd.f32 %v5367, %v5385
      %v5387 = vpop.f32.mrf.mxu0
      %v5388 = vadd.f32 %v5369, %v5387
      %5389 = vmatmul.bf16.gmra.mxu0 %v1196
      %v5390 = vpop.f32.mrf.mxu0
      %v5391 = vadd.f32 %v5372, %v5390
      %v5392 = vpop.f32.mrf.mxu0
      %v5393 = vadd.f32 %v5374, %v5392
      %5394 = vdwg.mxu0
      %5395 = vmatpush.bf16.msra.mxu0 %v3460
      %5396 = vmatpush.bf16.msra.mxu0 %v3452
      %5397 = vmatpush.bf16.msra.mxu0 %v3444
      %5398 = vmatpush.bf16.msra.mxu0 %v3436
      %5399 = vmatpush.bf16.msra.mxu0 %v3428
      %5400 = vmatpush.bf16.msra.mxu0 %v3420
      %5401 = vmatpush.bf16.msra.mxu0 %v3412
      %5402 = vmatpush.bf16.msra.mxu0 %v3404
      %5403 = vmatmul.bf16.gmra.mxu0 %v1189
      %v5404 = vpop.f32.mrf.mxu0
      %v5405 = vadd.f32 %v5386, %v5404
      %v5406 = vpop.f32.mrf.mxu0
      %v5407 = vadd.f32 %v5388, %v5406
      %5408 = vmatmul.bf16.gmra.mxu0 %v1197
      %v5409 = vpop.f32.mrf.mxu0
      %v5410 = vadd.f32 %v5391, %v5409
      %v5411 = vpop.f32.mrf.mxu0
      %v5412 = vadd.f32 %v5393, %v5411
      %5413 = vdwg.mxu0
      %5414 = vmatpush.bf16.msra.mxu0 %v3524
      %5415 = vmatpush.bf16.msra.mxu0 %v3516
      %5416 = vmatpush.bf16.msra.mxu0 %v3508
      %5417 = vmatpush.bf16.msra.mxu0 %v3500
      %5418 = vmatpush.bf16.msra.mxu0 %v3492
      %5419 = vmatpush.bf16.msra.mxu0 %v3484
      %5420 = vmatpush.bf16.msra.mxu0 %v3476
      %5421 = vmatpush.bf16.msra.mxu0 %v3468
      %5422 = vmatmul.bf16.gmra.mxu0 %v1190
      %v5423 = vpop.f32.mrf.mxu0
      %v5424 = vadd.f32 %v5405, %v5423
      %v5425 = vpop.f32.mrf.mxu0
      %v5426 = vadd.f32 %v5407, %v5425
      %5427 = vmatmul.bf16.gmra.mxu0 %v1198
      %v5428 = vpop.f32.mrf.mxu0
      %v5429 = vadd.f32 %v5410, %v5428
      %v5430 = vpop.f32.mrf.mxu0
      %v5431 = vadd.f32 %v5412, %v5430
      %5432 = vdwg.mxu0
      %5433 = vmatpush.bf16.msra.mxu0 %v3588
      %5434 = vmatpush.bf16.msra.mxu0 %v3580
      %5435 = vmatpush.bf16.msra.mxu0 %v3572
      %5436 = vmatpush.bf16.msra.mxu0 %v3564
      %5437 = vmatpush.bf16.msra.mxu0 %v3556
      %5438 = vmatpush.bf16.msra.mxu0 %v3548
      %5439 = vmatpush.bf16.msra.mxu0 %v3540
      %5440 = vmatpush.bf16.msra.mxu0 %v3532
      %5441 = vmatmul.bf16.gmra.mxu0 %v1191
      %v5442 = vpop.f32.mrf.mxu0
      %v5443 = vadd.f32 %v5424, %v5442
      %v5444 = vpop.f32.mrf.mxu0
      %v5445 = vadd.f32 %v5426, %v5444
      %5446 = vmatmul.bf16.gmra.mxu0 %v1199
      %v5447 = vpop.f32.mrf.mxu0
      %v5448 = vadd.f32 %v5429, %v5447
      %v5449 = vpop.f32.mrf.mxu0
      %v5450 = vadd.f32 %v5431, %v5449
      %5451 = vdwg.mxu0
      %5452 = vmatpush.bf16.msra.mxu0 %v3652
      %5453 = vmatpush.bf16.msra.mxu0 %v3644
      %5454 = vmatpush.bf16.msra.mxu0 %v3636
      %5455 = vmatpush.bf16.msra.mxu0 %v3628
      %5456 = vmatpush.bf16.msra.mxu0 %v3620
      %5457 = vmatpush.bf16.msra.mxu0 %v3612
      %5458 = vmatpush.bf16.msra.mxu0 %v3604
      %5459 = vmatpush.bf16.msra.mxu0 %v3596
      %5460 = vmatmul.bf16.gmra.mxu0 %v1192
      %v5461 = vpop.f32.mrf.mxu0
      %v5462 = vadd.f32 %v5443, %v5461
      %v5463 = vpop.f32.mrf.mxu0
      %v5464 = vadd.f32 %v5445, %v5463
      %5465 = vmatmul.bf16.gmra.mxu0 %v1200
      %v5466 = vpop.f32.mrf.mxu0
      %v5467 = vadd.f32 %v5448, %v5466
      %v5468 = vpop.f32.mrf.mxu0
      %v5469 = vadd.f32 %v5450, %v5468
      %5470 = vdwg.mxu0
      %5471 = vmatpush.bf16.msra.mxu0 %v3716
      %5472 = vmatpush.bf16.msra.mxu0 %v3708
      %5473 = vmatpush.bf16.msra.mxu0 %v3700
      %5474 = vmatpush.bf16.msra.mxu0 %v3692
      %5475 = vmatpush.bf16.msra.mxu0 %v3684
      %5476 = vmatpush.bf16.msra.mxu0 %v3676
      %5477 = vmatpush.bf16.msra.mxu0 %v3668
      %5478 = vmatpush.bf16.msra.mxu0 %v3660
      %5479 = vmatmul.bf16.gmra.mxu0 %v1193
      %v5480 = vpop.f32.mrf.mxu0
      %v5481 = vadd.f32 %v5462, %v5480
      %v5482 = vpop.f32.mrf.mxu0
      %v5483 = vadd.f32 %v5464, %v5482
      %5484 = vmatmul.bf16.gmra.mxu0 %v1201
      %v5485 = vpop.f32.mrf.mxu0
      %v5486 = vadd.f32 %v5467, %v5485
      %v5487 = vpop.f32.mrf.mxu0
      %v5488 = vadd.f32 %v5469, %v5487
      %5489 = vdwg.mxu0
      %5490 = vmatpush.bf16.msra.mxu0 %v3780
      %5491 = vmatpush.bf16.msra.mxu0 %v3772
      %5492 = vmatpush.bf16.msra.mxu0 %v3764
      %5493 = vmatpush.bf16.msra.mxu0 %v3756
      %5494 = vmatpush.bf16.msra.mxu0 %v3748
      %5495 = vmatpush.bf16.msra.mxu0 %v3740
      %5496 = vmatpush.bf16.msra.mxu0 %v3732
      %5497 = vmatpush.bf16.msra.mxu0 %v3724
      %5498 = vmatmul.bf16.gmra.mxu0 %v1194
      %v5499 = vpop.f32.mrf.mxu0
      %v5500 = vadd.f32 %v5481, %v5499
      %v5501 = vpop.f32.mrf.mxu0
      %v5502 = vadd.f32 %v5483, %v5501
      %5503 = vmatmul.bf16.gmra.mxu0 %v1202
      %v5504 = vpop.f32.mrf.mxu0
      %v5505 = vadd.f32 %v5486, %v5504
      %v5506 = vpop.f32.mrf.mxu0
      %v5507 = vadd.f32 %v5488, %v5506
      %5508 = vdwg.mxu0
      %5509 = vst [vmem:[%s224] sm:$0xff] %v4436
      %5510 = vst [vmem:[%s224 + $0x8] sm:$0xff] %v4588
      %5511 = vst [vmem:[%s224 + $0x10] sm:$0xff] %v4740
      %5512 = vst [vmem:[%s224 + $0x18] sm:$0xff] %v4892
      %5513 = vst [vmem:[%s224 + $0x20] sm:$0xff] %v5044
      %5514 = vst [vmem:[%s224 + $0x28] sm:$0xff] %v5196
      %5515 = vst [vmem:[%s224 + $0x30] sm:$0xff] %v5348
      %5516 = vst [vmem:[%s224 + $0x38] sm:$0xff] %v5500
      %5517 = vst [vmem:[%s224 + $0x40] sm:$0xff] %v4438
      %5518 = vst [vmem:[%s224 + $0x48] sm:$0xff] %v4590
      %5519 = vst [vmem:[%s224 + $0x50] sm:$0xff] %v4742
      %5520 = vst [vmem:[%s224 + $0x58] sm:$0xff] %v4894
      %5521 = vst [vmem:[%s224 + $0x60] sm:$0xff] %v5046
      %5522 = vst [vmem:[%s224 + $0x68] sm:$0xff] %v5198
      %5523 = vst [vmem:[%s224 + $0x70] sm:$0xff] %v5350
      %5524 = vst [vmem:[%s224 + $0x78] sm:$0xff] %v5502
      %5525 = vst [vmem:[%s224 + $0x80] sm:$0xff] %v4441
      %5526 = vst [vmem:[%s224 + $0x88] sm:$0xff] %v4593
      %5527 = vst [vmem:[%s224 + $0x90] sm:$0xff] %v4745
      %5528 = vst [vmem:[%s224 + $0x98] sm:$0xff] %v4897
      %5529 = vst [vmem:[%s224 + $0xa0] sm:$0xff] %v5049
      %5530 = vst [vmem:[%s224 + $0xa8] sm:$0xff] %v5201
      %5531 = vst [vmem:[%s224 + $0xb0] sm:$0xff] %v5353
      %5532 = vst [vmem:[%s224 + $0xb8] sm:$0xff] %v5505
      %5533 = vst [vmem:[%s224 + $0xc0] sm:$0xff] %v4443
      %5534 = vst [vmem:[%s224 + $0xc8] sm:$0xff] %v4595
      %5535 = vst [vmem:[%s224 + $0xd0] sm:$0xff] %v4747
      %5536 = vst [vmem:[%s224 + $0xd8] sm:$0xff] %v4899
      %5537 = vst [vmem:[%s224 + $0xe0] sm:$0xff] %v5051
      %5538 = vst [vmem:[%s224 + $0xe8] sm:$0xff] %v5203
      %5539 = vst [vmem:[%s224 + $0xf0] sm:$0xff] %v5355
      %5540 = vst [vmem:[%s224 + $0xf8] sm:$0xff] %v5507
      %p5541 = scmp.lt.s32.totalorder %s16, 1
      %s5542 = scalar_select %p5541, %s16, 1
      %s5543 = smul.addr %s5542, 32
      %s5544 = smul.addr %s5543, 8
      %s5545 = scalar_lea.vmem %s5, %s5544
      // Predicated region
      $region41: #{updla_unit_forward.1} parent=39 // pred_check
        %p5546 = pneg %p144
      $region42: #{updla_unit_forward.1} parent=39 // pred_check_branch
        %5548 = sbr.rel (%p5546) target = $region44
      $region43: #{updla_unit_forward.1} parent=39 // pred_region
        _
      $region44: #{updla_unit_forward.1} parent=39 // pred_fallthru
        _
    $region40: #{updla_unit_forward.1} parent=5 // pred_fallthru
      _
    %p5549 = scmp.le.s32.totalorder 2, %s11
    // Predicated region
    $region45: #{updla_unit_forward.1} parent=5 // pred_check
      %p5550 = pneg %p5549
    $region46: #{updla_unit_forward.1} parent=5 // pred_check_branch
      %5552 = sbr.rel (%p5550) target = $region48
    $region47: #{updla_unit_forward.1} parent=5 // pred_region
      %s5553 = ssub.s32 %s11, 2
      // Predicated region
      $region49: #{updla_unit_forward.1} parent=47 // pred_check
        %p5554 = pneg %p150
      $region50: #{updla_unit_forward.1} parent=47 // pred_check_branch
        %5556 = sbr.rel (%p5554) target = $region52
      $region51: #{updla_unit_forward.1} parent=47 // pred_region
        %p5557 = scmp.lt.s32.totalorder %s17, 1
        %s5558 = scalar_select %p5557, %s17, 1
        %s5559 = smul.addr %s5558, 32
        %s5560 = smul.addr %s5559, 8
        %s5561 = scalar_lea.vmem %s5, %s5560
      $region52: #{updla_unit_forward.1} parent=47 // pred_fallthru
        _
    $region48: #{updla_unit_forward.1} parent=5 // pred_fallthru
      _
  $region6: #{updla_unit_forward.1} parent=0 // loop_footer
    %s15 = sadd.s32 1, %s11
  $region7: #{updla_unit_forward.1} parent=0 // loop_footer_branch
    %10 = sbr.rel target = $region3
  $region8: #{updla_unit_forward.1} parent=0 // loop_exit
    _

</llo_original>
